<compile_context>
chip_gen: v7x
topology: tpu7x:2x2x1
jax: 0.10.0
libtpu: 0.0.40
codegen_flags: <defaults>
</compile_context>

<pallas_src>
import functools

import jax
import jax.numpy as jnp
from jax.experimental import pallas as pl
from jax.experimental.pallas import tpu as pltpu

EPS = 1e-5      # BatchNorm1d default eps
LANE = 128      # TPU lane width


def _rup(c):
    """Round channel count up to a full lane tile (128)."""
    return ((c + LANE - 1) // LANE) * LANE


# ---------------------------------------------------------------------------
# Kernel: one grid step = one pack of Gb graphs (block-diagonal adjacency).
# ---------------------------------------------------------------------------
def gnn_kernel(a_ref, x_ref, seg_ref, segt_ref,
               w1_ref, w2_ref, w3_ref, wl_ref, vecs_ref,
               out_ref, *, inv_n, hp, op):
    # ---- symmetric D^-1/2 (A+I) D^-1/2 normalization, computed ONCE per pack ----
    a = a_ref[0].astype(jnp.float32)                       # [P, P] binary block-diag A+I
    P = a.shape[0]
    deg = jnp.sum(a, axis=1, keepdims=True)                # [P, 1] in-degree (>=1: self loops)
    # Lane-layout copy of deg without a cross-layout transpose: mask to the diagonal and
    # reduce over sublanes (cheap, once per pack).
    ii = jax.lax.broadcasted_iota(jnp.int32, (P, P), 0)
    jj = jax.lax.broadcasted_iota(jnp.int32, (P, P), 1)
    deg_lane = jnp.sum(jnp.where(ii == jj, deg, 0.0), axis=0, keepdims=True)   # [1, P]
    a_hat = (a * jax.lax.rsqrt(deg) * jax.lax.rsqrt(deg_lane)).astype(jnp.bfloat16)

    seg = seg_ref[...]            # [Gb, P] f32 segment indicator (per-graph BN)
    segt = segt_ref[...]          # [P, Gb] f32
    vecs = vecs_ref[...]          # [10, Cmax] f32: b1,g1,be1,b2,g2,be2,b3,g3,be3,bl

    def gcn_relu_bn(x_bf, w_bf, bias, gamma, beta):
        xw = jnp.dot(x_bf, w_bf, preferred_element_type=jnp.float32)          # X W    (MXU)
        h = jnp.dot(a_hat, xw.astype(jnp.bfloat16),
                    preferred_element_type=jnp.float32) + bias                # propagate (MXU)
        h = jnp.maximum(h, 0.0)                                               # ReLU (f32)
        # Per-graph BatchNorm1d (training mode, biased variance). Segment sums done as
        # small indicator matmuls on the MXU; gamma*rsqrt hoisted -> one FMA per element.
        mean = jnp.dot(seg, h, preferred_element_type=jnp.float32) * inv_n     # [Gb, C]
        ex2 = jnp.dot(seg, h * h, preferred_element_type=jnp.float32) * inv_n  # [Gb, C]
        var = jnp.maximum(ex2 - mean * mean, 0.0)
        scale_g = gamma * jax.lax.rsqrt(var + EPS)                             # EUP rsqrt
        shift_g = beta - mean * scale_g
        scale = jnp.dot(segt, scale_g, preferred_element_type=jnp.float32)     # [P, C]
        shift = jnp.dot(segt, shift_g, preferred_element_type=jnp.float32)
        return h * scale + shift

    x1 = gcn_relu_bn(x_ref[0], w1_ref[...],
                     vecs[0:1, :hp], vecs[1:2, :hp], vecs[2:3, :hp])
    x2 = gcn_relu_bn(x1.astype(jnp.bfloat16), w2_ref[...],
                     vecs[3:4, :hp], vecs[4:5, :hp], vecs[5:6, :hp])
    x3 = gcn_relu_bn(x2.astype(jnp.bfloat16), w3_ref[...],
                     vecs[6:7, :op], vecs[7:8, :op], vecs[8:9, :op])

    # relu( cat([x1,x2,x3], -1) @ W_lin + b_lin ): one K = 2*hp+op MXU push
    # (lane-concat at 128-lane boundaries; W_lin rows stacked in the wrapper).
    xcat = jnp.concatenate([x1.astype(jnp.bfloat16),
                            x2.astype(jnp.bfloat16),
                            x3.astype(jnp.bfloat16)], axis=-1)                 # [P, 2hp+op]
    y = jnp.dot(xcat, wl_ref[...], preferred_element_type=jnp.float32) + vecs[9:10, :op]
    out_ref[0] = jnp.maximum(y, 0.0)                       # lane-dense (multiple-of-128) store


# ---------------------------------------------------------------------------
# Parameter padding / casting / fusing (one-time, at the kernel boundary).
# ---------------------------------------------------------------------------
def _pad2(m, rows, cols):
    return jnp.zeros((rows, cols), m.dtype).at[: m.shape[0], : m.shape[1]].set(m)


def _vec_row(v, width, cmax, fill=0.0):
    """Place a logical (1, c) vector into a (cmax,) f32 row: pad to `width` with `fill`."""
    body = jnp.full((width,), fill, jnp.float32).at[: v.shape[-1]].set(
        v.reshape(-1).astype(jnp.float32))
    return jnp.zeros((cmax,), jnp.float32).at[:width].set(body)


def prepare_params(params):
    """Zero-pad channel dims to 128 lanes, cast matmul operands to bf16, fuse operands.

    Returns {w1, w2, w3, wl, vecs}:
      wl   = row-stacked [wl1; wl2; wl3]  (single K = 2*hp+op final matmul)
      vecs = (10, Cmax) f32 rows: b1,g1,be1, b2,g2,be2, b3,g3,be3, bl
    """
    in_c, hid = params["w1"].shape
    out_c = params["w3"].shape[1]
    ip, hp, op = _rup(in_c), _rup(hid), _rup(out_c)
    cmax = max(hp, op)
    bf = jnp.bfloat16

    wl = jnp.concatenate([_pad2(params["wl1"], hp, op),
                          _pad2(params["wl2"], hp, op),
                          _pad2(params["wl3"], op, op)], axis=0)     # [2hp+op, op]

    vecs = jnp.stack([
        _vec_row(params["b1"], hp, cmax), _vec_row(params["g1"], hp, cmax, 1.0),
        _vec_row(params["be1"], hp, cmax),
        _vec_row(params["b2"], hp, cmax), _vec_row(params["g2"], hp, cmax, 1.0),
        _vec_row(params["be2"], hp, cmax),
        _vec_row(params["b3"], op, cmax), _vec_row(params["g3"], op, cmax, 1.0),
        _vec_row(params["be3"], op, cmax),
        _vec_row(params["bl"], op, cmax),
    ], axis=0)                                                       # [10, cmax] f32

    return {
        "w1": _pad2(params["w1"], ip, hp).astype(bf),
        "w2": _pad2(params["w2"], hp, hp).astype(bf),
        "w3": _pad2(params["w3"], hp, op).astype(bf),
        "wl": wl.astype(bf),
        "vecs": vecs,
    }


# ---------------------------------------------------------------------------
# Forward wrappers.
# ---------------------------------------------------------------------------
def gnn_forward_batched(x, edge_index, params, *, pack_target=256):
    """x: [G, N, in_c] f32, edge_index: [G, 2, E] int32 -> [G, N, out_c] f32.

    BatchNorm statistics are per graph (exactly as calling the reference module once per
    graph); graphs are packed Gb-per-grid-step as a block-diagonal adjacency for MXU fill.
    Assumes N is a multiple of 8 (sublane tile).
    """
    G, N, in_c = x.shape
    hid = params["w1"].shape[1]
    out_c = params["w3"].shape[1]
    ip, hp, op = _rup(in_c), _rup(hid), _rup(out_c)
    cmax = max(hp, op)

    p = prepare_params(params)

    # ---- choose packing factor: ~256 rows per pack (v6e/v7x MXU tile; 128 ok for v5e),
    # but back off so the grid keeps >= 2 steps (v7x dual TC) while a pack stays >= 128.
    gb = max(1, pack_target // N)
    while gb > 1 and pl.cdiv(G, gb) < 2 and (gb // 2) * N >= LANE:
        gb //= 2
    num_packs = pl.cdiv(G, gb)
    Gp = num_packs * gb
    P = gb * N                       # rows per pack

    # pad to a whole number of packs with empty graphs (self-loop-only, zero features)
    if Gp > G:
        x = jnp.concatenate([x, jnp.zeros((Gp - G, N, in_c), x.dtype)], axis=0)
        pad_ei = jnp.zeros((Gp - G,) + edge_index.shape[1:], edge_index.dtype)
        edge_index = jnp.concatenate([edge_index, pad_ei], axis=0)

    # Dense binary A + self loops (exact in bf16). Duplicate edges dedupe via .set();
    # jnp.maximum with I matches add_remaining_self_loops (no weight-2 diagonal).
    # The D^-1/2 normalization happens inside the kernel (no N^2 f32 HBM round trip).
    # TODO(synk): for realistically sparse / large graphs (P x P bf16 no longer fitting
    # ~half of v7x's 64 MiB VMEM double-buffered), tile adjacency rows on a second grid
    # axis with an output accumulator, or switch to a scalar-prefetch CSR SpMM.
    def build_adj(ei):
        a = jnp.zeros((N, N), jnp.float32).at[ei[1], ei[0]].set(1.0)
        return jnp.maximum(a, jnp.eye(N, dtype=jnp.float32))

    adj_g = jax.vmap(build_adj)(edge_index)                            # [Gp, N, N]
    adj = jnp.einsum("pgij,gh->pgihj",
                     adj_g.reshape(num_packs, gb, N, N),
                     jnp.eye(gb, dtype=jnp.float32)).reshape(num_packs, P, P)
    adj = adj.astype(jnp.bfloat16)                                     # block-diag A+I

    xp = jnp.pad(x, ((0, 0), (0, 0), (0, ip - in_c)))
    xp = xp.reshape(num_packs, P, ip).astype(jnp.bfloat16)             # [packs, P, ip]

    # segment indicator (pack-invariant): seg[g, g*N:(g+1)*N] = 1
    seg = jnp.repeat(jnp.eye(gb, dtype=jnp.float32), N, axis=1)        # [gb, P]
    segt = seg.T                                                       # [P, gb]

    def wspec(shape):  # resident operands: same block every grid step
        return pl.BlockSpec(shape, lambda g: (0,) * len(shape))

    in_specs = [
        pl.BlockSpec((1, P, P), lambda g: (g, 0, 0)),      # block-diag adjacency (bf16)
        pl.BlockSpec((1, P, ip), lambda g: (g, 0, 0)),     # packed node features (bf16)
        wspec((gb, P)),                                     # seg
        wspec((P, gb)),                                     # segT
        wspec((ip, hp)), wspec((hp, hp)), wspec((hp, op)),  # w1, w2, w3
        wspec((2 * hp + op, op)),                           # wl (stacked final linear)
        wspec((10, cmax)),                                  # fused bias/gamma/beta rows
    ]

    # Explicit VMEM budget for the packed block size: double-buffered per-pack I/O blocks
    # + resident params + in-kernel f32/bf16 temporaries (a, a_hat, diag mask, h, x1..x3)
    # + headroom.  Stays within v5e's 16 MiB scoped default at demo shapes and is capped
    # at v7x's 64 MiB physical VMEM.
    io_block_bytes = P * P * 2 + P * ip * 2 + P * op * 4
    param_bytes = sum(int(v.size) * v.dtype.itemsize for v in p.values())
    param_bytes += (int(seg.size) + int(segt.size)) * 4
    temps_bytes = 2 * P * P * 4 + P * P * 2 + 10 * P * cmax * 4
    vmem_limit = int(min(64 << 20,
                         max(16 << 20,
                             2 * (io_block_bytes + param_bytes) + temps_bytes + (2 << 20))))

    mm_flops_pack = 2 * P * (ip * hp + P * hp          # conv1: XW, A_hat@(XW)
                             + hp * hp + P * hp        # conv2
                             + hp * op + P * op        # conv3
                             + (2 * hp + op) * op)     # fused final linear
    bn_flops_pack = 3 * 8 * gb * P * cmax              # seg stats + broadcast-back matmuls
    cost = pl.CostEstimate(
        flops=int(num_packs * (mm_flops_pack + bn_flops_pack)),
        transcendentals=int(num_packs * (2 * P + 3 * gb * cmax)),   # dinv + BN rsqrt
        bytes_accessed=int(adj.size * 2 + xp.size * 2 + num_packs * P * op * 4 + param_bytes),
    )

    out = pl.pallas_call(
        functools.partial(gnn_kernel, inv_n=1.0 / N, hp=hp, op=op),
        out_shape=jax.ShapeDtypeStruct((num_packs, P, op), jnp.float32),
        grid=(num_packs,),
        in_specs=in_specs,
        out_specs=pl.BlockSpec((1, P, op), lambda g: (g, 0, 0)),
        compiler_params=pltpu.CompilerParams(
            dimension_semantics=("parallel",),   # packs are independent -> v7x 2 TCs
            vmem_limit_bytes=vmem_limit,
        ),
        cost_estimate=cost,
    )(adj, xp, seg, segt, p["w1"], p["w2"], p["w3"], p["wl"], p["vecs"])

    out = out.reshape(Gp, N, op)
    return out[:G, :, :out_c]        # drop graph + lane padding (tiny XLA slice)


def gnn_forward(x, edge_index, batch, params, mask=None):
    """Module-faithful single-graph forward (batch/mask only feed print() in the reference)."""
    del batch, mask
    return gnn_forward_batched(x[None], edge_index[None], params)[0]


# ---------------------------------------------------------------------------
# Parameter init (logical shapes, f32, matching the PyTorch module's init style).
# ---------------------------------------------------------------------------
def init_params(key, in_channels, hidden_channels, out_channels):
    ks = jax.random.split(key, 8)

    def glorot(k, shape):
        lim = (6.0 / (shape[0] + shape[1])) ** 0.5
        return jax.random.uniform(k, shape, jnp.float32, -lim, lim)

    cat_dim = 2 * hidden_channels + out_channels
    w_lin = glorot(ks[3], (cat_dim, out_channels))
    return {
        # GCNConv weights + biases
        "w1": glorot(ks[0], (in_channels, hidden_channels)),
        "b1": jnp.zeros((1, hidden_channels), jnp.float32),
        "w2": glorot(ks[1], (hidden_channels, hidden_channels)),
        "b2": jnp.zeros((1, hidden_channels), jnp.float32),
        "w3": glorot(ks[2], (hidden_channels, out_channels)),
        "b3": jnp.zeros((1, out_channels), jnp.float32),
        # BatchNorm1d affine params (gamma=1, beta=0); running stats not tracked
        "g1": jnp.ones((1, hidden_channels), jnp.float32),
        "be1": jnp.zeros((1, hidden_channels), jnp.float32),
        "g2": jnp.ones((1, hidden_channels), jnp.float32),
        "be2": jnp.zeros((1, hidden_channels), jnp.float32),
        "g3": jnp.ones((1, out_channels), jnp.float32),
        "be3": jnp.zeros((1, out_channels), jnp.float32),
        # final Linear, split row-wise to match cat([x1, x2, x3], -1) @ W_lin
        "wl1": w_lin[:hidden_channels],
        "wl2": w_lin[hidden_channels:2 * hidden_channels],
        "wl3": w_lin[2 * hidden_channels:],
        "bl": jnp.zeros((1, out_channels), jnp.float32),
    }


if __name__ == "__main__":
    G = 16                # graphs; packed 8-per-step -> grid of 2 (keeps v7x dual-TC busy)
    N = 32                # nodes per graph -> 256-row packs (v6e/v7x MXU-native)
    IN_CH, HIDDEN, OUT_CH = 16, 32, 32

    key = jax.random.PRNGKey(0)
    kx, kp = jax.random.split(key)
    x = jax.random.normal(kx, (G, N, IN_CH), jnp.float32)

    # deterministic bidirectional ring graph, replicated per example
    idx = jnp.arange(N, dtype=jnp.int32)
    src = jnp.concatenate([idx, (idx + 1) % N])
    dst = jnp.concatenate([(idx + 1) % N, idx])
    edge_index = jnp.broadcast_to(jnp.stack([src, dst], 0)[None], (G, 2, 2 * N))

    params = init_params(kp, IN_CH, HIDDEN, OUT_CH)

    # batched (packed-grid) path
    out_b = jax.block_until_ready(gnn_forward_batched(x, edge_index, params))
    assert out_b.shape == (G, N, OUT_CH)
    assert bool(jnp.all(jnp.isfinite(out_b)))

    # single-graph path matching the reference forward signature
    batch = jnp.zeros((N,), jnp.int32)
    out_1 = jax.block_until_ready(gnn_forward(x[0], edge_index[0], batch, params))
    assert out_1.shape == (N, OUT_CH)
    assert bool(jnp.all(jnp.isfinite(out_1)))

    print("KERNEL_OK")
</pallas_src>

<mosaic_0001>
module attributes {stable_mosaic.version = 11 : i64} {
  func.func @gnn_kernel(%arg0: i32, %arg1: memref<1x256x256xbf16, #tpu.memory_space<vmem>>, %arg2: memref<1x256x128xbf16, #tpu.memory_space<vmem>>, %arg3: memref<8x256xf32, #tpu.memory_space<vmem>>, %arg4: memref<256x8xf32, #tpu.memory_space<vmem>>, %arg5: memref<128x128xbf16, #tpu.memory_space<vmem>>, %arg6: memref<128x128xbf16, #tpu.memory_space<vmem>>, %arg7: memref<128x128xbf16, #tpu.memory_space<vmem>>, %arg8: memref<384x128xbf16, #tpu.memory_space<vmem>>, %arg9: memref<10x128xf32, #tpu.memory_space<vmem>>, %arg10: memref<1x256x128xf32, #tpu.memory_space<vmem>>) attributes {dimension_semantics = [#tpu.dimension_semantics<parallel>], iteration_bounds = array<i64: 2>, scalar_prefetch = 0 : i64, scratch_operands = 0 : i64, tpu.core_type = #tpu.core_type<tc>, window_params = [{transform_indices = @transform_0, window_bounds = array<i64: 1, 256, 256>}, {transform_indices = @transform_1, window_bounds = array<i64: 1, 256, 128>}, {pipeline_mode = #tpu.pipeline_mode<synchronous>, transform_indices = @transform_2, window_bounds = array<i64: 8, 256>}, {pipeline_mode = #tpu.pipeline_mode<synchronous>, transform_indices = @transform_3, window_bounds = array<i64: 256, 8>}, {pipeline_mode = #tpu.pipeline_mode<synchronous>, transform_indices = @transform_4, window_bounds = array<i64: 128, 128>}, {pipeline_mode = #tpu.pipeline_mode<synchronous>, transform_indices = @transform_5, window_bounds = array<i64: 128, 128>}, {pipeline_mode = #tpu.pipeline_mode<synchronous>, transform_indices = @transform_6, window_bounds = array<i64: 128, 128>}, {pipeline_mode = #tpu.pipeline_mode<synchronous>, transform_indices = @transform_7, window_bounds = array<i64: 384, 128>}, {pipeline_mode = #tpu.pipeline_mode<synchronous>, transform_indices = @transform_8, window_bounds = array<i64: 10, 128>}, {transform_indices = @transform_9, window_bounds = array<i64: 1, 256, 128>}]} {
    %c0 = arith.constant 0 : index
    %c0_0 = arith.constant 0 : index
    %c0_1 = arith.constant 0 : index
    %0 = vector.load %arg1[%c0, %c0_0, %c0_1] : memref<1x256x256xbf16, #tpu.memory_space<vmem>>, vector<1x256x256xbf16>
    %1 = vector.shape_cast %0 : vector<1x256x256xbf16> to vector<256x256xbf16>
    %2 = arith.extf %1 : vector<256x256xbf16> to vector<256x256xf32>
    %cst = arith.constant dense<0.000000e+00> : vector<256xf32>
    %3 = vector.multi_reduction <add>, %2, %cst [1] : vector<256x256xf32> to vector<256xf32>
    %4 = vector.shape_cast %3 : vector<256xf32> to vector<256x1xf32>
    %5 = tpu.iota {dimensions = array<i32: 0>} : vector<256x256xi32>
    %6 = tpu.iota {dimensions = array<i32: 1>} : vector<256x256xi32>
    %7 = arith.cmpi eq, %5, %6 : vector<256x256xi32>
    %cst_2 = arith.constant 0.000000e+00 : f32
    %8 = vector.shape_cast %4 : vector<256x1xf32> to vector<256x1xf32>
    %9 = vector.broadcast %8 : vector<256x1xf32> to vector<256x256xf32>
    %10 = vector.broadcast %cst_2 : f32 to vector<256x256xf32>
    %11 = arith.select %7, %9, %10 : vector<256x256xi1>, vector<256x256xf32>
    %cst_3 = arith.constant dense<0.000000e+00> : vector<256xf32>
    %12 = vector.multi_reduction <add>, %11, %cst_3 [0] : vector<256x256xf32> to vector<256xf32>
    %13 = vector.shape_cast %12 : vector<256xf32> to vector<1x256xf32>
    %14 = math.rsqrt %4 : vector<256x1xf32>
    %15 = vector.broadcast %14 : vector<256x1xf32> to vector<256x256xf32>
    %16 = arith.mulf %2, %15 : vector<256x256xf32>
    %17 = math.rsqrt %13 : vector<1x256xf32>
    %18 = vector.broadcast %17 : vector<1x256xf32> to vector<256x256xf32>
    %19 = arith.mulf %16, %18 : vector<256x256xf32>
    %20 = arith.truncf %19 : vector<256x256xf32> to vector<256x256xbf16>
    %c0_4 = arith.constant 0 : index
    %c0_5 = arith.constant 0 : index
    %21 = vector.load %arg3[%c0_4, %c0_5] : memref<8x256xf32, #tpu.memory_space<vmem>>, vector<8x256xf32>
    %c0_6 = arith.constant 0 : index
    %c0_7 = arith.constant 0 : index
    %22 = vector.load %arg4[%c0_6, %c0_7] : memref<256x8xf32, #tpu.memory_space<vmem>>, vector<256x8xf32>
    %c0_8 = arith.constant 0 : index
    %c0_9 = arith.constant 0 : index
    %23 = vector.load %arg9[%c0_8, %c0_9] : memref<10x128xf32, #tpu.memory_space<vmem>>, vector<10x128xf32>
    %c0_10 = arith.constant 0 : index
    %c0_11 = arith.constant 0 : index
    %c0_12 = arith.constant 0 : index
    %24 = vector.load %arg2[%c0_10, %c0_11, %c0_12] : memref<1x256x128xbf16, #tpu.memory_space<vmem>>, vector<1x256x128xbf16>
    %25 = vector.shape_cast %24 : vector<1x256x128xbf16> to vector<256x128xbf16>
    %c0_13 = arith.constant 0 : index
    %c0_14 = arith.constant 0 : index
    %26 = vector.load %arg5[%c0_13, %c0_14] : memref<128x128xbf16, #tpu.memory_space<vmem>>, vector<128x128xbf16>
    %27 = vector.extract_strided_slice %23 {offsets = [0, 0], sizes = [1, 128], strides = [1, 1]} : vector<10x128xf32> to vector<1x128xf32>
    %28 = vector.extract_strided_slice %23 {offsets = [1, 0], sizes = [1, 128], strides = [1, 1]} : vector<10x128xf32> to vector<1x128xf32>
    %29 = vector.extract_strided_slice %23 {offsets = [2, 0], sizes = [1, 128], strides = [1, 1]} : vector<10x128xf32> to vector<1x128xf32>
    %cst_15 = arith.constant dense<0.000000e+00> : vector<256x128xf32>
    %30 = tpu.matmul %25, %26, %cst_15 {dimension_numbers = #tpu.dot_dimension_numbers<[1], [0], [0], [1], [0, 0, 1, 1], [], []>} : vector<256x128xbf16>, vector<128x128xbf16>, vector<256x128xf32> -> vector<256x128xf32>
    %31 = arith.truncf %30 : vector<256x128xf32> to vector<256x128xbf16>
    %cst_16 = arith.constant dense<0.000000e+00> : vector<256x128xf32>
    %32 = tpu.matmul %20, %31, %cst_16 {dimension_numbers = #tpu.dot_dimension_numbers<[1], [0], [0], [1], [0, 0, 1, 1], [], []>} : vector<256x256xbf16>, vector<256x128xbf16>, vector<256x128xf32> -> vector<256x128xf32>
    %33 = vector.broadcast %27 : vector<1x128xf32> to vector<256x128xf32>
    %34 = arith.addf %32, %33 : vector<256x128xf32>
    %cst_17 = arith.constant 0.000000e+00 : f32
    %35 = vector.broadcast %cst_17 : f32 to vector<256x128xf32>
    %36 = arith.maximumf %34, %35 : vector<256x128xf32>
    %cst_18 = arith.constant dense<0.000000e+00> : vector<8x128xf32>
    %37 = tpu.matmul %21, %36, %cst_18 {dimension_numbers = #tpu.dot_dimension_numbers<[1], [0], [0], [1], [0, 0, 1, 1], [], []>} : vector<8x256xf32>, vector<256x128xf32>, vector<8x128xf32> -> vector<8x128xf32>
    %cst_19 = arith.constant 3.125000e-02 : f32
    %38 = vector.broadcast %cst_19 : f32 to vector<8x128xf32>
    %39 = arith.mulf %37, %38 : vector<8x128xf32>
    %40 = arith.mulf %36, %36 : vector<256x128xf32>
    %cst_20 = arith.constant dense<0.000000e+00> : vector<8x128xf32>
    %41 = tpu.matmul %21, %40, %cst_20 {dimension_numbers = #tpu.dot_dimension_numbers<[1], [0], [0], [1], [0, 0, 1, 1], [], []>} : vector<8x256xf32>, vector<256x128xf32>, vector<8x128xf32> -> vector<8x128xf32>
    %cst_21 = arith.constant 3.125000e-02 : f32
    %42 = vector.broadcast %cst_21 : f32 to vector<8x128xf32>
    %43 = arith.mulf %41, %42 : vector<8x128xf32>
    %44 = arith.mulf %39, %39 : vector<8x128xf32>
    %45 = arith.subf %43, %44 : vector<8x128xf32>
    %cst_22 = arith.constant 0.000000e+00 : f32
    %46 = vector.broadcast %cst_22 : f32 to vector<8x128xf32>
    %47 = arith.maximumf %45, %46 : vector<8x128xf32>
    %cst_23 = arith.constant 9.99999974E-6 : f32
    %48 = vector.broadcast %cst_23 : f32 to vector<8x128xf32>
    %49 = arith.addf %47, %48 : vector<8x128xf32>
    %50 = math.rsqrt %49 : vector<8x128xf32>
    %51 = vector.broadcast %28 : vector<1x128xf32> to vector<8x128xf32>
    %52 = arith.mulf %51, %50 : vector<8x128xf32>
    %53 = arith.mulf %39, %52 : vector<8x128xf32>
    %54 = vector.broadcast %29 : vector<1x128xf32> to vector<8x128xf32>
    %55 = arith.subf %54, %53 : vector<8x128xf32>
    %cst_24 = arith.constant dense<0.000000e+00> : vector<256x128xf32>
    %56 = tpu.matmul %22, %52, %cst_24 {dimension_numbers = #tpu.dot_dimension_numbers<[1], [0], [0], [1], [0, 0, 1, 1], [], []>} : vector<256x8xf32>, vector<8x128xf32>, vector<256x128xf32> -> vector<256x128xf32>
    %cst_25 = arith.constant dense<0.000000e+00> : vector<256x128xf32>
    %57 = tpu.matmul %22, %55, %cst_25 {dimension_numbers = #tpu.dot_dimension_numbers<[1], [0], [0], [1], [0, 0, 1, 1], [], []>} : vector<256x8xf32>, vector<8x128xf32>, vector<256x128xf32> -> vector<256x128xf32>
    %58 = arith.mulf %36, %56 : vector<256x128xf32>
    %59 = arith.addf %58, %57 : vector<256x128xf32>
    %60 = arith.truncf %59 : vector<256x128xf32> to vector<256x128xbf16>
    %c0_26 = arith.constant 0 : index
    %c0_27 = arith.constant 0 : index
    %61 = vector.load %arg6[%c0_26, %c0_27] : memref<128x128xbf16, #tpu.memory_space<vmem>>, vector<128x128xbf16>
    %62 = vector.extract_strided_slice %23 {offsets = [3, 0], sizes = [1, 128], strides = [1, 1]} : vector<10x128xf32> to vector<1x128xf32>
    %63 = vector.extract_strided_slice %23 {offsets = [4, 0], sizes = [1, 128], strides = [1, 1]} : vector<10x128xf32> to vector<1x128xf32>
    %64 = vector.extract_strided_slice %23 {offsets = [5, 0], sizes = [1, 128], strides = [1, 1]} : vector<10x128xf32> to vector<1x128xf32>
    %cst_28 = arith.constant dense<0.000000e+00> : vector<256x128xf32>
    %65 = tpu.matmul %60, %61, %cst_28 {dimension_numbers = #tpu.dot_dimension_numbers<[1], [0], [0], [1], [0, 0, 1, 1], [], []>} : vector<256x128xbf16>, vector<128x128xbf16>, vector<256x128xf32> -> vector<256x128xf32>
    %66 = arith.truncf %65 : vector<256x128xf32> to vector<256x128xbf16>
    %cst_29 = arith.constant dense<0.000000e+00> : vector<256x128xf32>
    %67 = tpu.matmul %20, %66, %cst_29 {dimension_numbers = #tpu.dot_dimension_numbers<[1], [0], [0], [1], [0, 0, 1, 1], [], []>} : vector<256x256xbf16>, vector<256x128xbf16>, vector<256x128xf32> -> vector<256x128xf32>
    %68 = vector.broadcast %62 : vector<1x128xf32> to vector<256x128xf32>
    %69 = arith.addf %67, %68 : vector<256x128xf32>
    %cst_30 = arith.constant 0.000000e+00 : f32
    %70 = vector.broadcast %cst_30 : f32 to vector<256x128xf32>
    %71 = arith.maximumf %69, %70 : vector<256x128xf32>
    %cst_31 = arith.constant dense<0.000000e+00> : vector<8x128xf32>
    %72 = tpu.matmul %21, %71, %cst_31 {dimension_numbers = #tpu.dot_dimension_numbers<[1], [0], [0], [1], [0, 0, 1, 1], [], []>} : vector<8x256xf32>, vector<256x128xf32>, vector<8x128xf32> -> vector<8x128xf32>
    %cst_32 = arith.constant 3.125000e-02 : f32
    %73 = vector.broadcast %cst_32 : f32 to vector<8x128xf32>
    %74 = arith.mulf %72, %73 : vector<8x128xf32>
    %75 = arith.mulf %71, %71 : vector<256x128xf32>
    %cst_33 = arith.constant dense<0.000000e+00> : vector<8x128xf32>
    %76 = tpu.matmul %21, %75, %cst_33 {dimension_numbers = #tpu.dot_dimension_numbers<[1], [0], [0], [1], [0, 0, 1, 1], [], []>} : vector<8x256xf32>, vector<256x128xf32>, vector<8x128xf32> -> vector<8x128xf32>
    %cst_34 = arith.constant 3.125000e-02 : f32
    %77 = vector.broadcast %cst_34 : f32 to vector<8x128xf32>
    %78 = arith.mulf %76, %77 : vector<8x128xf32>
    %79 = arith.mulf %74, %74 : vector<8x128xf32>
    %80 = arith.subf %78, %79 : vector<8x128xf32>
    %cst_35 = arith.constant 0.000000e+00 : f32
    %81 = vector.broadcast %cst_35 : f32 to vector<8x128xf32>
    %82 = arith.maximumf %80, %81 : vector<8x128xf32>
    %cst_36 = arith.constant 9.99999974E-6 : f32
    %83 = vector.broadcast %cst_36 : f32 to vector<8x128xf32>
    %84 = arith.addf %82, %83 : vector<8x128xf32>
    %85 = math.rsqrt %84 : vector<8x128xf32>
    %86 = vector.broadcast %63 : vector<1x128xf32> to vector<8x128xf32>
    %87 = arith.mulf %86, %85 : vector<8x128xf32>
    %88 = arith.mulf %74, %87 : vector<8x128xf32>
    %89 = vector.broadcast %64 : vector<1x128xf32> to vector<8x128xf32>
    %90 = arith.subf %89, %88 : vector<8x128xf32>
    %cst_37 = arith.constant dense<0.000000e+00> : vector<256x128xf32>
    %91 = tpu.matmul %22, %87, %cst_37 {dimension_numbers = #tpu.dot_dimension_numbers<[1], [0], [0], [1], [0, 0, 1, 1], [], []>} : vector<256x8xf32>, vector<8x128xf32>, vector<256x128xf32> -> vector<256x128xf32>
    %cst_38 = arith.constant dense<0.000000e+00> : vector<256x128xf32>
    %92 = tpu.matmul %22, %90, %cst_38 {dimension_numbers = #tpu.dot_dimension_numbers<[1], [0], [0], [1], [0, 0, 1, 1], [], []>} : vector<256x8xf32>, vector<8x128xf32>, vector<256x128xf32> -> vector<256x128xf32>
    %93 = arith.mulf %71, %91 : vector<256x128xf32>
    %94 = arith.addf %93, %92 : vector<256x128xf32>
    %95 = arith.truncf %94 : vector<256x128xf32> to vector<256x128xbf16>
    %c0_39 = arith.constant 0 : index
    %c0_40 = arith.constant 0 : index
    %96 = vector.load %arg7[%c0_39, %c0_40] : memref<128x128xbf16, #tpu.memory_space<vmem>>, vector<128x128xbf16>
    %97 = vector.extract_strided_slice %23 {offsets = [6, 0], sizes = [1, 128], strides = [1, 1]} : vector<10x128xf32> to vector<1x128xf32>
    %98 = vector.extract_strided_slice %23 {offsets = [7, 0], sizes = [1, 128], strides = [1, 1]} : vector<10x128xf32> to vector<1x128xf32>
    %99 = vector.extract_strided_slice %23 {offsets = [8, 0], sizes = [1, 128], strides = [1, 1]} : vector<10x128xf32> to vector<1x128xf32>
    %cst_41 = arith.constant dense<0.000000e+00> : vector<256x128xf32>
    %100 = tpu.matmul %95, %96, %cst_41 {dimension_numbers = #tpu.dot_dimension_numbers<[1], [0], [0], [1], [0, 0, 1, 1], [], []>} : vector<256x128xbf16>, vector<128x128xbf16>, vector<256x128xf32> -> vector<256x128xf32>
    %101 = arith.truncf %100 : vector<256x128xf32> to vector<256x128xbf16>
    %cst_42 = arith.constant dense<0.000000e+00> : vector<256x128xf32>
    %102 = tpu.matmul %20, %101, %cst_42 {dimension_numbers = #tpu.dot_dimension_numbers<[1], [0], [0], [1], [0, 0, 1, 1], [], []>} : vector<256x256xbf16>, vector<256x128xbf16>, vector<256x128xf32> -> vector<256x128xf32>
    %103 = vector.broadcast %97 : vector<1x128xf32> to vector<256x128xf32>
    %104 = arith.addf %102, %103 : vector<256x128xf32>
    %cst_43 = arith.constant 0.000000e+00 : f32
    %105 = vector.broadcast %cst_43 : f32 to vector<256x128xf32>
    %106 = arith.maximumf %104, %105 : vector<256x128xf32>
    %cst_44 = arith.constant dense<0.000000e+00> : vector<8x128xf32>
    %107 = tpu.matmul %21, %106, %cst_44 {dimension_numbers = #tpu.dot_dimension_numbers<[1], [0], [0], [1], [0, 0, 1, 1], [], []>} : vector<8x256xf32>, vector<256x128xf32>, vector<8x128xf32> -> vector<8x128xf32>
    %cst_45 = arith.constant 3.125000e-02 : f32
    %108 = vector.broadcast %cst_45 : f32 to vector<8x128xf32>
    %109 = arith.mulf %107, %108 : vector<8x128xf32>
    %110 = arith.mulf %106, %106 : vector<256x128xf32>
    %cst_46 = arith.constant dense<0.000000e+00> : vector<8x128xf32>
    %111 = tpu.matmul %21, %110, %cst_46 {dimension_numbers = #tpu.dot_dimension_numbers<[1], [0], [0], [1], [0, 0, 1, 1], [], []>} : vector<8x256xf32>, vector<256x128xf32>, vector<8x128xf32> -> vector<8x128xf32>
    %cst_47 = arith.constant 3.125000e-02 : f32
    %112 = vector.broadcast %cst_47 : f32 to vector<8x128xf32>
    %113 = arith.mulf %111, %112 : vector<8x128xf32>
    %114 = arith.mulf %109, %109 : vector<8x128xf32>
    %115 = arith.subf %113, %114 : vector<8x128xf32>
    %cst_48 = arith.constant 0.000000e+00 : f32
    %116 = vector.broadcast %cst_48 : f32 to vector<8x128xf32>
    %117 = arith.maximumf %115, %116 : vector<8x128xf32>
    %cst_49 = arith.constant 9.99999974E-6 : f32
    %118 = vector.broadcast %cst_49 : f32 to vector<8x128xf32>
    %119 = arith.addf %117, %118 : vector<8x128xf32>
    %120 = math.rsqrt %119 : vector<8x128xf32>
    %121 = vector.broadcast %98 : vector<1x128xf32> to vector<8x128xf32>
    %122 = arith.mulf %121, %120 : vector<8x128xf32>
    %123 = arith.mulf %109, %122 : vector<8x128xf32>
    %124 = vector.broadcast %99 : vector<1x128xf32> to vector<8x128xf32>
    %125 = arith.subf %124, %123 : vector<8x128xf32>
    %cst_50 = arith.constant dense<0.000000e+00> : vector<256x128xf32>
    %126 = tpu.matmul %22, %122, %cst_50 {dimension_numbers = #tpu.dot_dimension_numbers<[1], [0], [0], [1], [0, 0, 1, 1], [], []>} : vector<256x8xf32>, vector<8x128xf32>, vector<256x128xf32> -> vector<256x128xf32>
    %cst_51 = arith.constant dense<0.000000e+00> : vector<256x128xf32>
    %127 = tpu.matmul %22, %125, %cst_51 {dimension_numbers = #tpu.dot_dimension_numbers<[1], [0], [0], [1], [0, 0, 1, 1], [], []>} : vector<256x8xf32>, vector<8x128xf32>, vector<256x128xf32> -> vector<256x128xf32>
    %128 = arith.mulf %106, %126 : vector<256x128xf32>
    %129 = arith.addf %128, %127 : vector<256x128xf32>
    %130 = arith.truncf %59 : vector<256x128xf32> to vector<256x128xbf16>
    %131 = arith.truncf %94 : vector<256x128xf32> to vector<256x128xbf16>
    %132 = arith.truncf %129 : vector<256x128xf32> to vector<256x128xbf16>
    %133 = tpu.concatenate %130, %131, %132 in 1 : vector<256x128xbf16>, vector<256x128xbf16>, vector<256x128xbf16> -> vector<256x384xbf16>
    %c0_52 = arith.constant 0 : index
    %c0_53 = arith.constant 0 : index
    %134 = vector.load %arg8[%c0_52, %c0_53] : memref<384x128xbf16, #tpu.memory_space<vmem>>, vector<384x128xbf16>
    %cst_54 = arith.constant dense<0.000000e+00> : vector<256x128xf32>
    %135 = tpu.matmul %133, %134, %cst_54 {dimension_numbers = #tpu.dot_dimension_numbers<[1], [0], [0], [1], [0, 0, 1, 1], [], []>} : vector<256x384xbf16>, vector<384x128xbf16>, vector<256x128xf32> -> vector<256x128xf32>
    %136 = vector.extract_strided_slice %23 {offsets = [9, 0], sizes = [1, 128], strides = [1, 1]} : vector<10x128xf32> to vector<1x128xf32>
    %137 = vector.broadcast %136 : vector<1x128xf32> to vector<256x128xf32>
    %138 = arith.addf %135, %137 : vector<256x128xf32>
    %cst_55 = arith.constant 0.000000e+00 : f32
    %139 = vector.broadcast %cst_55 : f32 to vector<256x128xf32>
    %140 = arith.maximumf %138, %139 : vector<256x128xf32>
    %c0_56 = arith.constant 0 : index
    %c0_57 = arith.constant 0 : index
    %c0_58 = arith.constant 0 : index
    %141 = vector.load %arg10[%c0_56, %c0_57, %c0_58] : memref<1x256x128xf32, #tpu.memory_space<vmem>>, vector<1x256x128xf32>
    %142 = vector.shape_cast %141 : vector<1x256x128xf32> to vector<256x128xf32>
    %143 = vector.shape_cast %140 : vector<256x128xf32> to vector<1x256x128xf32>
    tpu.vector_store %arg10[%c0_56, %c0_57, %c0_58], %143 {strides = array<i32>} : memref<1x256x128xf32, #tpu.memory_space<vmem>>, vector<1x256x128xf32>,
    return
  }
  func.func @transform_0(%arg0: i32) -> (i32, i32, i32) {
    %c0_i32 = arith.constant 0 : i32
    %c0_i32_0 = arith.constant 0 : i32
    %c0_i32_1 = arith.constant 0 : i32
    return %arg0, %c0_i32, %c0_i32_0 : i32, i32, i32
  }
  func.func @transform_1(%arg0: i32) -> (i32, i32, i32) {
    %c0_i32 = arith.constant 0 : i32
    %c0_i32_0 = arith.constant 0 : i32
    %c0_i32_1 = arith.constant 0 : i32
    return %arg0, %c0_i32, %c0_i32_0 : i32, i32, i32
  }
  func.func @transform_2(%arg0: i32) -> (i32, i32) {
    %c0_i32 = arith.constant 0 : i32
    %c0_i32_0 = arith.constant 0 : i32
    %c0_i32_1 = arith.constant 0 : i32
    return %c0_i32, %c0_i32_0 : i32, i32
  }
  func.func @transform_3(%arg0: i32) -> (i32, i32) {
    %c0_i32 = arith.constant 0 : i32
    %c0_i32_0 = arith.constant 0 : i32
    %c0_i32_1 = arith.constant 0 : i32
    return %c0_i32, %c0_i32_0 : i32, i32
  }
  func.func @transform_4(%arg0: i32) -> (i32, i32) {
    %c0_i32 = arith.constant 0 : i32
    %c0_i32_0 = arith.constant 0 : i32
    %c0_i32_1 = arith.constant 0 : i32
    return %c0_i32, %c0_i32_0 : i32, i32
  }
  func.func @transform_5(%arg0: i32) -> (i32, i32) {
    %c0_i32 = arith.constant 0 : i32
    %c0_i32_0 = arith.constant 0 : i32
    %c0_i32_1 = arith.constant 0 : i32
    return %c0_i32, %c0_i32_0 : i32, i32
  }
  func.func @transform_6(%arg0: i32) -> (i32, i32) {
    %c0_i32 = arith.constant 0 : i32
    %c0_i32_0 = arith.constant 0 : i32
    %c0_i32_1 = arith.constant 0 : i32
    return %c0_i32, %c0_i32_0 : i32, i32
  }
  func.func @transform_7(%arg0: i32) -> (i32, i32) {
    %c0_i32 = arith.constant 0 : i32
    %c0_i32_0 = arith.constant 0 : i32
    %c0_i32_1 = arith.constant 0 : i32
    return %c0_i32, %c0_i32_0 : i32, i32
  }
  func.func @transform_8(%arg0: i32) -> (i32, i32) {
    %c0_i32 = arith.constant 0 : i32
    %c0_i32_0 = arith.constant 0 : i32
    %c0_i32_1 = arith.constant 0 : i32
    return %c0_i32, %c0_i32_0 : i32, i32
  }
  func.func @transform_9(%arg0: i32) -> (i32, i32, i32) {
    %c0_i32 = arith.constant 0 : i32
    %c0_i32_0 = arith.constant 0 : i32
    %c0_i32_1 = arith.constant 0 : i32
    return %arg0, %c0_i32, %c0_i32_0 : i32, i32, i32
  }
}

</mosaic_0001>

<llo_original>
// kernel: tpu_custom_call.1
$region0: #{tpu_custom_call.1}
  #allocation0 [shape = 'u32[]', space=smem, size = 0x4, offset = 0x4, fixed_abs, tag = 'smem constant byte address 0x4 - core index']
  #allocation1 [shape = 'u32[144,128]{1,0:T(1,128)}', space=vmem, size = 0x12000, scoped, tag = 'internal scratch']
  %s0 = inlined_call_operand.hbm [shape: bf16[2,256,256], index: 0, kind: input, shape index: {}]
  %s1 = inlined_call_operand.vmem [shape: bf16[2,256,128], index: 1, kind: input, shape index: {}]
  %s2 = inlined_call_operand.vmem [shape: f32[8,256], index: 2, kind: input, shape index: {}]
  %s3 = inlined_call_operand.vmem [shape: f32[256,8], index: 3, kind: input, shape index: {}]
  %s4 = inlined_call_operand.hbm [shape: bf16[128,128], index: 4, kind: input, shape index: {}]
  %s5 = inlined_call_operand.hbm [shape: bf16[128,128], index: 5, kind: input, shape index: {}]
  %s6 = inlined_call_operand.hbm [shape: bf16[128,128], index: 6, kind: input, shape index: {}]
  %s7 = inlined_call_operand.hbm [shape: bf16[384,128], index: 7, kind: input, shape index: {}]
  %s8 = inlined_call_operand.vmem [shape: f32[10,128], index: 8, kind: input, shape index: {}]
  %s9 = inlined_call_operand.hbm [shape: f32[2,256,128], index: 9, kind: output, shape index: {}]
  %s10 = sld [smem:[#allocation0]]
  $region89: #{tpu_custom_call.1} parent=0
    _
  %s12 = ssub.s32 1, %s10
  %s13 = scalar_select 0, %s12, %s10
  $region1: #{tpu_custom_call.1} parent=0
    #allocation2 [shape = 'u8[262144]{0}', space=vmem, size = 0x40000, scoped, tag = 'input window, operand 0']
    #allocation3 [shape = 's32[2]{0}', space=sflag, size = 0x8, scoped, tag = 'scoped memory for tpu_custom_call.1']
    #allocation4 [shape = 's32[2]{0}', space=sflag, size = 0x8, scoped, tag = 'scoped memory for tpu_custom_call.1']
    #allocation5 [shape = 'u8[32768]{0}', space=vmem, size = 0x8000, scoped, tag = 'input window, operand 4, single buffered']
    #allocation6 [shape = 's32[1]{0}', space=sflag, size = 0x4, scoped, tag = 'scoped memory for tpu_custom_call.1']
    #allocation7 [shape = 'u8[32768]{0}', space=vmem, size = 0x8000, scoped, tag = 'input window, operand 5, single buffered']
    #allocation8 [shape = 'u8[32768]{0}', space=vmem, size = 0x8000, scoped, tag = 'input window, operand 6, single buffered']
    #allocation9 [shape = 's32[1]{0}', space=sflag, size = 0x4, scoped, tag = 'scoped memory for tpu_custom_call.1']
    #allocation10 [shape = 'u8[98304]{0}', space=vmem, size = 0x18000, scoped, tag = 'input window, operand 7, single buffered']
    #allocation11 [shape = 'u8[262144]{0}', space=vmem, size = 0x40000, scoped, tag = 'output window, operand 0']
    %14 = vsyncpa [#allocation3], 0
    %s15 = scalar_lea.sflag [#allocation3], 1
    %16 = vsyncpa %s15, 0
    %17 = vsyncpa [#allocation6], 0
    %18 = vsyncpa [#allocation9], 0
    %19 = vsyncpa [#allocation4], 0
    %s20 = scalar_lea.sflag [#allocation4], 1
    %21 = vsyncpa %s20, 0
    loop: start=0, step=1, limit=4
    $region2: #{tpu_custom_call.1} parent=1 // loop_pre_header
      _
    $region3: #{tpu_custom_call.1} parent=1 // loop_header
      %s23 = sphi 0, %s27
      %p24 = scmp.ge.s32.totalorder %s23, 4
      %s33 = sphi 0, %s35
      %s36 = sphi 0, %s33
      %s37 = sphi 0, %s36
      %s53 = sphi 0, %s37
      %s59 = sphi 0, %s61
      %s62 = sphi 0, %s59
      %s63 = sphi 0, %s62
      %s79 = sphi 0, %s63
      %s83 = sphi 0, %s83
      %s85 = sphi 0, %s83
      %s86 = sphi 0, %s85
      %s100 = sphi 0, %s86
      %s104 = sphi 0, %s104
      %s106 = sphi 0, %s104
      %s107 = sphi 0, %s106
      %s121 = sphi 0, %s107
      %s125 = sphi 0, %s125
      %s127 = sphi 0, %s125
      %s128 = sphi 0, %s127
      %s142 = sphi 0, %s128
      %s146 = sphi 0, %s146
      %s148 = sphi 0, %s146
      %s149 = sphi 0, %s148
      %s163 = sphi 0, %s149
      %s167 = sphi 0, %s167
      %s169 = sphi 0, %s167
      %s170 = sphi 0, %s169
      %s184 = sphi 0, %s170
      %s188 = sphi 0, %s188
      %s190 = sphi 0, %s188
      %s191 = sphi 0, %s190
      %s205 = sphi 0, %s191
      %s209 = sphi 0, %s209
      %s211 = sphi 0, %s209
      %s212 = sphi 0, %s211
      %s226 = sphi 0, %s212
      %s232 = sphi 0, %s234
      %s235 = sphi 0, %s232
      %s236 = sphi 0, %s235
      %s252 = sphi 0, %s236
    $region4: #{tpu_custom_call.1} parent=1 // loop_header_branch
      %26 = sbr.rel (%p24) target = $region8
    $region5: #{tpu_custom_call.1} parent=1 // loop_body
      %s28 = ssub.s32 %s23, 1
      %s29 = ssub.s32 %s23, 2
      %s30 = sadd.s32 %s23, 1
      %s31 = ssub.s32 %s23, %s30
      %p32 = scmp.eq.s32.totalorder %s31, 0
      %s34 = sadd.s32 %s33, 1
      %s35 = scalar_select %p32, %s33, %s34
      %p38 = pneg %p32
      %p39 = scmp.eq.s32.totalorder %s23, 1
      %p40 = por %p38, %p39
      %p41 = scmp.ne.s32.totalorder %s33, %s36
      %p42 = scmp.eq.s32.totalorder %s23, 0
      %p43 = por %p41, %p42
      %p44 = scmp.ne.s32.totalorder %s33, %s36
      %p45 = scmp.eq.s32.totalorder %s28, 1
      %p46 = por %p44, %p45
      %p47 = scmp.ne.s32.totalorder %s36, %s37
      %p48 = scmp.eq.s32.totalorder %s28, 0
      %p49 = por %p47, %p48
      %p50 = scmp.ne.s32.totalorder %s36, %s37
      %p51 = scmp.eq.s32.totalorder %s29, 1
      %p52 = por %p50, %p51
      %p54 = scmp.ne.s32.totalorder %s37, %s53
      %p55 = scmp.eq.s32.totalorder %s29, 0
      %p56 = por %p54, %p55
      %s57 = ssub.s32 %s23, %s30
      %p58 = scmp.eq.s32.totalorder %s57, 0
      %s60 = sadd.s32 %s59, 1
      %s61 = scalar_select %p58, %s59, %s60
      %p64 = pneg %p58
      %p65 = scmp.eq.s32.totalorder %s23, 1
      %p66 = por %p64, %p65
      %p67 = scmp.ne.s32.totalorder %s59, %s62
      %p68 = scmp.eq.s32.totalorder %s23, 0
      %p69 = por %p67, %p68
      %p70 = scmp.ne.s32.totalorder %s59, %s62
      %p71 = scmp.eq.s32.totalorder %s28, 1
      %p72 = por %p70, %p71
      %p73 = scmp.ne.s32.totalorder %s62, %s63
      %p74 = scmp.eq.s32.totalorder %s28, 0
      %p75 = por %p73, %p74
      %p76 = scmp.ne.s32.totalorder %s62, %s63
      %p77 = scmp.eq.s32.totalorder %s29, 1
      %p78 = por %p76, %p77
      %p80 = scmp.ne.s32.totalorder %s63, %s79
      %p81 = scmp.eq.s32.totalorder %s29, 0
      %p82 = por %p80, %p81
      %s84 = sadd.s32 %s83, 1
      %p87 = scmp.eq.s32.totalorder %s23, 1
      %p88 = scmp.ne.s32.totalorder %s83, %s85
      %p89 = scmp.eq.s32.totalorder %s23, 0
      %p90 = por %p88, %p89
      %p91 = scmp.ne.s32.totalorder %s83, %s85
      %p92 = scmp.eq.s32.totalorder %s28, 1
      %p93 = por %p91, %p92
      %p94 = scmp.ne.s32.totalorder %s85, %s86
      %p95 = scmp.eq.s32.totalorder %s28, 0
      %p96 = por %p94, %p95
      %p97 = scmp.ne.s32.totalorder %s85, %s86
      %p98 = scmp.eq.s32.totalorder %s29, 1
      %p99 = por %p97, %p98
      %p101 = scmp.ne.s32.totalorder %s86, %s100
      %p102 = scmp.eq.s32.totalorder %s29, 0
      %p103 = por %p101, %p102
      %s105 = sadd.s32 %s104, 1
      %p108 = scmp.eq.s32.totalorder %s23, 1
      %p109 = scmp.ne.s32.totalorder %s104, %s106
      %p110 = scmp.eq.s32.totalorder %s23, 0
      %p111 = por %p109, %p110
      %p112 = scmp.ne.s32.totalorder %s104, %s106
      %p113 = scmp.eq.s32.totalorder %s28, 1
      %p114 = por %p112, %p113
      %p115 = scmp.ne.s32.totalorder %s106, %s107
      %p116 = scmp.eq.s32.totalorder %s28, 0
      %p117 = por %p115, %p116
      %p118 = scmp.ne.s32.totalorder %s106, %s107
      %p119 = scmp.eq.s32.totalorder %s29, 1
      %p120 = por %p118, %p119
      %p122 = scmp.ne.s32.totalorder %s107, %s121
      %p123 = scmp.eq.s32.totalorder %s29, 0
      %p124 = por %p122, %p123
      %s126 = sadd.s32 %s125, 1
      %p129 = scmp.eq.s32.totalorder %s23, 1
      %p130 = scmp.ne.s32.totalorder %s125, %s127
      %p131 = scmp.eq.s32.totalorder %s23, 0
      %p132 = por %p130, %p131
      %p133 = scmp.ne.s32.totalorder %s125, %s127
      %p134 = scmp.eq.s32.totalorder %s28, 1
      %p135 = por %p133, %p134
      %p136 = scmp.ne.s32.totalorder %s127, %s128
      %p137 = scmp.eq.s32.totalorder %s28, 0
      %p138 = por %p136, %p137
      %p139 = scmp.ne.s32.totalorder %s127, %s128
      %p140 = scmp.eq.s32.totalorder %s29, 1
      %p141 = por %p139, %p140
      %p143 = scmp.ne.s32.totalorder %s128, %s142
      %p144 = scmp.eq.s32.totalorder %s29, 0
      %p145 = por %p143, %p144
      %s147 = sadd.s32 %s146, 1
      %p150 = scmp.eq.s32.totalorder %s23, 1
      %p151 = scmp.ne.s32.totalorder %s146, %s148
      %p152 = scmp.eq.s32.totalorder %s23, 0
      %p153 = por %p151, %p152
      %p154 = scmp.ne.s32.totalorder %s146, %s148
      %p155 = scmp.eq.s32.totalorder %s28, 1
      %p156 = por %p154, %p155
      %p157 = scmp.ne.s32.totalorder %s148, %s149
      %p158 = scmp.eq.s32.totalorder %s28, 0
      %p159 = por %p157, %p158
      %p160 = scmp.ne.s32.totalorder %s148, %s149
      %p161 = scmp.eq.s32.totalorder %s29, 1
      %p162 = por %p160, %p161
      %p164 = scmp.ne.s32.totalorder %s149, %s163
      %p165 = scmp.eq.s32.totalorder %s29, 0
      %p166 = por %p164, %p165
      %s168 = sadd.s32 %s167, 1
      %p171 = scmp.eq.s32.totalorder %s23, 1
      %p172 = scmp.ne.s32.totalorder %s167, %s169
      %p173 = scmp.eq.s32.totalorder %s23, 0
      %p174 = por %p172, %p173
      %p175 = scmp.ne.s32.totalorder %s167, %s169
      %p176 = scmp.eq.s32.totalorder %s28, 1
      %p177 = por %p175, %p176
      %p178 = scmp.ne.s32.totalorder %s169, %s170
      %p179 = scmp.eq.s32.totalorder %s28, 0
      %p180 = por %p178, %p179
      %p181 = scmp.ne.s32.totalorder %s169, %s170
      %p182 = scmp.eq.s32.totalorder %s29, 1
      %p183 = por %p181, %p182
      %p185 = scmp.ne.s32.totalorder %s170, %s184
      %p186 = scmp.eq.s32.totalorder %s29, 0
      %p187 = por %p185, %p186
      %s189 = sadd.s32 %s188, 1
      %p192 = scmp.eq.s32.totalorder %s23, 1
      %p193 = scmp.ne.s32.totalorder %s188, %s190
      %p194 = scmp.eq.s32.totalorder %s23, 0
      %p195 = por %p193, %p194
      %p196 = scmp.ne.s32.totalorder %s188, %s190
      %p197 = scmp.eq.s32.totalorder %s28, 1
      %p198 = por %p196, %p197
      %p199 = scmp.ne.s32.totalorder %s190, %s191
      %p200 = scmp.eq.s32.totalorder %s28, 0
      %p201 = por %p199, %p200
      %p202 = scmp.ne.s32.totalorder %s190, %s191
      %p203 = scmp.eq.s32.totalorder %s29, 1
      %p204 = por %p202, %p203
      %p206 = scmp.ne.s32.totalorder %s191, %s205
      %p207 = scmp.eq.s32.totalorder %s29, 0
      %p208 = por %p206, %p207
      %s210 = sadd.s32 %s209, 1
      %p213 = scmp.eq.s32.totalorder %s23, 1
      %p214 = scmp.ne.s32.totalorder %s209, %s211
      %p215 = scmp.eq.s32.totalorder %s23, 0
      %p216 = por %p214, %p215
      %p217 = scmp.ne.s32.totalorder %s209, %s211
      %p218 = scmp.eq.s32.totalorder %s28, 1
      %p219 = por %p217, %p218
      %p220 = scmp.ne.s32.totalorder %s211, %s212
      %p221 = scmp.eq.s32.totalorder %s28, 0
      %p222 = por %p220, %p221
      %p223 = scmp.ne.s32.totalorder %s211, %s212
      %p224 = scmp.eq.s32.totalorder %s29, 1
      %p225 = por %p223, %p224
      %p227 = scmp.ne.s32.totalorder %s212, %s226
      %p228 = scmp.eq.s32.totalorder %s29, 0
      %p229 = por %p227, %p228
      %s230 = ssub.s32 %s23, %s30
      %p231 = scmp.eq.s32.totalorder %s230, 0
      %s233 = sadd.s32 %s232, 1
      %s234 = scalar_select %p231, %s232, %s233
      %p237 = pneg %p231
      %p238 = scmp.eq.s32.totalorder %s23, 1
      %p239 = por %p237, %p238
      %p240 = scmp.ne.s32.totalorder %s232, %s235
      %p241 = scmp.eq.s32.totalorder %s23, 0
      %p242 = por %p240, %p241
      %p243 = scmp.ne.s32.totalorder %s232, %s235
      %p244 = scmp.eq.s32.totalorder %s28, 1
      %p245 = por %p243, %p244
      %p246 = scmp.ne.s32.totalorder %s235, %s236
      %p247 = scmp.eq.s32.totalorder %s28, 0
      %p248 = por %p246, %p247
      %p249 = scmp.ne.s32.totalorder %s235, %s236
      %p250 = scmp.eq.s32.totalorder %s29, 1
      %p251 = por %p249, %p250
      %p253 = scmp.ne.s32.totalorder %s236, %s252
      %p254 = scmp.eq.s32.totalorder %s29, 0
      %p255 = por %p253, %p254
      %p256 = scmp.le.s32.totalorder 1, %s23
      %p257 = scmp.lt.s32.totalorder %s23, 3
      %p258 = pnand %p256, %p257
      %p259 = pneg %p258
      // Predicated region
      $region9: #{tpu_custom_call.1} parent=5 // pred_check
        _
      $region10: #{tpu_custom_call.1} parent=5 // pred_check_branch
        %261 = sbr.rel (%p258) target = $region12
      $region11: #{tpu_custom_call.1} parent=5 // pred_region
        %s262 = ssub.s32 %s23, 1
        // Predicated region
        $region13: #{tpu_custom_call.1} parent=11 // pred_check
          %p263 = pneg %p96
        $region14: #{tpu_custom_call.1} parent=11 // pred_check_branch
          %265 = sbr.rel (%p263) target = $region16
        $region15: #{tpu_custom_call.1} parent=11 // pred_region
          _
        $region16: #{tpu_custom_call.1} parent=11 // pred_fallthru
          _
        // Predicated region
        $region17: #{tpu_custom_call.1} parent=11 // pred_check
          %p266 = pneg %p117
        $region18: #{tpu_custom_call.1} parent=11 // pred_check_branch
          %268 = sbr.rel (%p266) target = $region20
        $region19: #{tpu_custom_call.1} parent=11 // pred_region
          _
        $region20: #{tpu_custom_call.1} parent=11 // pred_fallthru
          _
        // Predicated region
        $region21: #{tpu_custom_call.1} parent=11 // pred_check
          %p269 = pneg %p138
        $region22: #{tpu_custom_call.1} parent=11 // pred_check_branch
          %271 = sbr.rel (%p269) target = $region24
        $region23: #{tpu_custom_call.1} parent=11 // pred_region
          %s273 = ssub.s32 1024, 1024
          %274 = vsyncadd [#allocation6], %s273
          %s275 = sshll.u32 [#allocation5], 4
          %s276 = int_to_ptr.vmem [resolvable:$true] %s275
          %281 = dma.hbm_to_vmem [thread:$0]  %s4, 1024, %s276, [#allocation6], 64, 64, 4
        $region24: #{tpu_custom_call.1} parent=11 // pred_fallthru
          _
        // Predicated region
        $region25: #{tpu_custom_call.1} parent=11 // pred_check
          %p282 = pneg %p159
        $region26: #{tpu_custom_call.1} parent=11 // pred_check_branch
          %284 = sbr.rel (%p282) target = $region28
        $region27: #{tpu_custom_call.1} parent=11 // pred_region
          %s286 = ssub.s32 1024, 1024
          %287 = vsyncadd [#allocation6], %s286
          %s288 = sshll.u32 [#allocation7], 4
          %s289 = int_to_ptr.vmem [resolvable:$true] %s288
          %294 = dma.hbm_to_vmem [thread:$0]  %s5, 1024, %s289, [#allocation6], 64, 64, 4
        $region28: #{tpu_custom_call.1} parent=11 // pred_fallthru
          _
        // Predicated region
        $region29: #{tpu_custom_call.1} parent=11 // pred_check
          %p295 = pneg %p180
        $region30: #{tpu_custom_call.1} parent=11 // pred_check_branch
          %297 = sbr.rel (%p295) target = $region32
        $region31: #{tpu_custom_call.1} parent=11 // pred_region
          %s299 = ssub.s32 1024, 1024
          %300 = vsyncadd [#allocation9], %s299
          %s301 = sshll.u32 [#allocation8], 4
          %s302 = int_to_ptr.vmem [resolvable:$true] %s301
          %307 = dma.hbm_to_vmem [thread:$0]  %s6, 1024, %s302, [#allocation9], 64, 64, 4
        $region32: #{tpu_custom_call.1} parent=11 // pred_fallthru
          _
        // Predicated region
        $region33: #{tpu_custom_call.1} parent=11 // pred_check
          %p308 = pneg %p201
        $region34: #{tpu_custom_call.1} parent=11 // pred_check_branch
          %310 = sbr.rel (%p308) target = $region36
        $region35: #{tpu_custom_call.1} parent=11 // pred_region
          %s312 = ssub.s32 3072, 3072
          %313 = vsyncadd [#allocation9], %s312
          %s314 = sshll.u32 [#allocation10], 4
          %s315 = int_to_ptr.vmem [resolvable:$true] %s314
          %320 = dma.hbm_to_vmem [thread:$0]  %s7, 3072, %s315, [#allocation9], 64, 64, 4
        $region36: #{tpu_custom_call.1} parent=11 // pred_fallthru
          _
        // Predicated region
        $region37: #{tpu_custom_call.1} parent=11 // pred_check
          %p321 = pneg %p222
        $region38: #{tpu_custom_call.1} parent=11 // pred_check_branch
          %323 = sbr.rel (%p321) target = $region40
        $region39: #{tpu_custom_call.1} parent=11 // pred_region
          _
        $region40: #{tpu_custom_call.1} parent=11 // pred_fallthru
          _
      $region12: #{tpu_custom_call.1} parent=5 // pred_fallthru
        _
      %p324 = scmp.lt.s32.totalorder %s23, 2
      // Predicated region
      $region41: #{tpu_custom_call.1} parent=5 // pred_check
        %p325 = pneg %p324
      $region42: #{tpu_custom_call.1} parent=5 // pred_check_branch
        %327 = sbr.rel (%p325) target = $region44
      $region43: #{tpu_custom_call.1} parent=5 // pred_region
        // Predicated region
        $region45: #{tpu_custom_call.1} parent=43 // pred_check
          %p328 = pneg %p43
        $region46: #{tpu_custom_call.1} parent=43 // pred_check_branch
          %330 = sbr.rel (%p328) target = $region48
        $region47: #{tpu_custom_call.1} parent=43 // pred_region
          %s331 = sand.u32 %s33, 1
          %s332 = scalar_lea.sflag [#allocation3], %s331
          %s333 = sand.u32 %s33, 1
          %s334 = smul.addr %s333, 256
          %s335 = scalar_lea.vmem [#allocation2], %s334
          %s337 = ssub.s32 4096, 4096
          %338 = vsyncadd %s332, %s337
          %s339 = smul.addr %s23, 64
          %s340 = smul.addr %s339, 64
          %s341 = scalar_lea.hbm %s0, %s340
          %s342 = sshll.u32 %s335, 4
          %s343 = int_to_ptr.vmem [resolvable:$true] %s342
          %348 = dma.hbm_to_vmem [thread:$0]  %s341, 4096, %s343, %s332, 128, 128, 8
        $region48: #{tpu_custom_call.1} parent=43 // pred_fallthru
          _
        // Predicated region
        $region49: #{tpu_custom_call.1} parent=43 // pred_check
          %p349 = pneg %p69
        $region50: #{tpu_custom_call.1} parent=43 // pred_check_branch
          %351 = sbr.rel (%p349) target = $region52
        $region51: #{tpu_custom_call.1} parent=43 // pred_region
          %p352 = scmp.lt.s32.totalorder %s23, 1
          %s353 = scalar_select %p352, %s23, 1
          %s354 = smul.addr %s353, 32
          %s355 = smul.addr %s354, 4
          %s356 = scalar_lea.vmem %s1, %s355
        $region52: #{tpu_custom_call.1} parent=43 // pred_fallthru
          _
      $region44: #{tpu_custom_call.1} parent=5 // pred_fallthru
        _
      %p357 = scmp.le.s32.totalorder 1, %s23
      %p358 = scmp.lt.s32.totalorder %s23, 3
      %p359 = pnand %p357, %p358
      %p360 = pneg %p359
      // Predicated region
      $region53: #{tpu_custom_call.1} parent=5 // pred_check
        _
      $region54: #{tpu_custom_call.1} parent=5 // pred_check_branch
        %362 = sbr.rel (%p359) target = $region56
      $region55: #{tpu_custom_call.1} parent=5 // pred_region
        %s363 = ssub.s32 %s23, 1
        %s364 = sand.u32 %s36, 1
        %s365 = scalar_lea.sflag [#allocation3], %s364
        %s366 = sand.u32 %s36, 1
        %s367 = smul.addr %s366, 256
        %s368 = scalar_lea.vmem [#allocation2], %s367
        // Predicated region
        $region57: #{tpu_custom_call.1} parent=55 // pred_check
          %p369 = pneg %p49
        $region58: #{tpu_custom_call.1} parent=55 // pred_check_branch
          %371 = sbr.rel (%p369) target = $region60
        $region59: #{tpu_custom_call.1} parent=55 // pred_region
          %372 = dma.done %s365, 4096
        $region60: #{tpu_custom_call.1} parent=55 // pred_fallthru
          _
        // Predicated region
        $region61: #{tpu_custom_call.1} parent=55 // pred_check
          %p373 = pneg %p138
        $region62: #{tpu_custom_call.1} parent=55 // pred_check_branch
          %375 = sbr.rel (%p373) target = $region64
        $region63: #{tpu_custom_call.1} parent=55 // pred_region
          %376 = dma.done [#allocation6], 1024
        $region64: #{tpu_custom_call.1} parent=55 // pred_fallthru
          _
        // Predicated region
        $region65: #{tpu_custom_call.1} parent=55 // pred_check
          %p377 = pneg %p159
        $region66: #{tpu_custom_call.1} parent=55 // pred_check_branch
          %379 = sbr.rel (%p377) target = $region68
        $region67: #{tpu_custom_call.1} parent=55 // pred_region
          %380 = dma.done [#allocation6], 1024
        $region68: #{tpu_custom_call.1} parent=55 // pred_fallthru
          _
        // Predicated region
        $region69: #{tpu_custom_call.1} parent=55 // pred_check
          %p381 = pneg %p180
        $region70: #{tpu_custom_call.1} parent=55 // pred_check_branch
          %383 = sbr.rel (%p381) target = $region72
        $region71: #{tpu_custom_call.1} parent=55 // pred_region
          %384 = dma.done [#allocation9], 1024
        $region72: #{tpu_custom_call.1} parent=55 // pred_fallthru
          _
        // Predicated region
        $region73: #{tpu_custom_call.1} parent=55 // pred_check
          %p385 = pneg %p201
        $region74: #{tpu_custom_call.1} parent=55 // pred_check_branch
          %387 = sbr.rel (%p385) target = $region76
        $region75: #{tpu_custom_call.1} parent=55 // pred_region
          %388 = dma.done [#allocation9], 3072
        $region76: #{tpu_custom_call.1} parent=55 // pred_fallthru
          _
        %s389 = sand.u32 %s36, 1
        %s390 = scalar_lea.sflag [#allocation3], %s389
        %s391 = sand.u32 %s36, 1
        %s392 = smul.addr %s391, 256
        %s393 = scalar_lea.vmem [#allocation2], %s392
        %p394 = pneg %p49
        %p395 = pneg %p46
        %p396 = scmp.lt.s32.totalorder %s28, 1
        %s397 = scalar_select %p396, %s28, 1
        %s398 = smul.addr %s397, 32
        %s399 = smul.addr %s398, 4
        %s400 = scalar_lea.vmem %s1, %s399
        %p401 = pneg %p75
        %p402 = pneg %p72
        %p403 = pneg %p96
        %p404 = pneg %p93
        %p405 = pneg %p117
        %p406 = pneg %p114
        %p407 = pneg %p138
        %p408 = pneg %p135
        %p409 = pneg %p159
        %p410 = pneg %p156
        %p411 = pneg %p180
        %p412 = pneg %p177
        %p413 = pneg %p201
        %p414 = pneg %p198
        %p415 = pneg %p222
        %p416 = pneg %p219
        %p417 = pneg %p248
        %p418 = pneg %p245
        %s419 = sand.u32 %s235, 1
        %s420 = scalar_lea.sflag [#allocation4], %s419
        %s421 = sand.u32 %s235, 1
        %s422 = smul.addr %s421, 256
        %s423 = scalar_lea.vmem [#allocation11], %s422
        %p424 = scmp.lt.s32.totalorder %s28, 1
        %s425 = scalar_select %p424, %s28, 1
        %s426 = smul.addr %s425, 32
        %s427 = smul.addr %s426, 4
        %s428 = scalar_lea.vmem %s1, %s427
        %v430 = vld [vmem:[%s368] sm:$0xff]
        %v431 = vld [vmem:[%s368 + $0x8] sm:$0xff]
        %v432 = vld [vmem:[%s368 + $0x10] sm:$0xff]
        %v433 = vld [vmem:[%s368 + $0x18] sm:$0xff]
        %v434 = vld [vmem:[%s368 + $0x20] sm:$0xff]
        %v435 = vld [vmem:[%s368 + $0x28] sm:$0xff]
        %v436 = vld [vmem:[%s368 + $0x30] sm:$0xff]
        %v437 = vld [vmem:[%s368 + $0x38] sm:$0xff]
        %v438 = vld [vmem:[%s368 + $0x40] sm:$0xff]
        %v439 = vld [vmem:[%s368 + $0x48] sm:$0xff]
        %v440 = vld [vmem:[%s368 + $0x50] sm:$0xff]
        %v441 = vld [vmem:[%s368 + $0x58] sm:$0xff]
        %v442 = vld [vmem:[%s368 + $0x60] sm:$0xff]
        %v443 = vld [vmem:[%s368 + $0x68] sm:$0xff]
        %v444 = vld [vmem:[%s368 + $0x70] sm:$0xff]
        %v445 = vld [vmem:[%s368 + $0x78] sm:$0xff]
        %v446 = vld [vmem:[%s368 + $0x80] sm:$0xff]
        %v447 = vld [vmem:[%s368 + $0x88] sm:$0xff]
        %v448 = vld [vmem:[%s368 + $0x90] sm:$0xff]
        %v449 = vld [vmem:[%s368 + $0x98] sm:$0xff]
        %v450 = vld [vmem:[%s368 + $0xa0] sm:$0xff]
        %v451 = vld [vmem:[%s368 + $0xa8] sm:$0xff]
        %v452 = vld [vmem:[%s368 + $0xb0] sm:$0xff]
        %v453 = vld [vmem:[%s368 + $0xb8] sm:$0xff]
        %v454 = vld [vmem:[%s368 + $0xc0] sm:$0xff]
        %v455 = vld [vmem:[%s368 + $0xc8] sm:$0xff]
        %v456 = vld [vmem:[%s368 + $0xd0] sm:$0xff]
        %v457 = vld [vmem:[%s368 + $0xd8] sm:$0xff]
        %v458 = vld [vmem:[%s368 + $0xe0] sm:$0xff]
        %v459 = vld [vmem:[%s368 + $0xe8] sm:$0xff]
        %v460 = vld [vmem:[%s368 + $0xf0] sm:$0xff]
        %v461 = vld [vmem:[%s368 + $0xf8] sm:$0xff]
        %v462 = vunpack.c.l.bf16 %v430
        %v463 = vunpack.c.h.bf16 %v430
        %v464 = vunpack.c.l.bf16 %v431
        %v465 = vunpack.c.h.bf16 %v431
        %v466 = vunpack.c.l.bf16 %v432
        %v467 = vunpack.c.h.bf16 %v432
        %v468 = vunpack.c.l.bf16 %v433
        %v469 = vunpack.c.h.bf16 %v433
        %v470 = vunpack.c.l.bf16 %v434
        %v471 = vunpack.c.h.bf16 %v434
        %v472 = vunpack.c.l.bf16 %v435
        %v473 = vunpack.c.h.bf16 %v435
        %v474 = vunpack.c.l.bf16 %v436
        %v475 = vunpack.c.h.bf16 %v436
        %v476 = vunpack.c.l.bf16 %v437
        %v477 = vunpack.c.h.bf16 %v437
        %v478 = vunpack.c.l.bf16 %v438
        %v479 = vunpack.c.h.bf16 %v438
        %v480 = vunpack.c.l.bf16 %v439
        %v481 = vunpack.c.h.bf16 %v439
        %v482 = vunpack.c.l.bf16 %v440
        %v483 = vunpack.c.h.bf16 %v440
        %v484 = vunpack.c.l.bf16 %v441
        %v485 = vunpack.c.h.bf16 %v441
        %v486 = vunpack.c.l.bf16 %v442
        %v487 = vunpack.c.h.bf16 %v442
        %v488 = vunpack.c.l.bf16 %v443
        %v489 = vunpack.c.h.bf16 %v443
        %v490 = vunpack.c.l.bf16 %v444
        %v491 = vunpack.c.h.bf16 %v444
        %v492 = vunpack.c.l.bf16 %v445
        %v493 = vunpack.c.h.bf16 %v445
        %v494 = vunpack.c.l.bf16 %v446
        %v495 = vunpack.c.h.bf16 %v446
        %v496 = vunpack.c.l.bf16 %v447
        %v497 = vunpack.c.h.bf16 %v447
        %v498 = vunpack.c.l.bf16 %v448
        %v499 = vunpack.c.h.bf16 %v448
        %v500 = vunpack.c.l.bf16 %v449
        %v501 = vunpack.c.h.bf16 %v449
        %v502 = vunpack.c.l.bf16 %v450
        %v503 = vunpack.c.h.bf16 %v450
        %v504 = vunpack.c.l.bf16 %v451
        %v505 = vunpack.c.h.bf16 %v451
        %v506 = vunpack.c.l.bf16 %v452
        %v507 = vunpack.c.h.bf16 %v452
        %v508 = vunpack.c.l.bf16 %v453
        %v509 = vunpack.c.h.bf16 %v453
        %v510 = vunpack.c.l.bf16 %v454
        %v511 = vunpack.c.h.bf16 %v454
        %v512 = vunpack.c.l.bf16 %v455
        %v513 = vunpack.c.h.bf16 %v455
        %v514 = vunpack.c.l.bf16 %v456
        %v515 = vunpack.c.h.bf16 %v456
        %v516 = vunpack.c.l.bf16 %v457
        %v517 = vunpack.c.h.bf16 %v457
        %v518 = vunpack.c.l.bf16 %v458
        %v519 = vunpack.c.h.bf16 %v458
        %v520 = vunpack.c.l.bf16 %v459
        %v521 = vunpack.c.h.bf16 %v459
        %v522 = vunpack.c.l.bf16 %v460
        %v523 = vunpack.c.h.bf16 %v460
        %v524 = vunpack.c.l.bf16 %v461
        %v525 = vunpack.c.h.bf16 %v461
        %v526 = vadd.f32 %v462, %v463
        %527 = vadd.xlane.f32.xlu0 %v526
        %v528 = vpop.xlane.xlu0 %527
        %v529 = vadd.f32 %v464, %v465
        %530 = vadd.xlane.f32.xlu0 %v529
        %v531 = vpop.xlane.xlu0 %530
        %v532 = vadd.f32 %v466, %v467
        %533 = vadd.xlane.f32.xlu0 %v532
        %v534 = vpop.xlane.xlu0 %533
        %v535 = vadd.f32 %v468, %v469
        %536 = vadd.xlane.f32.xlu0 %v535
        %v537 = vpop.xlane.xlu0 %536
        %v538 = vadd.f32 %v470, %v471
        %539 = vadd.xlane.f32.xlu0 %v538
        %v540 = vpop.xlane.xlu0 %539
        %v541 = vadd.f32 %v472, %v473
        %542 = vadd.xlane.f32.xlu0 %v541
        %v543 = vpop.xlane.xlu0 %542
        %v544 = vadd.f32 %v474, %v475
        %545 = vadd.xlane.f32.xlu0 %v544
        %v546 = vpop.xlane.xlu0 %545
        %v547 = vadd.f32 %v476, %v477
        %548 = vadd.xlane.f32.xlu0 %v547
        %v549 = vpop.xlane.xlu0 %548
        %v550 = vadd.f32 %v478, %v479
        %551 = vadd.xlane.f32.xlu0 %v550
        %v552 = vpop.xlane.xlu0 %551
        %v553 = vadd.f32 %v480, %v481
        %554 = vadd.xlane.f32.xlu0 %v553
        %v555 = vpop.xlane.xlu0 %554
        %v556 = vadd.f32 %v482, %v483
        %557 = vadd.xlane.f32.xlu0 %v556
        %v558 = vpop.xlane.xlu0 %557
        %v559 = vadd.f32 %v484, %v485
        %560 = vadd.xlane.f32.xlu0 %v559
        %v561 = vpop.xlane.xlu0 %560
        %v562 = vadd.f32 %v486, %v487
        %563 = vadd.xlane.f32.xlu0 %v562
        %v564 = vpop.xlane.xlu0 %563
        %v565 = vadd.f32 %v488, %v489
        %566 = vadd.xlane.f32.xlu0 %v565
        %v567 = vpop.xlane.xlu0 %566
        %v568 = vadd.f32 %v490, %v491
        %569 = vadd.xlane.f32.xlu0 %v568
        %v570 = vpop.xlane.xlu0 %569
        %v571 = vadd.f32 %v492, %v493
        %572 = vadd.xlane.f32.xlu0 %v571
        %v573 = vpop.xlane.xlu0 %572
        %v574 = vadd.f32 %v494, %v495
        %575 = vadd.xlane.f32.xlu0 %v574
        %v576 = vpop.xlane.xlu0 %575
        %v577 = vadd.f32 %v496, %v497
        %578 = vadd.xlane.f32.xlu0 %v577
        %v579 = vpop.xlane.xlu0 %578
        %v580 = vadd.f32 %v498, %v499
        %581 = vadd.xlane.f32.xlu0 %v580
        %v582 = vpop.xlane.xlu0 %581
        %v583 = vadd.f32 %v500, %v501
        %584 = vadd.xlane.f32.xlu0 %v583
        %v585 = vpop.xlane.xlu0 %584
        %v586 = vadd.f32 %v502, %v503
        %587 = vadd.xlane.f32.xlu0 %v586
        %v588 = vpop.xlane.xlu0 %587
        %v589 = vadd.f32 %v504, %v505
        %590 = vadd.xlane.f32.xlu0 %v589
        %v591 = vpop.xlane.xlu0 %590
        %v592 = vadd.f32 %v506, %v507
        %593 = vadd.xlane.f32.xlu0 %v592
        %v594 = vpop.xlane.xlu0 %593
        %v595 = vadd.f32 %v508, %v509
        %596 = vadd.xlane.f32.xlu0 %v595
        %v597 = vpop.xlane.xlu0 %596
        %v598 = vadd.f32 %v510, %v511
        %599 = vadd.xlane.f32.xlu0 %v598
        %v600 = vpop.xlane.xlu0 %599
        %v601 = vadd.f32 %v512, %v513
        %602 = vadd.xlane.f32.xlu0 %v601
        %v603 = vpop.xlane.xlu0 %602
        %v604 = vadd.f32 %v514, %v515
        %605 = vadd.xlane.f32.xlu0 %v604
        %v606 = vpop.xlane.xlu0 %605
        %v607 = vadd.f32 %v516, %v517
        %608 = vadd.xlane.f32.xlu0 %v607
        %v609 = vpop.xlane.xlu0 %608
        %v610 = vadd.f32 %v518, %v519
        %611 = vadd.xlane.f32.xlu0 %v610
        %v612 = vpop.xlane.xlu0 %611
        %v613 = vadd.f32 %v520, %v521
        %614 = vadd.xlane.f32.xlu0 %v613
        %v615 = vpop.xlane.xlu0 %614
        %v616 = vadd.f32 %v522, %v523
        %617 = vadd.xlane.f32.xlu0 %v616
        %v618 = vpop.xlane.xlu0 %617
        %v619 = vadd.f32 %v524, %v525
        %620 = vadd.xlane.f32.xlu0 %v619
        %v621 = vpop.xlane.xlu0 %620
        %v622 = vlaneseq
        %v623 = vshrl.u32 %v622, 7
        %v624 = vadd.s32 %v623, 8
        %v625 = vadd.s32 %v623, 16
        %v626 = vadd.s32 %v623, 24
        %v627 = vadd.s32 %v623, 32
        %v628 = vadd.s32 %v623, 40
        %v629 = vadd.s32 %v623, 48
        %v630 = vadd.s32 %v623, 56
        %v631 = vadd.s32 %v623, 64
        %v632 = vadd.s32 %v623, 72
        %v633 = vadd.s32 %v623, 80
        %v634 = vadd.s32 %v623, 88
        %v635 = vadd.s32 %v623, 96
        %v636 = vadd.s32 %v623, 104
        %v637 = vadd.s32 %v623, 112
        %v638 = vadd.s32 %v623, 120
        %v639 = vadd.s32 %v623, 128
        %v640 = vadd.s32 %v623, 136
        %v641 = vadd.s32 %v623, 144
        %v642 = vadd.s32 %v623, 152
        %v643 = vadd.s32 %v623, 160
        %v644 = vadd.s32 %v623, 168
        %v645 = vadd.s32 %v623, 176
        %v646 = vadd.s32 %v623, 184
        %v647 = vadd.s32 %v623, 192
        %v648 = vadd.s32 %v623, 200
        %v649 = vadd.s32 %v623, 208
        %v650 = vadd.s32 %v623, 216
        %v651 = vadd.s32 %v623, 224
        %v652 = vadd.s32 %v623, 232
        %v653 = vadd.s32 %v623, 240
        %v654 = vadd.s32 %v623, 248
        %v655 = vlaneseq
        %v656 = vand.u32 %v655, 127
        %v657 = vadd.s32 %v656, 128
        %vm658 = vcmp.eq.s32.totalorder %v623, %v656
        %vm659 = vcmp.eq.s32.totalorder %v623, %v657
        %vm660 = vcmp.eq.s32.totalorder %v624, %v656
        %vm661 = vcmp.eq.s32.totalorder %v624, %v657
        %vm662 = vcmp.eq.s32.totalorder %v625, %v656
        %vm663 = vcmp.eq.s32.totalorder %v625, %v657
        %vm664 = vcmp.eq.s32.totalorder %v626, %v656
        %vm665 = vcmp.eq.s32.totalorder %v626, %v657
        %vm666 = vcmp.eq.s32.totalorder %v627, %v656
        %vm667 = vcmp.eq.s32.totalorder %v627, %v657
        %vm668 = vcmp.eq.s32.totalorder %v628, %v656
        %vm669 = vcmp.eq.s32.totalorder %v628, %v657
        %vm670 = vcmp.eq.s32.totalorder %v629, %v656
        %vm671 = vcmp.eq.s32.totalorder %v629, %v657
        %vm672 = vcmp.eq.s32.totalorder %v630, %v656
        %vm673 = vcmp.eq.s32.totalorder %v630, %v657
        %vm674 = vcmp.eq.s32.totalorder %v631, %v656
        %vm675 = vcmp.eq.s32.totalorder %v631, %v657
        %vm676 = vcmp.eq.s32.totalorder %v632, %v656
        %vm677 = vcmp.eq.s32.totalorder %v632, %v657
        %vm678 = vcmp.eq.s32.totalorder %v633, %v656
        %vm679 = vcmp.eq.s32.totalorder %v633, %v657
        %vm680 = vcmp.eq.s32.totalorder %v634, %v656
        %vm681 = vcmp.eq.s32.totalorder %v634, %v657
        %vm682 = vcmp.eq.s32.totalorder %v635, %v656
        %vm683 = vcmp.eq.s32.totalorder %v635, %v657
        %vm684 = vcmp.eq.s32.totalorder %v636, %v656
        %vm685 = vcmp.eq.s32.totalorder %v636, %v657
        %vm686 = vcmp.eq.s32.totalorder %v637, %v656
        %vm687 = vcmp.eq.s32.totalorder %v637, %v657
        %vm688 = vcmp.eq.s32.totalorder %v638, %v656
        %vm689 = vcmp.eq.s32.totalorder %v638, %v657
        %vm690 = vcmp.eq.s32.totalorder %v639, %v656
        %vm691 = vcmp.eq.s32.totalorder %v639, %v657
        %vm692 = vcmp.eq.s32.totalorder %v640, %v656
        %vm693 = vcmp.eq.s32.totalorder %v640, %v657
        %vm694 = vcmp.eq.s32.totalorder %v641, %v656
        %vm695 = vcmp.eq.s32.totalorder %v641, %v657
        %vm696 = vcmp.eq.s32.totalorder %v642, %v656
        %vm697 = vcmp.eq.s32.totalorder %v642, %v657
        %vm698 = vcmp.eq.s32.totalorder %v643, %v656
        %vm699 = vcmp.eq.s32.totalorder %v643, %v657
        %vm700 = vcmp.eq.s32.totalorder %v644, %v656
        %vm701 = vcmp.eq.s32.totalorder %v644, %v657
        %vm702 = vcmp.eq.s32.totalorder %v645, %v656
        %vm703 = vcmp.eq.s32.totalorder %v645, %v657
        %vm704 = vcmp.eq.s32.totalorder %v646, %v656
        %vm705 = vcmp.eq.s32.totalorder %v646, %v657
        %vm706 = vcmp.eq.s32.totalorder %v647, %v656
        %vm707 = vcmp.eq.s32.totalorder %v647, %v657
        %vm708 = vcmp.eq.s32.totalorder %v648, %v656
        %vm709 = vcmp.eq.s32.totalorder %v648, %v657
        %vm710 = vcmp.eq.s32.totalorder %v649, %v656
        %vm711 = vcmp.eq.s32.totalorder %v649, %v657
        %vm712 = vcmp.eq.s32.totalorder %v650, %v656
        %vm713 = vcmp.eq.s32.totalorder %v650, %v657
        %vm714 = vcmp.eq.s32.totalorder %v651, %v656
        %vm715 = vcmp.eq.s32.totalorder %v651, %v657
        %vm716 = vcmp.eq.s32.totalorder %v652, %v656
        %vm717 = vcmp.eq.s32.totalorder %v652, %v657
        %vm718 = vcmp.eq.s32.totalorder %v653, %v656
        %vm719 = vcmp.eq.s32.totalorder %v653, %v657
        %vm720 = vcmp.eq.s32.totalorder %v654, %v656
        %vm721 = vcmp.eq.s32.totalorder %v654, %v657
        %v722 = vsel %vm658, %v528, 0.0
        %v723 = vsel %vm659, %v528, 0.0
        %v724 = vsel %vm660, %v531, 0.0
        %v725 = vsel %vm661, %v531, 0.0
        %v726 = vsel %vm662, %v534, 0.0
        %v727 = vsel %vm663, %v534, 0.0
        %v728 = vsel %vm664, %v537, 0.0
        %v729 = vsel %vm665, %v537, 0.0
        %v730 = vsel %vm666, %v540, 0.0
        %v731 = vsel %vm667, %v540, 0.0
        %v732 = vsel %vm668, %v543, 0.0
        %v733 = vsel %vm669, %v543, 0.0
        %v734 = vsel %vm670, %v546, 0.0
        %v735 = vsel %vm671, %v546, 0.0
        %v736 = vsel %vm672, %v549, 0.0
        %v737 = vsel %vm673, %v549, 0.0
        %v738 = vsel %vm674, %v552, 0.0
        %v739 = vsel %vm675, %v552, 0.0
        %v740 = vsel %vm676, %v555, 0.0
        %v741 = vsel %vm677, %v555, 0.0
        %v742 = vsel %vm678, %v558, 0.0
        %v743 = vsel %vm679, %v558, 0.0
        %v744 = vsel %vm680, %v561, 0.0
        %v745 = vsel %vm681, %v561, 0.0
        %v746 = vsel %vm682, %v564, 0.0
        %v747 = vsel %vm683, %v564, 0.0
        %v748 = vsel %vm684, %v567, 0.0
        %v749 = vsel %vm685, %v567, 0.0
        %v750 = vsel %vm686, %v570, 0.0
        %v751 = vsel %vm687, %v570, 0.0
        %v752 = vsel %vm688, %v573, 0.0
        %v753 = vsel %vm689, %v573, 0.0
        %v754 = vsel %vm690, %v576, 0.0
        %v755 = vsel %vm691, %v576, 0.0
        %v756 = vsel %vm692, %v579, 0.0
        %v757 = vsel %vm693, %v579, 0.0
        %v758 = vsel %vm694, %v582, 0.0
        %v759 = vsel %vm695, %v582, 0.0
        %v760 = vsel %vm696, %v585, 0.0
        %v761 = vsel %vm697, %v585, 0.0
        %v762 = vsel %vm698, %v588, 0.0
        %v763 = vsel %vm699, %v588, 0.0
        %v764 = vsel %vm700, %v591, 0.0
        %v765 = vsel %vm701, %v591, 0.0
        %v766 = vsel %vm702, %v594, 0.0
        %v767 = vsel %vm703, %v594, 0.0
        %v768 = vsel %vm704, %v597, 0.0
        %v769 = vsel %vm705, %v597, 0.0
        %v770 = vsel %vm706, %v600, 0.0
        %v771 = vsel %vm707, %v600, 0.0
        %v772 = vsel %vm708, %v603, 0.0
        %v773 = vsel %vm709, %v603, 0.0
        %v774 = vsel %vm710, %v606, 0.0
        %v775 = vsel %vm711, %v606, 0.0
        %v776 = vsel %vm712, %v609, 0.0
        %v777 = vsel %vm713, %v609, 0.0
        %v778 = vsel %vm714, %v612, 0.0
        %v779 = vsel %vm715, %v612, 0.0
        %v780 = vsel %vm716, %v615, 0.0
        %v781 = vsel %vm717, %v615, 0.0
        %v782 = vsel %vm718, %v618, 0.0
        %v783 = vsel %vm719, %v618, 0.0
        %v784 = vsel %vm720, %v621, 0.0
        %v785 = vsel %vm721, %v621, 0.0
        %v786 = vadd.f32 %v722, %v724
        %v787 = vadd.f32 %v786, %v726
        %v788 = vadd.f32 %v787, %v728
        %v789 = vadd.f32 %v788, %v730
        %v790 = vadd.f32 %v789, %v732
        %v791 = vadd.f32 %v790, %v734
        %v792 = vadd.f32 %v791, %v736
        %v793 = vadd.f32 %v792, %v738
        %v794 = vadd.f32 %v793, %v740
        %v795 = vadd.f32 %v794, %v742
        %v796 = vadd.f32 %v795, %v744
        %v797 = vadd.f32 %v796, %v746
        %v798 = vadd.f32 %v797, %v748
        %v799 = vadd.f32 %v798, %v750
        %v800 = vadd.f32 %v799, %v752
        %v801 = vadd.f32 %v800, %v754
        %v802 = vadd.f32 %v801, %v756
        %v803 = vadd.f32 %v802, %v758
        %v804 = vadd.f32 %v803, %v760
        %v805 = vadd.f32 %v804, %v762
        %v806 = vadd.f32 %v805, %v764
        %v807 = vadd.f32 %v806, %v766
        %v808 = vadd.f32 %v807, %v768
        %v809 = vadd.f32 %v808, %v770
        %v810 = vadd.f32 %v809, %v772
        %v811 = vadd.f32 %v810, %v774
        %v812 = vadd.f32 %v811, %v776
        %v813 = vadd.f32 %v812, %v778
        %v814 = vadd.f32 %v813, %v780
        %v815 = vadd.f32 %v814, %v782
        %v816 = vadd.f32 %v815, %v784
        %v817 = vrot.slane %v816, 4
        %v818 = vadd.f32 %v816, %v817
        %v819 = vrot.slane %v818, 2
        %v820 = vadd.f32 %v818, %v819
        %v821 = vrot.slane %v820, 1
        %v822 = vadd.f32 %v820, %v821
        %v823 = vadd.f32 %v723, %v725
        %v824 = vadd.f32 %v823, %v727
        %v825 = vadd.f32 %v824, %v729
        %v826 = vadd.f32 %v825, %v731
        %v827 = vadd.f32 %v826, %v733
        %v828 = vadd.f32 %v827, %v735
        %v829 = vadd.f32 %v828, %v737
        %v830 = vadd.f32 %v829, %v739
        %v831 = vadd.f32 %v830, %v741
        %v832 = vadd.f32 %v831, %v743
        %v833 = vadd.f32 %v832, %v745
        %v834 = vadd.f32 %v833, %v747
        %v835 = vadd.f32 %v834, %v749
        %v836 = vadd.f32 %v835, %v751
        %v837 = vadd.f32 %v836, %v753
        %v838 = vadd.f32 %v837, %v755
        %v839 = vadd.f32 %v838, %v757
        %v840 = vadd.f32 %v839, %v759
        %v841 = vadd.f32 %v840, %v761
        %v842 = vadd.f32 %v841, %v763
        %v843 = vadd.f32 %v842, %v765
        %v844 = vadd.f32 %v843, %v767
        %v845 = vadd.f32 %v844, %v769
        %v846 = vadd.f32 %v845, %v771
        %v847 = vadd.f32 %v846, %v773
        %v848 = vadd.f32 %v847, %v775
        %v849 = vadd.f32 %v848, %v777
        %v850 = vadd.f32 %v849, %v779
        %v851 = vadd.f32 %v850, %v781
        %v852 = vadd.f32 %v851, %v783
        %v853 = vadd.f32 %v852, %v785
        %v854 = vrot.slane %v853, 4
        %v855 = vadd.f32 %v853, %v854
        %v856 = vrot.slane %v855, 2
        %v857 = vadd.f32 %v855, %v856
        %v858 = vrot.slane %v857, 1
        %v859 = vadd.f32 %v857, %v858
        %v860 = vrsqrt.pop %v528
        %v861 = vrsqrt.pop %v531
        %v862 = vrsqrt.pop %v534
        %v863 = vrsqrt.pop %v537
        %v864 = vrsqrt.pop %v540
        %v865 = vrsqrt.pop %v543
        %v866 = vrsqrt.pop %v546
        %v867 = vrsqrt.pop %v549
        %v868 = vrsqrt.pop %v552
        %v869 = vrsqrt.pop %v555
        %v870 = vrsqrt.pop %v558
        %v871 = vrsqrt.pop %v561
        %v872 = vrsqrt.pop %v564
        %v873 = vrsqrt.pop %v567
        %v874 = vrsqrt.pop %v570
        %v875 = vrsqrt.pop %v573
        %v876 = vrsqrt.pop %v576
        %v877 = vrsqrt.pop %v579
        %v878 = vrsqrt.pop %v582
        %v879 = vrsqrt.pop %v585
        %v880 = vrsqrt.pop %v588
        %v881 = vrsqrt.pop %v591
        %v882 = vrsqrt.pop %v594
        %v883 = vrsqrt.pop %v597
        %v884 = vrsqrt.pop %v600
        %v885 = vrsqrt.pop %v603
        %v886 = vrsqrt.pop %v606
        %v887 = vrsqrt.pop %v609
        %v888 = vrsqrt.pop %v612
        %v889 = vrsqrt.pop %v615
        %v890 = vrsqrt.pop %v618
        %v891 = vrsqrt.pop %v621
        %v892 = vmul.f32 %v462, %v860
        %v893 = vmul.f32 %v463, %v860
        %v894 = vmul.f32 %v464, %v861
        %v895 = vmul.f32 %v465, %v861
        %v896 = vmul.f32 %v466, %v862
        %v897 = vmul.f32 %v467, %v862
        %v898 = vmul.f32 %v468, %v863
        %v899 = vmul.f32 %v469, %v863
        %v900 = vmul.f32 %v470, %v864
        %v901 = vmul.f32 %v471, %v864
        %v902 = vmul.f32 %v472, %v865
        %v903 = vmul.f32 %v473, %v865
        %v904 = vmul.f32 %v474, %v866
        %v905 = vmul.f32 %v475, %v866
        %v906 = vmul.f32 %v476, %v867
        %v907 = vmul.f32 %v477, %v867
        %v908 = vmul.f32 %v478, %v868
        %v909 = vmul.f32 %v479, %v868
        %v910 = vmul.f32 %v480, %v869
        %v911 = vmul.f32 %v481, %v869
        %v912 = vmul.f32 %v482, %v870
        %v913 = vmul.f32 %v483, %v870
        %v914 = vmul.f32 %v484, %v871
        %v915 = vmul.f32 %v485, %v871
        %v916 = vmul.f32 %v486, %v872
        %v917 = vmul.f32 %v487, %v872
        %v918 = vmul.f32 %v488, %v873
        %v919 = vmul.f32 %v489, %v873
        %v920 = vmul.f32 %v490, %v874
        %v921 = vmul.f32 %v491, %v874
        %v922 = vmul.f32 %v492, %v875
        %v923 = vmul.f32 %v493, %v875
        %v924 = vmul.f32 %v494, %v876
        %v925 = vmul.f32 %v495, %v876
        %v926 = vmul.f32 %v496, %v877
        %v927 = vmul.f32 %v497, %v877
        %v928 = vmul.f32 %v498, %v878
        %v929 = vmul.f32 %v499, %v878
        %v930 = vmul.f32 %v500, %v879
        %v931 = vmul.f32 %v501, %v879
        %v932 = vmul.f32 %v502, %v880
        %v933 = vmul.f32 %v503, %v880
        %v934 = vmul.f32 %v504, %v881
        %v935 = vmul.f32 %v505, %v881
        %v936 = vmul.f32 %v506, %v882
        %v937 = vmul.f32 %v507, %v882
        %v938 = vmul.f32 %v508, %v883
        %v939 = vmul.f32 %v509, %v883
        %v940 = vmul.f32 %v510, %v884
        %v941 = vmul.f32 %v511, %v884
        %v942 = vmul.f32 %v512, %v885
        %v943 = vmul.f32 %v513, %v885
        %v944 = vmul.f32 %v514, %v886
        %v945 = vmul.f32 %v515, %v886
        %v946 = vmul.f32 %v516, %v887
        %v947 = vmul.f32 %v517, %v887
        %v948 = vmul.f32 %v518, %v888
        %v949 = vmul.f32 %v519, %v888
        %v950 = vmul.f32 %v520, %v889
        %v951 = vmul.f32 %v521, %v889
        %v952 = vmul.f32 %v522, %v890
        %v953 = vmul.f32 %v523, %v890
        %v954 = vmul.f32 %v524, %v891
        %v955 = vmul.f32 %v525, %v891
        %v956 = vrsqrt.pop %v822
        %v957 = vrsqrt.pop %v859
        %v958 = vmul.f32 %v892, %v956
        %v959 = vmul.f32 %v893, %v957
        %v960 = vmul.f32 %v894, %v956
        %v961 = vmul.f32 %v895, %v957
        %v962 = vmul.f32 %v896, %v956
        %v963 = vmul.f32 %v897, %v957
        %v964 = vmul.f32 %v898, %v956
        %v965 = vmul.f32 %v899, %v957
        %v966 = vmul.f32 %v900, %v956
        %v967 = vmul.f32 %v901, %v957
        %v968 = vmul.f32 %v902, %v956
        %v969 = vmul.f32 %v903, %v957
        %v970 = vmul.f32 %v904, %v956
        %v971 = vmul.f32 %v905, %v957
        %v972 = vmul.f32 %v906, %v956
        %v973 = vmul.f32 %v907, %v957
        %v974 = vmul.f32 %v908, %v956
        %v975 = vmul.f32 %v909, %v957
        %v976 = vmul.f32 %v910, %v956
        %v977 = vmul.f32 %v911, %v957
        %v978 = vmul.f32 %v912, %v956
        %v979 = vmul.f32 %v913, %v957
        %v980 = vmul.f32 %v914, %v956
        %v981 = vmul.f32 %v915, %v957
        %v982 = vmul.f32 %v916, %v956
        %v983 = vmul.f32 %v917, %v957
        %v984 = vmul.f32 %v918, %v956
        %v985 = vmul.f32 %v919, %v957
        %v986 = vmul.f32 %v920, %v956
        %v987 = vmul.f32 %v921, %v957
        %v988 = vmul.f32 %v922, %v956
        %v989 = vmul.f32 %v923, %v957
        %v990 = vmul.f32 %v924, %v956
        %v991 = vmul.f32 %v925, %v957
        %v992 = vmul.f32 %v926, %v956
        %v993 = vmul.f32 %v927, %v957
        %v994 = vmul.f32 %v928, %v956
        %v995 = vmul.f32 %v929, %v957
        %v996 = vmul.f32 %v930, %v956
        %v997 = vmul.f32 %v931, %v957
        %v998 = vmul.f32 %v932, %v956
        %v999 = vmul.f32 %v933, %v957
        %v1000 = vmul.f32 %v934, %v956
        %v1001 = vmul.f32 %v935, %v957
        %v1002 = vmul.f32 %v936, %v956
        %v1003 = vmul.f32 %v937, %v957
        %v1004 = vmul.f32 %v938, %v956
        %v1005 = vmul.f32 %v939, %v957
        %v1006 = vmul.f32 %v940, %v956
        %v1007 = vmul.f32 %v941, %v957
        %v1008 = vmul.f32 %v942, %v956
        %v1009 = vmul.f32 %v943, %v957
        %v1010 = vmul.f32 %v944, %v956
        %v1011 = vmul.f32 %v945, %v957
        %v1012 = vmul.f32 %v946, %v956
        %v1013 = vmul.f32 %v947, %v957
        %v1014 = vmul.f32 %v948, %v956
        %v1015 = vmul.f32 %v949, %v957
        %v1016 = vmul.f32 %v950, %v956
        %v1017 = vmul.f32 %v951, %v957
        %v1018 = vmul.f32 %v952, %v956
        %v1019 = vmul.f32 %v953, %v957
        %v1020 = vmul.f32 %v954, %v956
        %v1021 = vmul.f32 %v955, %v957
        %v1022 = vpack.c.bf16 %v960, %v958
        %v1023 = vpack.c.bf16 %v961, %v959
        %v1024 = vpack.c.bf16 %v964, %v962
        %v1025 = vpack.c.bf16 %v965, %v963
        %v1026 = vpack.c.bf16 %v968, %v966
        %v1027 = vpack.c.bf16 %v969, %v967
        %v1028 = vpack.c.bf16 %v972, %v970
        %v1029 = vpack.c.bf16 %v973, %v971
        %v1030 = vpack.c.bf16 %v976, %v974
        %v1031 = vpack.c.bf16 %v977, %v975
        %v1032 = vpack.c.bf16 %v980, %v978
        %v1033 = vpack.c.bf16 %v981, %v979
        %v1034 = vpack.c.bf16 %v984, %v982
        %v1035 = vpack.c.bf16 %v985, %v983
        %v1036 = vpack.c.bf16 %v988, %v986
        %v1037 = vpack.c.bf16 %v989, %v987
        %v1038 = vpack.c.bf16 %v992, %v990
        %v1039 = vpack.c.bf16 %v993, %v991
        %v1040 = vpack.c.bf16 %v996, %v994
        %v1041 = vpack.c.bf16 %v997, %v995
        %v1042 = vpack.c.bf16 %v1000, %v998
        %v1043 = vpack.c.bf16 %v1001, %v999
        %v1044 = vpack.c.bf16 %v1004, %v1002
        %v1045 = vpack.c.bf16 %v1005, %v1003
        %v1046 = vpack.c.bf16 %v1008, %v1006
        %v1047 = vpack.c.bf16 %v1009, %v1007
        %v1048 = vpack.c.bf16 %v1012, %v1010
        %v1049 = vpack.c.bf16 %v1013, %v1011
        %v1050 = vpack.c.bf16 %v1016, %v1014
        %v1051 = vpack.c.bf16 %v1017, %v1015
        %v1052 = vpack.c.bf16 %v1020, %v1018
        %v1053 = vpack.c.bf16 %v1021, %v1019
        %v1054 = vld [vmem:[%s2] sm:$0xff]
        %v1055 = vld [vmem:[%s2 + $0x8] sm:$0xff]
        %v1056 = vld [vmem:[%s3] sm:$0xff]
        %v1057 = vld [vmem:[%s3 + $0x8] sm:$0xff]
        %v1058 = vld [vmem:[%s3 + $0x10] sm:$0xff]
        %v1059 = vld [vmem:[%s3 + $0x18] sm:$0xff]
        %v1060 = vld [vmem:[%s3 + $0x20] sm:$0xff]
        %v1061 = vld [vmem:[%s3 + $0x28] sm:$0xff]
        %v1062 = vld [vmem:[%s3 + $0x30] sm:$0xff]
        %v1063 = vld [vmem:[%s3 + $0x38] sm:$0xff]
        %v1064 = vld [vmem:[%s3 + $0x40] sm:$0xff]
        %v1065 = vld [vmem:[%s3 + $0x48] sm:$0xff]
        %v1066 = vld [vmem:[%s3 + $0x50] sm:$0xff]
        %v1067 = vld [vmem:[%s3 + $0x58] sm:$0xff]
        %v1068 = vld [vmem:[%s3 + $0x60] sm:$0xff]
        %v1069 = vld [vmem:[%s3 + $0x68] sm:$0xff]
        %v1070 = vld [vmem:[%s3 + $0x70] sm:$0xff]
        %v1071 = vld [vmem:[%s3 + $0x78] sm:$0xff]
        %v1072 = vld [vmem:[%s3 + $0x80] sm:$0xff]
        %v1073 = vld [vmem:[%s3 + $0x88] sm:$0xff]
        %v1074 = vld [vmem:[%s3 + $0x90] sm:$0xff]
        %v1075 = vld [vmem:[%s3 + $0x98] sm:$0xff]
        %v1076 = vld [vmem:[%s3 + $0xa0] sm:$0xff]
        %v1077 = vld [vmem:[%s3 + $0xa8] sm:$0xff]
        %v1078 = vld [vmem:[%s3 + $0xb0] sm:$0xff]
        %v1079 = vld [vmem:[%s3 + $0xb8] sm:$0xff]
        %v1080 = vld [vmem:[%s3 + $0xc0] sm:$0xff]
        %v1081 = vld [vmem:[%s3 + $0xc8] sm:$0xff]
        %v1082 = vld [vmem:[%s3 + $0xd0] sm:$0xff]
        %v1083 = vld [vmem:[%s3 + $0xd8] sm:$0xff]
        %v1084 = vld [vmem:[%s3 + $0xe0] sm:$0xff]
        %v1085 = vld [vmem:[%s3 + $0xe8] sm:$0xff]
        %v1086 = vld [vmem:[%s3 + $0xf0] sm:$0xff]
        %v1087 = vld [vmem:[%s3 + $0xf8] sm:$0xff]
        %v1088 = vld [vmem:[%s8] sm:$0xff]
        %v1089 = vld [vmem:[%s8 + $0x8] sm:$0x3]
        %v1090 = vld [vmem:[%s428] sm:$0xf]
        %v1091 = vld [vmem:[%s428 + $0x4] sm:$0xf]
        %v1092 = vld [vmem:[%s428 + $0x8] sm:$0xf]
        %v1093 = vld [vmem:[%s428 + $0xc] sm:$0xf]
        %v1094 = vld [vmem:[%s428 + $0x10] sm:$0xf]
        %v1095 = vld [vmem:[%s428 + $0x14] sm:$0xf]
        %v1096 = vld [vmem:[%s428 + $0x18] sm:$0xf]
        %v1097 = vld [vmem:[%s428 + $0x1c] sm:$0xf]
        %v1098 = vld [vmem:[%s428 + $0x20] sm:$0xf]
        %v1099 = vld [vmem:[%s428 + $0x24] sm:$0xf]
        %v1100 = vld [vmem:[%s428 + $0x28] sm:$0xf]
        %v1101 = vld [vmem:[%s428 + $0x2c] sm:$0xf]
        %v1102 = vld [vmem:[%s428 + $0x30] sm:$0xf]
        %v1103 = vld [vmem:[%s428 + $0x34] sm:$0xf]
        %v1104 = vld [vmem:[%s428 + $0x38] sm:$0xf]
        %v1105 = vld [vmem:[%s428 + $0x3c] sm:$0xf]
        %v1106 = vld [vmem:[%s428 + $0x40] sm:$0xf]
        %v1107 = vld [vmem:[%s428 + $0x44] sm:$0xf]
        %v1108 = vld [vmem:[%s428 + $0x48] sm:$0xf]
        %v1109 = vld [vmem:[%s428 + $0x4c] sm:$0xf]
        %v1110 = vld [vmem:[%s428 + $0x50] sm:$0xf]
        %v1111 = vld [vmem:[%s428 + $0x54] sm:$0xf]
        %v1112 = vld [vmem:[%s428 + $0x58] sm:$0xf]
        %v1113 = vld [vmem:[%s428 + $0x5c] sm:$0xf]
        %v1114 = vld [vmem:[%s428 + $0x60] sm:$0xf]
        %v1115 = vld [vmem:[%s428 + $0x64] sm:$0xf]
        %v1116 = vld [vmem:[%s428 + $0x68] sm:$0xf]
        %v1117 = vld [vmem:[%s428 + $0x6c] sm:$0xf]
        %v1118 = vld [vmem:[%s428 + $0x70] sm:$0xf]
        %v1119 = vld [vmem:[%s428 + $0x74] sm:$0xf]
        %v1120 = vld [vmem:[%s428 + $0x78] sm:$0xf]
        %v1121 = vld [vmem:[%s428 + $0x7c] sm:$0xf]
        %v1122 = vld [vmem:[#allocation5] sm:$0xf]
        %v1123 = vld [vmem:[#allocation5 + $0x4] sm:$0xf]
        %v1124 = vld [vmem:[#allocation5 + $0x8] sm:$0xf]
        %v1125 = vld [vmem:[#allocation5 + $0xc] sm:$0xf]
        %v1126 = vld [vmem:[#allocation5 + $0x10] sm:$0xf]
        %v1127 = vld [vmem:[#allocation5 + $0x14] sm:$0xf]
        %v1128 = vld [vmem:[#allocation5 + $0x18] sm:$0xf]
        %v1129 = vld [vmem:[#allocation5 + $0x1c] sm:$0xf]
        %v1130 = vld [vmem:[#allocation5 + $0x20] sm:$0xf]
        %v1131 = vld [vmem:[#allocation5 + $0x24] sm:$0xf]
        %v1132 = vld [vmem:[#allocation5 + $0x28] sm:$0xf]
        %v1133 = vld [vmem:[#allocation5 + $0x2c] sm:$0xf]
        %v1134 = vld [vmem:[#allocation5 + $0x30] sm:$0xf]
        %v1135 = vld [vmem:[#allocation5 + $0x34] sm:$0xf]
        %v1136 = vld [vmem:[#allocation5 + $0x38] sm:$0xf]
        %v1137 = vld [vmem:[#allocation5 + $0x3c] sm:$0xf]
        %v1170 = vunpack.c.l.b16 %v1090
        %v1171 = vunpack.c.l.b16 %v1091
        %v1172 = vunpack.c.l.b16 %v1092
        %v1173 = vunpack.c.l.b16 %v1093
        %v1174 = vunpack.c.l.b16 %v1094
        %v1175 = vunpack.c.l.b16 %v1095
        %v1176 = vunpack.c.l.b16 %v1096
        %v1177 = vunpack.c.l.b16 %v1097
        %v1178 = vunpack.c.l.b16 %v1098
        %v1179 = vunpack.c.l.b16 %v1099
        %v1180 = vunpack.c.l.b16 %v1100
        %v1181 = vunpack.c.l.b16 %v1101
        %v1182 = vunpack.c.l.b16 %v1102
        %v1183 = vunpack.c.l.b16 %v1103
        %v1184 = vunpack.c.l.b16 %v1104
        %v1185 = vunpack.c.l.b16 %v1105
        %v1186 = vunpack.c.l.b16 %v1106
        %v1187 = vunpack.c.l.b16 %v1107
        %v1188 = vunpack.c.l.b16 %v1108
        %v1189 = vunpack.c.l.b16 %v1109
        %v1190 = vunpack.c.l.b16 %v1110
        %v1191 = vunpack.c.l.b16 %v1111
        %v1192 = vunpack.c.l.b16 %v1112
        %v1193 = vunpack.c.l.b16 %v1113
        %v1194 = vunpack.c.l.b16 %v1114
        %v1195 = vunpack.c.l.b16 %v1115
        %v1196 = vunpack.c.l.b16 %v1116
        %v1197 = vunpack.c.l.b16 %v1117
        %v1198 = vunpack.c.l.b16 %v1118
        %v1199 = vunpack.c.l.b16 %v1119
        %v1200 = vunpack.c.l.b16 %v1120
        %v1201 = vunpack.c.l.b16 %v1121
        %v1202 = vpack.c.b16 %v1171, %v1170
        %v1203 = vpack.c.b16 %v1173, %v1172
        %v1204 = vpack.c.b16 %v1175, %v1174
        %v1205 = vpack.c.b16 %v1177, %v1176
        %v1206 = vpack.c.b16 %v1179, %v1178
        %v1207 = vpack.c.b16 %v1181, %v1180
        %v1208 = vpack.c.b16 %v1183, %v1182
        %v1209 = vpack.c.b16 %v1185, %v1184
        %v1210 = vpack.c.b16 %v1187, %v1186
        %v1211 = vpack.c.b16 %v1189, %v1188
        %v1212 = vpack.c.b16 %v1191, %v1190
        %v1213 = vpack.c.b16 %v1193, %v1192
        %v1214 = vpack.c.b16 %v1195, %v1194
        %v1215 = vpack.c.b16 %v1197, %v1196
        %v1216 = vpack.c.b16 %v1199, %v1198
        %v1217 = vpack.c.b16 %v1201, %v1200
        %v1250 = vunpack.c.l.b16 %v1122
        %v1251 = vunpack.c.l.b16 %v1123
        %v1252 = vunpack.c.l.b16 %v1124
        %v1253 = vunpack.c.l.b16 %v1125
        %v1254 = vunpack.c.l.b16 %v1126
        %v1255 = vunpack.c.l.b16 %v1127
        %v1256 = vunpack.c.l.b16 %v1128
        %v1257 = vunpack.c.l.b16 %v1129
        %v1258 = vunpack.c.l.b16 %v1130
        %v1259 = vunpack.c.l.b16 %v1131
        %v1260 = vunpack.c.l.b16 %v1132
        %v1261 = vunpack.c.l.b16 %v1133
        %v1262 = vunpack.c.l.b16 %v1134
        %v1263 = vunpack.c.l.b16 %v1135
        %v1264 = vunpack.c.l.b16 %v1136
        %v1265 = vunpack.c.l.b16 %v1137
        %v1266 = vpack.c.b16 %v1251, %v1250
        %v1267 = vpack.c.b16 %v1253, %v1252
        %v1268 = vpack.c.b16 %v1255, %v1254
        %v1269 = vpack.c.b16 %v1257, %v1256
        %v1270 = vpack.c.b16 %v1259, %v1258
        %v1271 = vpack.c.b16 %v1261, %v1260
        %v1272 = vpack.c.b16 %v1263, %v1262
        %v1273 = vpack.c.b16 %v1265, %v1264
        %1282 = vmatprep.subr.bf16.mxu0 0
        %1283 = vmatpush1.bf16.msra.mxu0 %v1266
        %1284 = vmatprep.subr.bf16.mxu0 0
        %1285 = vmatpush1.bf16.msra.mxu0 %v1267
        %1286 = vmatprep.subr.bf16.mxu0 0
        %1287 = vmatpush1.bf16.msra.mxu0 %v1268
        %1288 = vmatprep.subr.bf16.mxu0 0
        %1289 = vmatpush1.bf16.msra.mxu0 %v1269
        %1290 = vmatprep.subr.bf16.mxu0 0
        %1291 = vmatpush1.bf16.msra.mxu0 %v1270
        %1292 = vmatprep.subr.bf16.mxu0 0
        %1293 = vmatpush1.bf16.msra.mxu0 %v1271
        %1294 = vmatprep.subr.bf16.mxu0 0
        %1295 = vmatpush1.bf16.msra.mxu0 %v1272
        %1296 = vmatprep.subr.bf16.mxu0 0
        %1297 = vmatpush1.bf16.msra.mxu0 %v1273
        %1298 = vmatprep.subr.bf16.mxu0 0
        %1299 = vmatpush1.bf16.msra.mxu0 0
        %1300 = vmatprep.subr.bf16.mxu0 0
        %1301 = vmatpush1.bf16.msra.mxu0 0
        %1302 = vmatprep.subr.bf16.mxu0 0
        %1303 = vmatpush1.bf16.msra.mxu0 0
        %1304 = vmatprep.subr.bf16.mxu0 0
        %1305 = vmatpush1.bf16.msra.mxu0 0
        %1306 = vmatprep.subr.bf16.mxu0 0
        %1307 = vmatpush1.bf16.msra.mxu0 0
        %1308 = vmatprep.subr.bf16.mxu0 0
        %1309 = vmatpush1.bf16.msra.mxu0 0
        %1310 = vmatprep.subr.bf16.mxu0 0
        %1311 = vmatpush1.bf16.msra.mxu0 0
        %1312 = vmatprep.subr.bf16.mxu0 0
        %1313 = vmatpush1.bf16.msra.mxu0 0
        %1314 = vmatprep.mubr.bf16.mxu0 0
        %1315 = vmatmul.mubr.bf16.gmra.mrb[0].mxu0 %v1202
        %v1316 = vpop.f32.mrb[0].mxu0
        %v1317 = vadd.f32 0.0, %v1316
        %v1318 = vpop.f32.mrb[0].mxu0
        %v1319 = vpop.f32.mrb[0].mxu0
        %v1320 = vadd.f32 0.0, %v1319
        %v1321 = vpop.f32.mrb[0].mxu0
        %1322 = vmatprep.mubr.bf16.mxu0 0
        %1323 = vmatmul.mubr.bf16.gmra.mrb[0].mxu0 %v1203
        %v1324 = vpop.f32.mrb[0].mxu0
        %v1325 = vadd.f32 0.0, %v1324
        %v1326 = vpop.f32.mrb[0].mxu0
        %v1327 = vpop.f32.mrb[0].mxu0
        %v1328 = vadd.f32 0.0, %v1327
        %v1329 = vpop.f32.mrb[0].mxu0
        %1330 = vmatprep.mubr.bf16.mxu0 0
        %1331 = vmatmul.mubr.bf16.gmra.mrb[0].mxu0 %v1204
        %v1332 = vpop.f32.mrb[0].mxu0
        %v1333 = vadd.f32 0.0, %v1332
        %v1334 = vpop.f32.mrb[0].mxu0
        %v1335 = vpop.f32.mrb[0].mxu0
        %v1336 = vadd.f32 0.0, %v1335
        %v1337 = vpop.f32.mrb[0].mxu0
        %1338 = vmatprep.mubr.bf16.mxu0 0
        %1339 = vmatmul.mubr.bf16.gmra.mrb[0].mxu0 %v1205
        %v1340 = vpop.f32.mrb[0].mxu0
        %v1341 = vadd.f32 0.0, %v1340
        %v1342 = vpop.f32.mrb[0].mxu0
        %v1343 = vpop.f32.mrb[0].mxu0
        %v1344 = vadd.f32 0.0, %v1343
        %v1345 = vpop.f32.mrb[0].mxu0
        %1346 = vmatprep.mubr.bf16.mxu0 0
        %1347 = vmatmul.mubr.bf16.gmra.mrb[0].mxu0 %v1206
        %v1348 = vpop.f32.mrb[0].mxu0
        %v1349 = vadd.f32 0.0, %v1348
        %v1350 = vpop.f32.mrb[0].mxu0
        %v1351 = vpop.f32.mrb[0].mxu0
        %v1352 = vadd.f32 0.0, %v1351
        %v1353 = vpop.f32.mrb[0].mxu0
        %1354 = vmatprep.mubr.bf16.mxu0 0
        %1355 = vmatmul.mubr.bf16.gmra.mrb[0].mxu0 %v1207
        %v1356 = vpop.f32.mrb[0].mxu0
        %v1357 = vadd.f32 0.0, %v1356
        %v1358 = vpop.f32.mrb[0].mxu0
        %v1359 = vpop.f32.mrb[0].mxu0
        %v1360 = vadd.f32 0.0, %v1359
        %v1361 = vpop.f32.mrb[0].mxu0
        %1362 = vmatprep.mubr.bf16.mxu0 0
        %1363 = vmatmul.mubr.bf16.gmra.mrb[0].mxu0 %v1208
        %v1364 = vpop.f32.mrb[0].mxu0
        %v1365 = vadd.f32 0.0, %v1364
        %v1366 = vpop.f32.mrb[0].mxu0
        %v1367 = vpop.f32.mrb[0].mxu0
        %v1368 = vadd.f32 0.0, %v1367
        %v1369 = vpop.f32.mrb[0].mxu0
        %1370 = vmatprep.mubr.bf16.mxu0 0
        %1371 = vmatmul.mubr.bf16.gmra.mrb[0].mxu0 %v1209
        %v1372 = vpop.f32.mrb[0].mxu0
        %v1373 = vadd.f32 0.0, %v1372
        %v1374 = vpop.f32.mrb[0].mxu0
        %v1375 = vpop.f32.mrb[0].mxu0
        %v1376 = vadd.f32 0.0, %v1375
        %v1377 = vpop.f32.mrb[0].mxu0
        %1378 = vmatprep.mubr.bf16.mxu0 0
        %1379 = vmatmul.mubr.bf16.gmra.mrb[0].mxu0 %v1210
        %v1380 = vpop.f32.mrb[0].mxu0
        %v1381 = vadd.f32 0.0, %v1380
        %v1382 = vpop.f32.mrb[0].mxu0
        %v1383 = vpop.f32.mrb[0].mxu0
        %v1384 = vadd.f32 0.0, %v1383
        %v1385 = vpop.f32.mrb[0].mxu0
        %1386 = vmatprep.mubr.bf16.mxu0 0
        %1387 = vmatmul.mubr.bf16.gmra.mrb[0].mxu0 %v1211
        %v1388 = vpop.f32.mrb[0].mxu0
        %v1389 = vadd.f32 0.0, %v1388
        %v1390 = vpop.f32.mrb[0].mxu0
        %v1391 = vpop.f32.mrb[0].mxu0
        %v1392 = vadd.f32 0.0, %v1391
        %v1393 = vpop.f32.mrb[0].mxu0
        %1394 = vmatprep.mubr.bf16.mxu0 0
        %1395 = vmatmul.mubr.bf16.gmra.mrb[0].mxu0 %v1212
        %v1396 = vpop.f32.mrb[0].mxu0
        %v1397 = vadd.f32 0.0, %v1396
        %v1398 = vpop.f32.mrb[0].mxu0
        %v1399 = vpop.f32.mrb[0].mxu0
        %v1400 = vadd.f32 0.0, %v1399
        %v1401 = vpop.f32.mrb[0].mxu0
        %1402 = vmatprep.mubr.bf16.mxu0 0
        %1403 = vmatmul.mubr.bf16.gmra.mrb[0].mxu0 %v1213
        %v1404 = vpop.f32.mrb[0].mxu0
        %v1405 = vadd.f32 0.0, %v1404
        %v1406 = vpop.f32.mrb[0].mxu0
        %v1407 = vpop.f32.mrb[0].mxu0
        %v1408 = vadd.f32 0.0, %v1407
        %v1409 = vpop.f32.mrb[0].mxu0
        %1410 = vmatprep.mubr.bf16.mxu0 0
        %1411 = vmatmul.mubr.bf16.gmra.mrb[0].mxu0 %v1214
        %v1412 = vpop.f32.mrb[0].mxu0
        %v1413 = vadd.f32 0.0, %v1412
        %v1414 = vpop.f32.mrb[0].mxu0
        %v1415 = vpop.f32.mrb[0].mxu0
        %v1416 = vadd.f32 0.0, %v1415
        %v1417 = vpop.f32.mrb[0].mxu0
        %1418 = vmatprep.mubr.bf16.mxu0 0
        %1419 = vmatmul.mubr.bf16.gmra.mrb[0].mxu0 %v1215
        %v1420 = vpop.f32.mrb[0].mxu0
        %v1421 = vadd.f32 0.0, %v1420
        %v1422 = vpop.f32.mrb[0].mxu0
        %v1423 = vpop.f32.mrb[0].mxu0
        %v1424 = vadd.f32 0.0, %v1423
        %v1425 = vpop.f32.mrb[0].mxu0
        %1426 = vmatprep.mubr.bf16.mxu0 0
        %1427 = vmatmul.mubr.bf16.gmra.mrb[0].mxu0 %v1216
        %v1428 = vpop.f32.mrb[0].mxu0
        %v1429 = vadd.f32 0.0, %v1428
        %v1430 = vpop.f32.mrb[0].mxu0
        %v1431 = vpop.f32.mrb[0].mxu0
        %v1432 = vadd.f32 0.0, %v1431
        %v1433 = vpop.f32.mrb[0].mxu0
        %1434 = vmatprep.mubr.bf16.mxu0 0
        %1435 = vmatmul.mubr.bf16.gmra.mrb[0].mxu0 %v1217
        %v1436 = vpop.f32.mrb[0].mxu0
        %v1437 = vadd.f32 0.0, %v1436
        %v1438 = vpop.f32.mrb[0].mxu0
        %v1439 = vpop.f32.mrb[0].mxu0
        %v1440 = vadd.f32 0.0, %v1439
        %v1441 = vpop.f32.mrb[0].mxu0
        %1442 = vdwg.mxu0
        %v1443 = vpack.c.bf16 %v1320, %v1317
        %v1444 = vpack.c.bf16 %v1328, %v1325
        %v1445 = vpack.c.bf16 %v1336, %v1333
        %v1446 = vpack.c.bf16 %v1344, %v1341
        %v1447 = vpack.c.bf16 %v1352, %v1349
        %v1448 = vpack.c.bf16 %v1360, %v1357
        %v1449 = vpack.c.bf16 %v1368, %v1365
        %v1450 = vpack.c.bf16 %v1376, %v1373
        %v1451 = vpack.c.bf16 %v1384, %v1381
        %v1452 = vpack.c.bf16 %v1392, %v1389
        %v1453 = vpack.c.bf16 %v1400, %v1397
        %v1454 = vpack.c.bf16 %v1408, %v1405
        %v1455 = vpack.c.bf16 %v1416, %v1413
        %v1456 = vpack.c.bf16 %v1424, %v1421
        %v1457 = vpack.c.bf16 %v1432, %v1429
        %v1458 = vpack.c.bf16 %v1440, %v1437
        %v1459 = vlaneseq
        %v1460 = vshrl.u32 %v1459, 7
        %v1461 = vsub.s32 0, %v1460
        %v1462 = vrot.slane %v1088, %v1461
        %1463 = vmatprep.subr.bf16.mxu0 0
        %1464 = vmatpush1.bf16.msra.mxu0 %v1443
        %1465 = vmatprep.subr.bf16.mxu0 0
        %1466 = vmatpush1.bf16.msra.mxu0 %v1444
        %1467 = vmatprep.subr.bf16.mxu0 0
        %1468 = vmatpush1.bf16.msra.mxu0 %v1445
        %1469 = vmatprep.subr.bf16.mxu0 0
        %1470 = vmatpush1.bf16.msra.mxu0 %v1446
        %1471 = vmatprep.subr.bf16.mxu0 0
        %1472 = vmatpush1.bf16.msra.mxu0 %v1447
        %1473 = vmatprep.subr.bf16.mxu0 0
        %1474 = vmatpush1.bf16.msra.mxu0 %v1448
        %1475 = vmatprep.subr.bf16.mxu0 0
        %1476 = vmatpush1.bf16.msra.mxu0 %v1449
        %1477 = vmatprep.subr.bf16.mxu0 0
        %1478 = vmatpush1.bf16.msra.mxu0 %v1450
        %1479 = vmatprep.subr.bf16.mxu0 0
        %1480 = vmatpush1.bf16.msra.mxu0 %v1451
        %1481 = vmatprep.subr.bf16.mxu0 0
        %1482 = vmatpush1.bf16.msra.mxu0 %v1452
        %1483 = vmatprep.subr.bf16.mxu0 0
        %1484 = vmatpush1.bf16.msra.mxu0 %v1453
        %1485 = vmatprep.subr.bf16.mxu0 0
        %1486 = vmatpush1.bf16.msra.mxu0 %v1454
        %1487 = vmatprep.subr.bf16.mxu0 0
        %1488 = vmatpush1.bf16.msra.mxu0 %v1455
        %1489 = vmatprep.subr.bf16.mxu0 0
        %1490 = vmatpush1.bf16.msra.mxu0 %v1456
        %1491 = vmatprep.subr.bf16.mxu0 0
        %1492 = vmatpush1.bf16.msra.mxu0 %v1457
        %1493 = vmatprep.subr.bf16.mxu0 0
        %1494 = vmatpush1.bf16.msra.mxu0 %v1458
        %1495 = vmatprep.mubr.bf16.mxu0 %v1023
        %1496 = vmatmul.mubr.bf16.gmra.mrb[0].mxu0 %v1022
        %v1497 = vpop.f32.mrb[0].mxu0
        %v1498 = vadd.f32 %v1462, %v1497
        %v1499 = vpop.f32.mrb[0].mxu0
        %v1500 = vpop.f32.mrb[0].mxu0
        %v1501 = vadd.f32 %v1462, %v1500
        %v1502 = vpop.f32.mrb[0].mxu0
        %1503 = vmatprep.mubr.bf16.mxu0 %v1025
        %1504 = vmatmul.mubr.bf16.gmra.mrb[0].mxu0 %v1024
        %v1505 = vpop.f32.mrb[0].mxu0
        %v1506 = vadd.f32 %v1462, %v1505
        %v1507 = vpop.f32.mrb[0].mxu0
        %v1508 = vpop.f32.mrb[0].mxu0
        %v1509 = vadd.f32 %v1462, %v1508
        %v1510 = vpop.f32.mrb[0].mxu0
        %1511 = vmatprep.mubr.bf16.mxu0 %v1027
        %1512 = vmatmul.mubr.bf16.gmra.mrb[0].mxu0 %v1026
        %v1513 = vpop.f32.mrb[0].mxu0
        %v1514 = vadd.f32 %v1462, %v1513
        %v1515 = vpop.f32.mrb[0].mxu0
        %v1516 = vpop.f32.mrb[0].mxu0
        %v1517 = vadd.f32 %v1462, %v1516
        %v1518 = vpop.f32.mrb[0].mxu0
        %1519 = vmatprep.mubr.bf16.mxu0 %v1029
        %1520 = vmatmul.mubr.bf16.gmra.mrb[0].mxu0 %v1028
        %v1521 = vpop.f32.mrb[0].mxu0
        %v1522 = vadd.f32 %v1462, %v1521
        %v1523 = vpop.f32.mrb[0].mxu0
        %v1524 = vpop.f32.mrb[0].mxu0
        %v1525 = vadd.f32 %v1462, %v1524
        %v1526 = vpop.f32.mrb[0].mxu0
        %1527 = vmatprep.mubr.bf16.mxu0 %v1031
        %1528 = vmatmul.mubr.bf16.gmra.mrb[0].mxu0 %v1030
        %v1529 = vpop.f32.mrb[0].mxu0
        %v1530 = vadd.f32 %v1462, %v1529
        %v1531 = vpop.f32.mrb[0].mxu0
        %v1532 = vpop.f32.mrb[0].mxu0
        %v1533 = vadd.f32 %v1462, %v1532
        %v1534 = vpop.f32.mrb[0].mxu0
        %1535 = vmatprep.mubr.bf16.mxu0 %v1033
        %1536 = vmatmul.mubr.bf16.gmra.mrb[0].mxu0 %v1032
        %v1537 = vpop.f32.mrb[0].mxu0
        %v1538 = vadd.f32 %v1462, %v1537
        %v1539 = vpop.f32.mrb[0].mxu0
        %v1540 = vpop.f32.mrb[0].mxu0
        %v1541 = vadd.f32 %v1462, %v1540
        %v1542 = vpop.f32.mrb[0].mxu0
        %1543 = vmatprep.mubr.bf16.mxu0 %v1035
        %1544 = vmatmul.mubr.bf16.gmra.mrb[0].mxu0 %v1034
        %v1545 = vpop.f32.mrb[0].mxu0
        %v1546 = vadd.f32 %v1462, %v1545
        %v1547 = vpop.f32.mrb[0].mxu0
        %v1548 = vpop.f32.mrb[0].mxu0
        %v1549 = vadd.f32 %v1462, %v1548
        %v1550 = vpop.f32.mrb[0].mxu0
        %1551 = vmatprep.mubr.bf16.mxu0 %v1037
        %1552 = vmatmul.mubr.bf16.gmra.mrb[0].mxu0 %v1036
        %v1553 = vpop.f32.mrb[0].mxu0
        %v1554 = vadd.f32 %v1462, %v1553
        %v1555 = vpop.f32.mrb[0].mxu0
        %v1556 = vpop.f32.mrb[0].mxu0
        %v1557 = vadd.f32 %v1462, %v1556
        %v1558 = vpop.f32.mrb[0].mxu0
        %1559 = vmatprep.mubr.bf16.mxu0 %v1039
        %1560 = vmatmul.mubr.bf16.gmra.mrb[0].mxu0 %v1038
        %v1561 = vpop.f32.mrb[0].mxu0
        %v1562 = vadd.f32 %v1462, %v1561
        %v1563 = vpop.f32.mrb[0].mxu0
        %v1564 = vpop.f32.mrb[0].mxu0
        %v1565 = vadd.f32 %v1462, %v1564
        %v1566 = vpop.f32.mrb[0].mxu0
        %1567 = vmatprep.mubr.bf16.mxu0 %v1041
        %1568 = vmatmul.mubr.bf16.gmra.mrb[0].mxu0 %v1040
        %v1569 = vpop.f32.mrb[0].mxu0
        %v1570 = vadd.f32 %v1462, %v1569
        %v1571 = vpop.f32.mrb[0].mxu0
        %v1572 = vpop.f32.mrb[0].mxu0
        %v1573 = vadd.f32 %v1462, %v1572
        %v1574 = vpop.f32.mrb[0].mxu0
        %1575 = vmatprep.mubr.bf16.mxu0 %v1043
        %1576 = vmatmul.mubr.bf16.gmra.mrb[0].mxu0 %v1042
        %v1577 = vpop.f32.mrb[0].mxu0
        %v1578 = vadd.f32 %v1462, %v1577
        %v1579 = vpop.f32.mrb[0].mxu0
        %v1580 = vpop.f32.mrb[0].mxu0
        %v1581 = vadd.f32 %v1462, %v1580
        %v1582 = vpop.f32.mrb[0].mxu0
        %1583 = vmatprep.mubr.bf16.mxu0 %v1045
        %1584 = vmatmul.mubr.bf16.gmra.mrb[0].mxu0 %v1044
        %v1585 = vpop.f32.mrb[0].mxu0
        %v1586 = vadd.f32 %v1462, %v1585
        %v1587 = vpop.f32.mrb[0].mxu0
        %v1588 = vpop.f32.mrb[0].mxu0
        %v1589 = vadd.f32 %v1462, %v1588
        %v1590 = vpop.f32.mrb[0].mxu0
        %1591 = vmatprep.mubr.bf16.mxu0 %v1047
        %1592 = vmatmul.mubr.bf16.gmra.mrb[0].mxu0 %v1046
        %v1593 = vpop.f32.mrb[0].mxu0
        %v1594 = vadd.f32 %v1462, %v1593
        %v1595 = vpop.f32.mrb[0].mxu0
        %v1596 = vpop.f32.mrb[0].mxu0
        %v1597 = vadd.f32 %v1462, %v1596
        %v1598 = vpop.f32.mrb[0].mxu0
        %1599 = vmatprep.mubr.bf16.mxu0 %v1049
        %1600 = vmatmul.mubr.bf16.gmra.mrb[0].mxu0 %v1048
        %v1601 = vpop.f32.mrb[0].mxu0
        %v1602 = vadd.f32 %v1462, %v1601
        %v1603 = vpop.f32.mrb[0].mxu0
        %v1604 = vpop.f32.mrb[0].mxu0
        %v1605 = vadd.f32 %v1462, %v1604
        %v1606 = vpop.f32.mrb[0].mxu0
        %1607 = vmatprep.mubr.bf16.mxu0 %v1051
        %1608 = vmatmul.mubr.bf16.gmra.mrb[0].mxu0 %v1050
        %v1609 = vpop.f32.mrb[0].mxu0
        %v1610 = vadd.f32 %v1462, %v1609
        %v1611 = vpop.f32.mrb[0].mxu0
        %v1612 = vpop.f32.mrb[0].mxu0
        %v1613 = vadd.f32 %v1462, %v1612
        %v1614 = vpop.f32.mrb[0].mxu0
        %1615 = vmatprep.mubr.bf16.mxu0 %v1053
        %1616 = vmatmul.mubr.bf16.gmra.mrb[0].mxu0 %v1052
        %v1617 = vpop.f32.mrb[0].mxu0
        %v1618 = vadd.f32 %v1462, %v1617
        %v1619 = vpop.f32.mrb[0].mxu0
        %v1620 = vpop.f32.mrb[0].mxu0
        %v1621 = vadd.f32 %v1462, %v1620
        %v1622 = vpop.f32.mrb[0].mxu0
        %1623 = vdwg.mxu0
        %v1624 = vmax.f32 %v1498, 0.0
        %v1625 = vmax.f32 %v1501, 0.0
        %v1626 = vmax.f32 %v1506, 0.0
        %v1627 = vmax.f32 %v1509, 0.0
        %v1628 = vmax.f32 %v1514, 0.0
        %v1629 = vmax.f32 %v1517, 0.0
        %v1630 = vmax.f32 %v1522, 0.0
        %v1631 = vmax.f32 %v1525, 0.0
        %v1632 = vmax.f32 %v1530, 0.0
        %v1633 = vmax.f32 %v1533, 0.0
        %v1634 = vmax.f32 %v1538, 0.0
        %v1635 = vmax.f32 %v1541, 0.0
        %v1636 = vmax.f32 %v1546, 0.0
        %v1637 = vmax.f32 %v1549, 0.0
        %v1638 = vmax.f32 %v1554, 0.0
        %v1639 = vmax.f32 %v1557, 0.0
        %v1640 = vmax.f32 %v1562, 0.0
        %v1641 = vmax.f32 %v1565, 0.0
        %v1642 = vmax.f32 %v1570, 0.0
        %v1643 = vmax.f32 %v1573, 0.0
        %v1644 = vmax.f32 %v1578, 0.0
        %v1645 = vmax.f32 %v1581, 0.0
        %v1646 = vmax.f32 %v1586, 0.0
        %v1647 = vmax.f32 %v1589, 0.0
        %v1648 = vmax.f32 %v1594, 0.0
        %v1649 = vmax.f32 %v1597, 0.0
        %v1650 = vmax.f32 %v1602, 0.0
        %v1651 = vmax.f32 %v1605, 0.0
        %v1652 = vmax.f32 %v1610, 0.0
        %v1653 = vmax.f32 %v1613, 0.0
        %v1654 = vmax.f32 %v1618, 0.0
        %v1655 = vmax.f32 %v1621, 0.0
        %1656 = vmatprep.subr.mxu0 0.0
        %1657 = vmatpush1.msra.mxu0 %v1624
        %1658 = vmatprep.subr.mxu0 0.0
        %1659 = vmatpush1.msra.mxu0 %v1625
        %1660 = vmatprep.subr.mxu0 0.0
        %1661 = vmatpush1.msra.mxu0 %v1626
        %1662 = vmatprep.subr.mxu0 0.0
        %1663 = vmatpush1.msra.mxu0 %v1627
        %1664 = vmatprep.subr.mxu0 0.0
        %1665 = vmatpush1.msra.mxu0 %v1628
        %1666 = vmatprep.subr.mxu0 0.0
        %1667 = vmatpush1.msra.mxu0 %v1629
        %1668 = vmatprep.subr.mxu0 0.0
        %1669 = vmatpush1.msra.mxu0 %v1630
        %1670 = vmatprep.subr.mxu0 0.0
        %1671 = vmatpush1.msra.mxu0 %v1631
        %1672 = vmatprep.subr.mxu0 0.0
        %1673 = vmatpush1.msra.mxu0 %v1632
        %1674 = vmatprep.subr.mxu0 0.0
        %1675 = vmatpush1.msra.mxu0 %v1633
        %1676 = vmatprep.subr.mxu0 0.0
        %1677 = vmatpush1.msra.mxu0 %v1634
        %1678 = vmatprep.subr.mxu0 0.0
        %1679 = vmatpush1.msra.mxu0 %v1635
        %1680 = vmatprep.subr.mxu0 0.0
        %1681 = vmatpush1.msra.mxu0 %v1636
        %1682 = vmatprep.subr.mxu0 0.0
        %1683 = vmatpush1.msra.mxu0 %v1637
        %1684 = vmatprep.subr.mxu0 0.0
        %1685 = vmatpush1.msra.mxu0 %v1638
        %1686 = vmatprep.subr.mxu0 0.0
        %1687 = vmatpush1.msra.mxu0 %v1639
        %1688 = vmatprep.subr.mxu0 0.0
        %1689 = vmatpush1.msra.mxu0 %v1640
        %1690 = vmatprep.subr.mxu0 0.0
        %1691 = vmatpush1.msra.mxu0 %v1641
        %1692 = vmatprep.subr.mxu0 0.0
        %1693 = vmatpush1.msra.mxu0 %v1642
        %1694 = vmatprep.subr.mxu0 0.0
        %1695 = vmatpush1.msra.mxu0 %v1643
        %1696 = vmatprep.subr.mxu0 0.0
        %1697 = vmatpush1.msra.mxu0 %v1644
        %1698 = vmatprep.subr.mxu0 0.0
        %1699 = vmatpush1.msra.mxu0 %v1645
        %1700 = vmatprep.subr.mxu0 0.0
        %1701 = vmatpush1.msra.mxu0 %v1646
        %1702 = vmatprep.subr.mxu0 0.0
        %1703 = vmatpush1.msra.mxu0 %v1647
        %1704 = vmatprep.subr.mxu0 0.0
        %1705 = vmatpush1.msra.mxu0 %v1648
        %1706 = vmatprep.subr.mxu0 0.0
        %1707 = vmatpush1.msra.mxu0 %v1649
        %1708 = vmatprep.subr.mxu0 0.0
        %1709 = vmatpush1.msra.mxu0 %v1650
        %1710 = vmatprep.subr.mxu0 0.0
        %1711 = vmatpush1.msra.mxu0 %v1651
        %1712 = vmatprep.subr.mxu0 0.0
        %1713 = vmatpush1.msra.mxu0 %v1652
        %1714 = vmatprep.subr.mxu0 0.0
        %1715 = vmatpush1.msra.mxu0 %v1653
        %1716 = vmatprep.subr.mxu0 0.0
        %1717 = vmatpush1.msra.mxu0 %v1654
        %1718 = vmatprep.subr.mxu0 0.0
        %1719 = vmatpush1.msra.mxu0 %v1655
        %1720 = vmatprep.mubr.f32.mxu0 %v1055
        %1721 = vmatmul.mubr.f32.gmra.mrb[0].mxu0 %v1054
        %v1722 = vpop.f32.mrb[0].mxu0
        %v1723 = vadd.f32 0.0, %v1722
        %v1724 = vpop.f32.mrb[0].mxu0
        %1725 = vdwg.mxu0
        %v1726 = vmul.f32 %v1723, 0.03125
        %v1727 = vmul.f32 %v1624, %v1624
        %v1728 = vmul.f32 %v1625, %v1625
        %v1729 = vmul.f32 %v1626, %v1626
        %v1730 = vmul.f32 %v1627, %v1627
        %v1731 = vmul.f32 %v1628, %v1628
        %v1732 = vmul.f32 %v1629, %v1629
        %v1733 = vmul.f32 %v1630, %v1630
        %v1734 = vmul.f32 %v1631, %v1631
        %v1735 = vmul.f32 %v1632, %v1632
        %v1736 = vmul.f32 %v1633, %v1633
        %v1737 = vmul.f32 %v1634, %v1634
        %v1738 = vmul.f32 %v1635, %v1635
        %v1739 = vmul.f32 %v1636, %v1636
        %v1740 = vmul.f32 %v1637, %v1637
        %v1741 = vmul.f32 %v1638, %v1638
        %v1742 = vmul.f32 %v1639, %v1639
        %v1743 = vmul.f32 %v1640, %v1640
        %v1744 = vmul.f32 %v1641, %v1641
        %v1745 = vmul.f32 %v1642, %v1642
        %v1746 = vmul.f32 %v1643, %v1643
        %v1747 = vmul.f32 %v1644, %v1644
        %v1748 = vmul.f32 %v1645, %v1645
        %v1749 = vmul.f32 %v1646, %v1646
        %v1750 = vmul.f32 %v1647, %v1647
        %v1751 = vmul.f32 %v1648, %v1648
        %v1752 = vmul.f32 %v1649, %v1649
        %v1753 = vmul.f32 %v1650, %v1650
        %v1754 = vmul.f32 %v1651, %v1651
        %v1755 = vmul.f32 %v1652, %v1652
        %v1756 = vmul.f32 %v1653, %v1653
        %v1757 = vmul.f32 %v1654, %v1654
        %v1758 = vmul.f32 %v1655, %v1655
        %1759 = vmatprep.subr.mxu0 0.0
        %1760 = vmatpush1.msra.mxu0 %v1727
        %1761 = vmatprep.subr.mxu0 0.0
        %1762 = vmatpush1.msra.mxu0 %v1728
        %1763 = vmatprep.subr.mxu0 0.0
        %1764 = vmatpush1.msra.mxu0 %v1729
        %1765 = vmatprep.subr.mxu0 0.0
        %1766 = vmatpush1.msra.mxu0 %v1730
        %1767 = vmatprep.subr.mxu0 0.0
        %1768 = vmatpush1.msra.mxu0 %v1731
        %1769 = vmatprep.subr.mxu0 0.0
        %1770 = vmatpush1.msra.mxu0 %v1732
        %1771 = vmatprep.subr.mxu0 0.0
        %1772 = vmatpush1.msra.mxu0 %v1733
        %1773 = vmatprep.subr.mxu0 0.0
        %1774 = vmatpush1.msra.mxu0 %v1734
        %1775 = vmatprep.subr.mxu0 0.0
        %1776 = vmatpush1.msra.mxu0 %v1735
        %1777 = vmatprep.subr.mxu0 0.0
        %1778 = vmatpush1.msra.mxu0 %v1736
        %1779 = vmatprep.subr.mxu0 0.0
        %1780 = vmatpush1.msra.mxu0 %v1737
        %1781 = vmatprep.subr.mxu0 0.0
        %1782 = vmatpush1.msra.mxu0 %v1738
        %1783 = vmatprep.subr.mxu0 0.0
        %1784 = vmatpush1.msra.mxu0 %v1739
        %1785 = vmatprep.subr.mxu0 0.0
        %1786 = vmatpush1.msra.mxu0 %v1740
        %1787 = vmatprep.subr.mxu0 0.0
        %1788 = vmatpush1.msra.mxu0 %v1741
        %1789 = vmatprep.subr.mxu0 0.0
        %1790 = vmatpush1.msra.mxu0 %v1742
        %1791 = vmatprep.subr.mxu0 0.0
        %1792 = vmatpush1.msra.mxu0 %v1743
        %1793 = vmatprep.subr.mxu0 0.0
        %1794 = vmatpush1.msra.mxu0 %v1744
        %1795 = vmatprep.subr.mxu0 0.0
        %1796 = vmatpush1.msra.mxu0 %v1745
        %1797 = vmatprep.subr.mxu0 0.0
        %1798 = vmatpush1.msra.mxu0 %v1746
        %1799 = vmatprep.subr.mxu0 0.0
        %1800 = vmatpush1.msra.mxu0 %v1747
        %1801 = vmatprep.subr.mxu0 0.0
        %1802 = vmatpush1.msra.mxu0 %v1748
        %1803 = vmatprep.subr.mxu0 0.0
        %1804 = vmatpush1.msra.mxu0 %v1749
        %1805 = vmatprep.subr.mxu0 0.0
        %1806 = vmatpush1.msra.mxu0 %v1750
        %1807 = vmatprep.subr.mxu0 0.0
        %1808 = vmatpush1.msra.mxu0 %v1751
        %1809 = vmatprep.subr.mxu0 0.0
        %1810 = vmatpush1.msra.mxu0 %v1752
        %1811 = vmatprep.subr.mxu0 0.0
        %1812 = vmatpush1.msra.mxu0 %v1753
        %1813 = vmatprep.subr.mxu0 0.0
        %1814 = vmatpush1.msra.mxu0 %v1754
        %1815 = vmatprep.subr.mxu0 0.0
        %1816 = vmatpush1.msra.mxu0 %v1755
        %1817 = vmatprep.subr.mxu0 0.0
        %1818 = vmatpush1.msra.mxu0 %v1756
        %1819 = vmatprep.subr.mxu0 0.0
        %1820 = vmatpush1.msra.mxu0 %v1757
        %1821 = vmatprep.subr.mxu0 0.0
        %1822 = vmatpush1.msra.mxu0 %v1758
        %1823 = vmatprep.mubr.f32.mxu0 %v1055
        %1824 = vmatmul.mubr.f32.gmra.mrb[0].mxu0 %v1054
        %v1825 = vpop.f32.mrb[0].mxu0
        %v1826 = vadd.f32 0.0, %v1825
        %v1827 = vpop.f32.mrb[0].mxu0
        %1828 = vdwg.mxu0
        %v1829 = vmul.f32 %v1826, 0.03125
        %v1830 = vmul.f32 %v1726, %v1726
        %v1831 = vsub.f32 %v1829, %v1830
        %v1832 = vmax.f32 %v1831, 0.0
        %v1833 = vadd.f32 %v1832, 1e-05
        %v1834 = vrsqrt.pop %v1833
        %v1835 = vlaneseq
        %v1836 = vshrl.u32 %v1835, 7
        %v1837 = vsub.s32 1, %v1836
        %v1838 = vrot.slane %v1088, %v1837
        %v1839 = vmul.f32 %v1838, %v1834
        %v1840 = vmul.f32 %v1726, %v1839
        %v1841 = vlaneseq
        %v1842 = vshrl.u32 %v1841, 7
        %v1843 = vsub.s32 2, %v1842
        %v1844 = vrot.slane %v1088, %v1843
        %v1845 = vsub.f32 %v1844, %v1840
        %vm1846 = vcmask 64512
        %v1848 = vsel %vm1846, %v1056, 0
        %v1851 = vsel %vm1846, %v1057, 0
        %v1854 = vsel %vm1846, %v1058, 0
        %v1857 = vsel %vm1846, %v1059, 0
        %v1860 = vsel %vm1846, %v1060, 0
        %v1863 = vsel %vm1846, %v1061, 0
        %v1866 = vsel %vm1846, %v1062, 0
        %v1869 = vsel %vm1846, %v1063, 0
        %v1872 = vsel %vm1846, %v1064, 0
        %v1875 = vsel %vm1846, %v1065, 0
        %v1878 = vsel %vm1846, %v1066, 0
        %v1881 = vsel %vm1846, %v1067, 0
        %v1884 = vsel %vm1846, %v1068, 0
        %v1887 = vsel %vm1846, %v1069, 0
        %v1890 = vsel %vm1846, %v1070, 0
        %v1893 = vsel %vm1846, %v1071, 0
        %v1896 = vsel %vm1846, %v1072, 0
        %v1899 = vsel %vm1846, %v1073, 0
        %v1902 = vsel %vm1846, %v1074, 0
        %v1905 = vsel %vm1846, %v1075, 0
        %v1908 = vsel %vm1846, %v1076, 0
        %v1911 = vsel %vm1846, %v1077, 0
        %v1914 = vsel %vm1846, %v1078, 0
        %v1917 = vsel %vm1846, %v1079, 0
        %v1920 = vsel %vm1846, %v1080, 0
        %v1923 = vsel %vm1846, %v1081, 0
        %v1926 = vsel %vm1846, %v1082, 0
        %v1929 = vsel %vm1846, %v1083, 0
        %v1932 = vsel %vm1846, %v1084, 0
        %v1935 = vsel %vm1846, %v1085, 0
        %v1938 = vsel %vm1846, %v1086, 0
        %v1941 = vsel %vm1846, %v1087, 0
        %1943 = vmatprep.subr.mxu0 0.0
        %1944 = vmatpush1.msra.mxu0 %v1839
        %1945 = vmatprep.subr.mxu0 0.0
        %1946 = vmatpush1.msra.mxu0 0.0
        %1947 = vmatprep.subr.mxu0 0.0
        %1948 = vmatpush1.msra.mxu0 0.0
        %1949 = vmatprep.subr.mxu0 0.0
        %1950 = vmatpush1.msra.mxu0 0.0
        %1951 = vmatprep.subr.mxu0 0.0
        %1952 = vmatpush1.msra.mxu0 0.0
        %1953 = vmatprep.subr.mxu0 0.0
        %1954 = vmatpush1.msra.mxu0 0.0
        %1955 = vmatprep.subr.mxu0 0.0
        %1956 = vmatpush1.msra.mxu0 0.0
        %1957 = vmatprep.subr.mxu0 0.0
        %1958 = vmatpush1.msra.mxu0 0.0
        %1959 = vmatprep.subr.mxu0 0.0
        %1960 = vmatpush1.msra.mxu0 0.0
        %1961 = vmatprep.subr.mxu0 0.0
        %1962 = vmatpush1.msra.mxu0 0.0
        %1963 = vmatprep.subr.mxu0 0.0
        %1964 = vmatpush1.msra.mxu0 0.0
        %1965 = vmatprep.subr.mxu0 0.0
        %1966 = vmatpush1.msra.mxu0 0.0
        %1967 = vmatprep.subr.mxu0 0.0
        %1968 = vmatpush1.msra.mxu0 0.0
        %1969 = vmatprep.subr.mxu0 0.0
        %1970 = vmatpush1.msra.mxu0 0.0
        %1971 = vmatprep.subr.mxu0 0.0
        %1972 = vmatpush1.msra.mxu0 0.0
        %1973 = vmatprep.subr.mxu0 0.0
        %1974 = vmatpush1.msra.mxu0 0.0
        %1975 = vmatprep.subr.mxu0 0.0
        %1976 = vmatpush1.msra.mxu0 0.0
        %1977 = vmatprep.subr.mxu0 0.0
        %1978 = vmatpush1.msra.mxu0 0.0
        %1979 = vmatprep.subr.mxu0 0.0
        %1980 = vmatpush1.msra.mxu0 0.0
        %1981 = vmatprep.subr.mxu0 0.0
        %1982 = vmatpush1.msra.mxu0 0.0
        %1983 = vmatprep.subr.mxu0 0.0
        %1984 = vmatpush1.msra.mxu0 0.0
        %1985 = vmatprep.subr.mxu0 0.0
        %1986 = vmatpush1.msra.mxu0 0.0
        %1987 = vmatprep.subr.mxu0 0.0
        %1988 = vmatpush1.msra.mxu0 0.0
        %1989 = vmatprep.subr.mxu0 0.0
        %1990 = vmatpush1.msra.mxu0 0.0
        %1991 = vmatprep.subr.mxu0 0.0
        %1992 = vmatpush1.msra.mxu0 0.0
        %1993 = vmatprep.subr.mxu0 0.0
        %1994 = vmatpush1.msra.mxu0 0.0
        %1995 = vmatprep.subr.mxu0 0.0
        %1996 = vmatpush1.msra.mxu0 0.0
        %1997 = vmatprep.subr.mxu0 0.0
        %1998 = vmatpush1.msra.mxu0 0.0
        %1999 = vmatprep.subr.mxu0 0.0
        %2000 = vmatpush1.msra.mxu0 0.0
        %2001 = vmatprep.subr.mxu0 0.0
        %2002 = vmatpush1.msra.mxu0 0.0
        %2003 = vmatprep.subr.mxu0 0.0
        %2004 = vmatpush1.msra.mxu0 0.0
        %2005 = vmatprep.subr.mxu0 0.0
        %2006 = vmatpush1.msra.mxu0 0.0
        %2007 = vmatprep.mubr.f32.mxu0 0.0
        %2008 = vmatmul.mubr.f32.gmra.mrb[0].mxu0 %v1848
        %v2009 = vpop.f32.mrb[0].mxu0
        %v2010 = vadd.f32 0.0, %v2009
        %v2011 = vpop.f32.mrb[0].mxu0
        %2012 = vmatprep.mubr.f32.mxu0 0.0
        %2013 = vmatmul.mubr.f32.gmra.mrb[0].mxu0 %v1851
        %v2014 = vpop.f32.mrb[0].mxu0
        %v2015 = vadd.f32 0.0, %v2014
        %v2016 = vpop.f32.mrb[0].mxu0
        %2017 = vmatprep.mubr.f32.mxu0 0.0
        %2018 = vmatmul.mubr.f32.gmra.mrb[0].mxu0 %v1854
        %v2019 = vpop.f32.mrb[0].mxu0
        %v2020 = vadd.f32 0.0, %v2019
        %v2021 = vpop.f32.mrb[0].mxu0
        %2022 = vmatprep.mubr.f32.mxu0 0.0
        %2023 = vmatmul.mubr.f32.gmra.mrb[0].mxu0 %v1857
        %v2024 = vpop.f32.mrb[0].mxu0
        %v2025 = vadd.f32 0.0, %v2024
        %v2026 = vpop.f32.mrb[0].mxu0
        %2027 = vmatprep.mubr.f32.mxu0 0.0
        %2028 = vmatmul.mubr.f32.gmra.mrb[0].mxu0 %v1860
        %v2029 = vpop.f32.mrb[0].mxu0
        %v2030 = vadd.f32 0.0, %v2029
        %v2031 = vpop.f32.mrb[0].mxu0
        %2032 = vmatprep.mubr.f32.mxu0 0.0
        %2033 = vmatmul.mubr.f32.gmra.mrb[0].mxu0 %v1863
        %v2034 = vpop.f32.mrb[0].mxu0
        %v2035 = vadd.f32 0.0, %v2034
        %v2036 = vpop.f32.mrb[0].mxu0
        %2037 = vmatprep.mubr.f32.mxu0 0.0
        %2038 = vmatmul.mubr.f32.gmra.mrb[0].mxu0 %v1866
        %v2039 = vpop.f32.mrb[0].mxu0
        %v2040 = vadd.f32 0.0, %v2039
        %v2041 = vpop.f32.mrb[0].mxu0
        %2042 = vmatprep.mubr.f32.mxu0 0.0
        %2043 = vmatmul.mubr.f32.gmra.mrb[0].mxu0 %v1869
        %v2044 = vpop.f32.mrb[0].mxu0
        %v2045 = vadd.f32 0.0, %v2044
        %v2046 = vpop.f32.mrb[0].mxu0
        %2047 = vmatprep.mubr.f32.mxu0 0.0
        %2048 = vmatmul.mubr.f32.gmra.mrb[0].mxu0 %v1872
        %v2049 = vpop.f32.mrb[0].mxu0
        %v2050 = vadd.f32 0.0, %v2049
        %v2051 = vpop.f32.mrb[0].mxu0
        %2052 = vmatprep.mubr.f32.mxu0 0.0
        %2053 = vmatmul.mubr.f32.gmra.mrb[0].mxu0 %v1875
        %v2054 = vpop.f32.mrb[0].mxu0
        %v2055 = vadd.f32 0.0, %v2054
        %v2056 = vpop.f32.mrb[0].mxu0
        %2057 = vmatprep.mubr.f32.mxu0 0.0
        %2058 = vmatmul.mubr.f32.gmra.mrb[0].mxu0 %v1878
        %v2059 = vpop.f32.mrb[0].mxu0
        %v2060 = vadd.f32 0.0, %v2059
        %v2061 = vpop.f32.mrb[0].mxu0
        %2062 = vmatprep.mubr.f32.mxu0 0.0
        %2063 = vmatmul.mubr.f32.gmra.mrb[0].mxu0 %v1881
        %v2064 = vpop.f32.mrb[0].mxu0
        %v2065 = vadd.f32 0.0, %v2064
        %v2066 = vpop.f32.mrb[0].mxu0
        %2067 = vmatprep.mubr.f32.mxu0 0.0
        %2068 = vmatmul.mubr.f32.gmra.mrb[0].mxu0 %v1884
        %v2069 = vpop.f32.mrb[0].mxu0
        %v2070 = vadd.f32 0.0, %v2069
        %v2071 = vpop.f32.mrb[0].mxu0
        %2072 = vmatprep.mubr.f32.mxu0 0.0
        %2073 = vmatmul.mubr.f32.gmra.mrb[0].mxu0 %v1887
        %v2074 = vpop.f32.mrb[0].mxu0
        %v2075 = vadd.f32 0.0, %v2074
        %v2076 = vpop.f32.mrb[0].mxu0
        %2077 = vmatprep.mubr.f32.mxu0 0.0
        %2078 = vmatmul.mubr.f32.gmra.mrb[0].mxu0 %v1890
        %v2079 = vpop.f32.mrb[0].mxu0
        %v2080 = vadd.f32 0.0, %v2079
        %v2081 = vpop.f32.mrb[0].mxu0
        %2082 = vmatprep.mubr.f32.mxu0 0.0
        %2083 = vmatmul.mubr.f32.gmra.mrb[0].mxu0 %v1893
        %v2084 = vpop.f32.mrb[0].mxu0
        %v2085 = vadd.f32 0.0, %v2084
        %v2086 = vpop.f32.mrb[0].mxu0
        %2087 = vmatprep.mubr.f32.mxu0 0.0
        %2088 = vmatmul.mubr.f32.gmra.mrb[0].mxu0 %v1896
        %v2089 = vpop.f32.mrb[0].mxu0
        %v2090 = vadd.f32 0.0, %v2089
        %v2091 = vpop.f32.mrb[0].mxu0
        %2092 = vmatprep.mubr.f32.mxu0 0.0
        %2093 = vmatmul.mubr.f32.gmra.mrb[0].mxu0 %v1899
        %v2094 = vpop.f32.mrb[0].mxu0
        %v2095 = vadd.f32 0.0, %v2094
        %v2096 = vpop.f32.mrb[0].mxu0
        %2097 = vmatprep.mubr.f32.mxu0 0.0
        %2098 = vmatmul.mubr.f32.gmra.mrb[0].mxu0 %v1902
        %v2099 = vpop.f32.mrb[0].mxu0
        %v2100 = vadd.f32 0.0, %v2099
        %v2101 = vpop.f32.mrb[0].mxu0
        %2102 = vmatprep.mubr.f32.mxu0 0.0
        %2103 = vmatmul.mubr.f32.gmra.mrb[0].mxu0 %v1905
        %v2104 = vpop.f32.mrb[0].mxu0
        %v2105 = vadd.f32 0.0, %v2104
        %v2106 = vpop.f32.mrb[0].mxu0
        %2107 = vmatprep.mubr.f32.mxu0 0.0
        %2108 = vmatmul.mubr.f32.gmra.mrb[0].mxu0 %v1908
        %v2109 = vpop.f32.mrb[0].mxu0
        %v2110 = vadd.f32 0.0, %v2109
        %v2111 = vpop.f32.mrb[0].mxu0
        %2112 = vmatprep.mubr.f32.mxu0 0.0
        %2113 = vmatmul.mubr.f32.gmra.mrb[0].mxu0 %v1911
        %v2114 = vpop.f32.mrb[0].mxu0
        %v2115 = vadd.f32 0.0, %v2114
        %v2116 = vpop.f32.mrb[0].mxu0
        %2117 = vmatprep.mubr.f32.mxu0 0.0
        %2118 = vmatmul.mubr.f32.gmra.mrb[0].mxu0 %v1914
        %v2119 = vpop.f32.mrb[0].mxu0
        %v2120 = vadd.f32 0.0, %v2119
        %v2121 = vpop.f32.mrb[0].mxu0
        %2122 = vmatprep.mubr.f32.mxu0 0.0
        %2123 = vmatmul.mubr.f32.gmra.mrb[0].mxu0 %v1917
        %v2124 = vpop.f32.mrb[0].mxu0
        %v2125 = vadd.f32 0.0, %v2124
        %v2126 = vpop.f32.mrb[0].mxu0
        %2127 = vmatprep.mubr.f32.mxu0 0.0
        %2128 = vmatmul.mubr.f32.gmra.mrb[0].mxu0 %v1920
        %v2129 = vpop.f32.mrb[0].mxu0
        %v2130 = vadd.f32 0.0, %v2129
        %v2131 = vpop.f32.mrb[0].mxu0
        %2132 = vmatprep.mubr.f32.mxu0 0.0
        %2133 = vmatmul.mubr.f32.gmra.mrb[0].mxu0 %v1923
        %v2134 = vpop.f32.mrb[0].mxu0
        %v2135 = vadd.f32 0.0, %v2134
        %v2136 = vpop.f32.mrb[0].mxu0
        %2137 = vmatprep.mubr.f32.mxu0 0.0
        %2138 = vmatmul.mubr.f32.gmra.mrb[0].mxu0 %v1926
        %v2139 = vpop.f32.mrb[0].mxu0
        %v2140 = vadd.f32 0.0, %v2139
        %v2141 = vpop.f32.mrb[0].mxu0
        %2142 = vmatprep.mubr.f32.mxu0 0.0
        %2143 = vmatmul.mubr.f32.gmra.mrb[0].mxu0 %v1929
        %v2144 = vpop.f32.mrb[0].mxu0
        %v2145 = vadd.f32 0.0, %v2144
        %v2146 = vpop.f32.mrb[0].mxu0
        %2147 = vmatprep.mubr.f32.mxu0 0.0
        %2148 = vmatmul.mubr.f32.gmra.mrb[0].mxu0 %v1932
        %v2149 = vpop.f32.mrb[0].mxu0
        %v2150 = vadd.f32 0.0, %v2149
        %v2151 = vpop.f32.mrb[0].mxu0
        %2152 = vmatprep.mubr.f32.mxu0 0.0
        %2153 = vmatmul.mubr.f32.gmra.mrb[0].mxu0 %v1935
        %v2154 = vpop.f32.mrb[0].mxu0
        %v2155 = vadd.f32 0.0, %v2154
        %v2156 = vpop.f32.mrb[0].mxu0
        %2157 = vmatprep.mubr.f32.mxu0 0.0
        %2158 = vmatmul.mubr.f32.gmra.mrb[0].mxu0 %v1938
        %v2159 = vpop.f32.mrb[0].mxu0
        %v2160 = vadd.f32 0.0, %v2159
        %v2161 = vpop.f32.mrb[0].mxu0
        %2162 = vmatprep.mubr.f32.mxu0 0.0
        %2163 = vmatmul.mubr.f32.gmra.mrb[0].mxu0 %v1941
        %v2164 = vpop.f32.mrb[0].mxu0
        %v2165 = vadd.f32 0.0, %v2164
        %v2166 = vpop.f32.mrb[0].mxu0
        %2167 = vdwg.mxu0
        %2168 = vmatprep.subr.mxu0 0.0
        %2169 = vmatpush1.msra.mxu0 %v1845
        %2170 = vmatprep.subr.mxu0 0.0
        %2171 = vmatpush1.msra.mxu0 0.0
        %2172 = vmatprep.subr.mxu0 0.0
        %2173 = vmatpush1.msra.mxu0 0.0
        %2174 = vmatprep.subr.mxu0 0.0
        %2175 = vmatpush1.msra.mxu0 0.0
        %2176 = vmatprep.subr.mxu0 0.0
        %2177 = vmatpush1.msra.mxu0 0.0
        %2178 = vmatprep.subr.mxu0 0.0
        %2179 = vmatpush1.msra.mxu0 0.0
        %2180 = vmatprep.subr.mxu0 0.0
        %2181 = vmatpush1.msra.mxu0 0.0
        %2182 = vmatprep.subr.mxu0 0.0
        %2183 = vmatpush1.msra.mxu0 0.0
        %2184 = vmatprep.subr.mxu0 0.0
        %2185 = vmatpush1.msra.mxu0 0.0
        %2186 = vmatprep.subr.mxu0 0.0
        %2187 = vmatpush1.msra.mxu0 0.0
        %2188 = vmatprep.subr.mxu0 0.0
        %2189 = vmatpush1.msra.mxu0 0.0
        %2190 = vmatprep.subr.mxu0 0.0
        %2191 = vmatpush1.msra.mxu0 0.0
        %2192 = vmatprep.subr.mxu0 0.0
        %2193 = vmatpush1.msra.mxu0 0.0
        %2194 = vmatprep.subr.mxu0 0.0
        %2195 = vmatpush1.msra.mxu0 0.0
        %2196 = vmatprep.subr.mxu0 0.0
        %2197 = vmatpush1.msra.mxu0 0.0
        %2198 = vmatprep.subr.mxu0 0.0
        %2199 = vmatpush1.msra.mxu0 0.0
        %2200 = vmatprep.subr.mxu0 0.0
        %2201 = vmatpush1.msra.mxu0 0.0
        %2202 = vmatprep.subr.mxu0 0.0
        %2203 = vmatpush1.msra.mxu0 0.0
        %2204 = vmatprep.subr.mxu0 0.0
        %2205 = vmatpush1.msra.mxu0 0.0
        %2206 = vmatprep.subr.mxu0 0.0
        %2207 = vmatpush1.msra.mxu0 0.0
        %2208 = vmatprep.subr.mxu0 0.0
        %2209 = vmatpush1.msra.mxu0 0.0
        %2210 = vmatprep.subr.mxu0 0.0
        %2211 = vmatpush1.msra.mxu0 0.0
        %2212 = vmatprep.subr.mxu0 0.0
        %2213 = vmatpush1.msra.mxu0 0.0
        %2214 = vmatprep.subr.mxu0 0.0
        %2215 = vmatpush1.msra.mxu0 0.0
        %2216 = vmatprep.subr.mxu0 0.0
        %2217 = vmatpush1.msra.mxu0 0.0
        %2218 = vmatprep.subr.mxu0 0.0
        %2219 = vmatpush1.msra.mxu0 0.0
        %2220 = vmatprep.subr.mxu0 0.0
        %2221 = vmatpush1.msra.mxu0 0.0
        %2222 = vmatprep.subr.mxu0 0.0
        %2223 = vmatpush1.msra.mxu0 0.0
        %2224 = vmatprep.subr.mxu0 0.0
        %2225 = vmatpush1.msra.mxu0 0.0
        %2226 = vmatprep.subr.mxu0 0.0
        %2227 = vmatpush1.msra.mxu0 0.0
        %2228 = vmatprep.subr.mxu0 0.0
        %2229 = vmatpush1.msra.mxu0 0.0
        %2230 = vmatprep.subr.mxu0 0.0
        %2231 = vmatpush1.msra.mxu0 0.0
        %2232 = vmatprep.mubr.f32.mxu0 0.0
        %2233 = vmatmul.mubr.f32.gmra.mrb[0].mxu0 %v1848
        %v2234 = vpop.f32.mrb[0].mxu0
        %v2235 = vadd.f32 0.0, %v2234
        %v2236 = vpop.f32.mrb[0].mxu0
        %2237 = vmatprep.mubr.f32.mxu0 0.0
        %2238 = vmatmul.mubr.f32.gmra.mrb[0].mxu0 %v1851
        %v2239 = vpop.f32.mrb[0].mxu0
        %v2240 = vadd.f32 0.0, %v2239
        %v2241 = vpop.f32.mrb[0].mxu0
        %2242 = vmatprep.mubr.f32.mxu0 0.0
        %2243 = vmatmul.mubr.f32.gmra.mrb[0].mxu0 %v1854
        %v2244 = vpop.f32.mrb[0].mxu0
        %v2245 = vadd.f32 0.0, %v2244
        %v2246 = vpop.f32.mrb[0].mxu0
        %2247 = vmatprep.mubr.f32.mxu0 0.0
        %2248 = vmatmul.mubr.f32.gmra.mrb[0].mxu0 %v1857
        %v2249 = vpop.f32.mrb[0].mxu0
        %v2250 = vadd.f32 0.0, %v2249
        %v2251 = vpop.f32.mrb[0].mxu0
        %2252 = vmatprep.mubr.f32.mxu0 0.0
        %2253 = vmatmul.mubr.f32.gmra.mrb[0].mxu0 %v1860
        %v2254 = vpop.f32.mrb[0].mxu0
        %v2255 = vadd.f32 0.0, %v2254
        %v2256 = vpop.f32.mrb[0].mxu0
        %2257 = vmatprep.mubr.f32.mxu0 0.0
        %2258 = vmatmul.mubr.f32.gmra.mrb[0].mxu0 %v1863
        %v2259 = vpop.f32.mrb[0].mxu0
        %v2260 = vadd.f32 0.0, %v2259
        %v2261 = vpop.f32.mrb[0].mxu0
        %2262 = vmatprep.mubr.f32.mxu0 0.0
        %2263 = vmatmul.mubr.f32.gmra.mrb[0].mxu0 %v1866
        %v2264 = vpop.f32.mrb[0].mxu0
        %v2265 = vadd.f32 0.0, %v2264
        %v2266 = vpop.f32.mrb[0].mxu0
        %2267 = vmatprep.mubr.f32.mxu0 0.0
        %2268 = vmatmul.mubr.f32.gmra.mrb[0].mxu0 %v1869
        %v2269 = vpop.f32.mrb[0].mxu0
        %v2270 = vadd.f32 0.0, %v2269
        %v2271 = vpop.f32.mrb[0].mxu0
        %2272 = vmatprep.mubr.f32.mxu0 0.0
        %2273 = vmatmul.mubr.f32.gmra.mrb[0].mxu0 %v1872
        %v2274 = vpop.f32.mrb[0].mxu0
        %v2275 = vadd.f32 0.0, %v2274
        %v2276 = vpop.f32.mrb[0].mxu0
        %2277 = vmatprep.mubr.f32.mxu0 0.0
        %2278 = vmatmul.mubr.f32.gmra.mrb[0].mxu0 %v1875
        %v2279 = vpop.f32.mrb[0].mxu0
        %v2280 = vadd.f32 0.0, %v2279
        %v2281 = vpop.f32.mrb[0].mxu0
        %2282 = vmatprep.mubr.f32.mxu0 0.0
        %2283 = vmatmul.mubr.f32.gmra.mrb[0].mxu0 %v1878
        %v2284 = vpop.f32.mrb[0].mxu0
        %v2285 = vadd.f32 0.0, %v2284
        %v2286 = vpop.f32.mrb[0].mxu0
        %2287 = vmatprep.mubr.f32.mxu0 0.0
        %2288 = vmatmul.mubr.f32.gmra.mrb[0].mxu0 %v1881
        %v2289 = vpop.f32.mrb[0].mxu0
        %v2290 = vadd.f32 0.0, %v2289
        %v2291 = vpop.f32.mrb[0].mxu0
        %2292 = vmatprep.mubr.f32.mxu0 0.0
        %2293 = vmatmul.mubr.f32.gmra.mrb[0].mxu0 %v1884
        %v2294 = vpop.f32.mrb[0].mxu0
        %v2295 = vadd.f32 0.0, %v2294
        %v2296 = vpop.f32.mrb[0].mxu0
        %2297 = vmatprep.mubr.f32.mxu0 0.0
        %2298 = vmatmul.mubr.f32.gmra.mrb[0].mxu0 %v1887
        %v2299 = vpop.f32.mrb[0].mxu0
        %v2300 = vadd.f32 0.0, %v2299
        %v2301 = vpop.f32.mrb[0].mxu0
        %2302 = vmatprep.mubr.f32.mxu0 0.0
        %2303 = vmatmul.mubr.f32.gmra.mrb[0].mxu0 %v1890
        %v2304 = vpop.f32.mrb[0].mxu0
        %v2305 = vadd.f32 0.0, %v2304
        %v2306 = vpop.f32.mrb[0].mxu0
        %2307 = vmatprep.mubr.f32.mxu0 0.0
        %2308 = vmatmul.mubr.f32.gmra.mrb[0].mxu0 %v1893
        %v2309 = vpop.f32.mrb[0].mxu0
        %v2310 = vadd.f32 0.0, %v2309
        %v2311 = vpop.f32.mrb[0].mxu0
        %2312 = vmatprep.mubr.f32.mxu0 0.0
        %2313 = vmatmul.mubr.f32.gmra.mrb[0].mxu0 %v1896
        %v2314 = vpop.f32.mrb[0].mxu0
        %v2315 = vadd.f32 0.0, %v2314
        %v2316 = vpop.f32.mrb[0].mxu0
        %2317 = vmatprep.mubr.f32.mxu0 0.0
        %2318 = vmatmul.mubr.f32.gmra.mrb[0].mxu0 %v1899
        %v2319 = vpop.f32.mrb[0].mxu0
        %v2320 = vadd.f32 0.0, %v2319
        %v2321 = vpop.f32.mrb[0].mxu0
        %2322 = vmatprep.mubr.f32.mxu0 0.0
        %2323 = vmatmul.mubr.f32.gmra.mrb[0].mxu0 %v1902
        %v2324 = vpop.f32.mrb[0].mxu0
        %v2325 = vadd.f32 0.0, %v2324
        %v2326 = vpop.f32.mrb[0].mxu0
        %2327 = vmatprep.mubr.f32.mxu0 0.0
        %2328 = vmatmul.mubr.f32.gmra.mrb[0].mxu0 %v1905
        %v2329 = vpop.f32.mrb[0].mxu0
        %v2330 = vadd.f32 0.0, %v2329
        %v2331 = vpop.f32.mrb[0].mxu0
        %2332 = vmatprep.mubr.f32.mxu0 0.0
        %2333 = vmatmul.mubr.f32.gmra.mrb[0].mxu0 %v1908
        %v2334 = vpop.f32.mrb[0].mxu0
        %v2335 = vadd.f32 0.0, %v2334
        %v2336 = vpop.f32.mrb[0].mxu0
        %2337 = vmatprep.mubr.f32.mxu0 0.0
        %2338 = vmatmul.mubr.f32.gmra.mrb[0].mxu0 %v1911
        %v2339 = vpop.f32.mrb[0].mxu0
        %v2340 = vadd.f32 0.0, %v2339
        %v2341 = vpop.f32.mrb[0].mxu0
        %2342 = vmatprep.mubr.f32.mxu0 0.0
        %2343 = vmatmul.mubr.f32.gmra.mrb[0].mxu0 %v1914
        %v2344 = vpop.f32.mrb[0].mxu0
        %v2345 = vadd.f32 0.0, %v2344
        %v2346 = vpop.f32.mrb[0].mxu0
        %2347 = vmatprep.mubr.f32.mxu0 0.0
        %2348 = vmatmul.mubr.f32.gmra.mrb[0].mxu0 %v1917
        %v2349 = vpop.f32.mrb[0].mxu0
        %v2350 = vadd.f32 0.0, %v2349
        %v2351 = vpop.f32.mrb[0].mxu0
        %2352 = vmatprep.mubr.f32.mxu0 0.0
        %2353 = vmatmul.mubr.f32.gmra.mrb[0].mxu0 %v1920
        %v2354 = vpop.f32.mrb[0].mxu0
        %v2355 = vadd.f32 0.0, %v2354
        %v2356 = vpop.f32.mrb[0].mxu0
        %2357 = vmatprep.mubr.f32.mxu0 0.0
        %2358 = vmatmul.mubr.f32.gmra.mrb[0].mxu0 %v1923
        %v2359 = vpop.f32.mrb[0].mxu0
        %v2360 = vadd.f32 0.0, %v2359
        %v2361 = vpop.f32.mrb[0].mxu0
        %2362 = vmatprep.mubr.f32.mxu0 0.0
        %2363 = vmatmul.mubr.f32.gmra.mrb[0].mxu0 %v1926
        %v2364 = vpop.f32.mrb[0].mxu0
        %v2365 = vadd.f32 0.0, %v2364
        %v2366 = vpop.f32.mrb[0].mxu0
        %2367 = vmatprep.mubr.f32.mxu0 0.0
        %2368 = vmatmul.mubr.f32.gmra.mrb[0].mxu0 %v1929
        %v2369 = vpop.f32.mrb[0].mxu0
        %v2370 = vadd.f32 0.0, %v2369
        %v2371 = vpop.f32.mrb[0].mxu0
        %2372 = vmatprep.mubr.f32.mxu0 0.0
        %2373 = vmatmul.mubr.f32.gmra.mrb[0].mxu0 %v1932
        %v2374 = vpop.f32.mrb[0].mxu0
        %v2375 = vadd.f32 0.0, %v2374
        %v2376 = vpop.f32.mrb[0].mxu0
        %2377 = vmatprep.mubr.f32.mxu0 0.0
        %2378 = vmatmul.mubr.f32.gmra.mrb[0].mxu0 %v1935
        %v2379 = vpop.f32.mrb[0].mxu0
        %v2380 = vadd.f32 0.0, %v2379
        %v2381 = vpop.f32.mrb[0].mxu0
        %2382 = vmatprep.mubr.f32.mxu0 0.0
        %2383 = vmatmul.mubr.f32.gmra.mrb[0].mxu0 %v1938
        %v2384 = vpop.f32.mrb[0].mxu0
        %v2385 = vadd.f32 0.0, %v2384
        %v2386 = vpop.f32.mrb[0].mxu0
        %2387 = vmatprep.mubr.f32.mxu0 0.0
        %2388 = vmatmul.mubr.f32.gmra.mrb[0].mxu0 %v1941
        %v2389 = vpop.f32.mrb[0].mxu0
        %v2390 = vadd.f32 0.0, %v2389
        %v2391 = vpop.f32.mrb[0].mxu0
        %2392 = vdwg.mxu0
        %v2393 = vmul.f32 %v1624, %v2010
        %v2394 = vmul.f32 %v1625, %v2015
        %v2395 = vmul.f32 %v1626, %v2020
        %v2396 = vmul.f32 %v1627, %v2025
        %v2397 = vmul.f32 %v1628, %v2030
        %v2398 = vmul.f32 %v1629, %v2035
        %v2399 = vmul.f32 %v1630, %v2040
        %v2400 = vmul.f32 %v1631, %v2045
        %v2401 = vmul.f32 %v1632, %v2050
        %v2402 = vmul.f32 %v1633, %v2055
        %v2403 = vmul.f32 %v1634, %v2060
        %v2404 = vmul.f32 %v1635, %v2065
        %v2405 = vmul.f32 %v1636, %v2070
        %v2406 = vmul.f32 %v1637, %v2075
        %v2407 = vmul.f32 %v1638, %v2080
        %v2408 = vmul.f32 %v1639, %v2085
        %v2409 = vmul.f32 %v1640, %v2090
        %v2410 = vmul.f32 %v1641, %v2095
        %v2411 = vmul.f32 %v1642, %v2100
        %v2412 = vmul.f32 %v1643, %v2105
        %v2413 = vmul.f32 %v1644, %v2110
        %v2414 = vmul.f32 %v1645, %v2115
        %v2415 = vmul.f32 %v1646, %v2120
        %v2416 = vmul.f32 %v1647, %v2125
        %v2417 = vmul.f32 %v1648, %v2130
        %v2418 = vmul.f32 %v1649, %v2135
        %v2419 = vmul.f32 %v1650, %v2140
        %v2420 = vmul.f32 %v1651, %v2145
        %v2421 = vmul.f32 %v1652, %v2150
        %v2422 = vmul.f32 %v1653, %v2155
        %v2423 = vmul.f32 %v1654, %v2160
        %v2424 = vmul.f32 %v1655, %v2165
        %v2425 = vadd.f32 %v2393, %v2235
        %v2426 = vadd.f32 %v2394, %v2240
        %v2427 = vadd.f32 %v2395, %v2245
        %v2428 = vadd.f32 %v2396, %v2250
        %v2429 = vadd.f32 %v2397, %v2255
        %v2430 = vadd.f32 %v2398, %v2260
        %v2431 = vadd.f32 %v2399, %v2265
        %v2432 = vadd.f32 %v2400, %v2270
        %v2433 = vadd.f32 %v2401, %v2275
        %v2434 = vadd.f32 %v2402, %v2280
        %v2435 = vadd.f32 %v2403, %v2285
        %v2436 = vadd.f32 %v2404, %v2290
        %v2437 = vadd.f32 %v2405, %v2295
        %v2438 = vadd.f32 %v2406, %v2300
        %v2439 = vadd.f32 %v2407, %v2305
        %v2440 = vadd.f32 %v2408, %v2310
        %v2441 = vadd.f32 %v2409, %v2315
        %v2442 = vadd.f32 %v2410, %v2320
        %v2443 = vadd.f32 %v2411, %v2325
        %v2444 = vadd.f32 %v2412, %v2330
        %v2445 = vadd.f32 %v2413, %v2335
        %v2446 = vadd.f32 %v2414, %v2340
        %v2447 = vadd.f32 %v2415, %v2345
        %v2448 = vadd.f32 %v2416, %v2350
        %v2449 = vadd.f32 %v2417, %v2355
        %v2450 = vadd.f32 %v2418, %v2360
        %v2451 = vadd.f32 %v2419, %v2365
        %v2452 = vadd.f32 %v2420, %v2370
        %v2453 = vadd.f32 %v2421, %v2375
        %v2454 = vadd.f32 %v2422, %v2380
        %v2455 = vadd.f32 %v2423, %v2385
        %v2456 = vadd.f32 %v2424, %v2390
        %v2457 = vpack.c.bf16 %v2426, %v2425
        %v2458 = vpack.c.bf16 %v2428, %v2427
        %v2459 = vpack.c.bf16 %v2430, %v2429
        %v2460 = vpack.c.bf16 %v2432, %v2431
        %v2461 = vpack.c.bf16 %v2434, %v2433
        %v2462 = vpack.c.bf16 %v2436, %v2435
        %v2463 = vpack.c.bf16 %v2438, %v2437
        %v2464 = vpack.c.bf16 %v2440, %v2439
        %v2465 = vpack.c.bf16 %v2442, %v2441
        %v2466 = vpack.c.bf16 %v2444, %v2443
        %v2467 = vpack.c.bf16 %v2446, %v2445
        %v2468 = vpack.c.bf16 %v2448, %v2447
        %v2469 = vpack.c.bf16 %v2450, %v2449
        %v2470 = vpack.c.bf16 %v2452, %v2451
        %v2471 = vpack.c.bf16 %v2454, %v2453
        %v2472 = vpack.c.bf16 %v2456, %v2455
        %v2473 = vld [vmem:[#allocation7] sm:$0xf]
        %v2474 = vld [vmem:[#allocation7 + $0x4] sm:$0xf]
        %v2475 = vld [vmem:[#allocation7 + $0x8] sm:$0xf]
        %v2476 = vld [vmem:[#allocation7 + $0xc] sm:$0xf]
        %v2477 = vld [vmem:[#allocation7 + $0x10] sm:$0xf]
        %v2478 = vld [vmem:[#allocation7 + $0x14] sm:$0xf]
        %v2479 = vld [vmem:[#allocation7 + $0x18] sm:$0xf]
        %v2480 = vld [vmem:[#allocation7 + $0x1c] sm:$0xf]
        %v2481 = vld [vmem:[#allocation7 + $0x20] sm:$0xf]
        %v2482 = vld [vmem:[#allocation7 + $0x24] sm:$0xf]
        %v2483 = vld [vmem:[#allocation7 + $0x28] sm:$0xf]
        %v2484 = vld [vmem:[#allocation7 + $0x2c] sm:$0xf]
        %v2485 = vld [vmem:[#allocation7 + $0x30] sm:$0xf]
        %v2486 = vld [vmem:[#allocation7 + $0x34] sm:$0xf]
        %v2487 = vld [vmem:[#allocation7 + $0x38] sm:$0xf]
        %v2488 = vld [vmem:[#allocation7 + $0x3c] sm:$0xf]
        %v2505 = vunpack.c.l.b16 %v2473
        %v2506 = vunpack.c.l.b16 %v2474
        %v2507 = vunpack.c.l.b16 %v2475
        %v2508 = vunpack.c.l.b16 %v2476
        %v2509 = vunpack.c.l.b16 %v2477
        %v2510 = vunpack.c.l.b16 %v2478
        %v2511 = vunpack.c.l.b16 %v2479
        %v2512 = vunpack.c.l.b16 %v2480
        %v2513 = vunpack.c.l.b16 %v2481
        %v2514 = vunpack.c.l.b16 %v2482
        %v2515 = vunpack.c.l.b16 %v2483
        %v2516 = vunpack.c.l.b16 %v2484
        %v2517 = vunpack.c.l.b16 %v2485
        %v2518 = vunpack.c.l.b16 %v2486
        %v2519 = vunpack.c.l.b16 %v2487
        %v2520 = vunpack.c.l.b16 %v2488
        %v2521 = vpack.c.b16 %v2506, %v2505
        %v2522 = vpack.c.b16 %v2508, %v2507
        %v2523 = vpack.c.b16 %v2510, %v2509
        %v2524 = vpack.c.b16 %v2512, %v2511
        %v2525 = vpack.c.b16 %v2514, %v2513
        %v2526 = vpack.c.b16 %v2516, %v2515
        %v2527 = vpack.c.b16 %v2518, %v2517
        %v2528 = vpack.c.b16 %v2520, %v2519
        %2537 = vmatprep.subr.bf16.mxu0 0
        %2538 = vmatpush1.bf16.msra.mxu0 %v2521
        %2539 = vmatprep.subr.bf16.mxu0 0
        %2540 = vmatpush1.bf16.msra.mxu0 %v2522
        %2541 = vmatprep.subr.bf16.mxu0 0
        %2542 = vmatpush1.bf16.msra.mxu0 %v2523
        %2543 = vmatprep.subr.bf16.mxu0 0
        %2544 = vmatpush1.bf16.msra.mxu0 %v2524
        %2545 = vmatprep.subr.bf16.mxu0 0
        %2546 = vmatpush1.bf16.msra.mxu0 %v2525
        %2547 = vmatprep.subr.bf16.mxu0 0
        %2548 = vmatpush1.bf16.msra.mxu0 %v2526
        %2549 = vmatprep.subr.bf16.mxu0 0
        %2550 = vmatpush1.bf16.msra.mxu0 %v2527
        %2551 = vmatprep.subr.bf16.mxu0 0
        %2552 = vmatpush1.bf16.msra.mxu0 %v2528
        %2553 = vmatprep.subr.bf16.mxu0 0
        %2554 = vmatpush1.bf16.msra.mxu0 0
        %2555 = vmatprep.subr.bf16.mxu0 0
        %2556 = vmatpush1.bf16.msra.mxu0 0
        %2557 = vmatprep.subr.bf16.mxu0 0
        %2558 = vmatpush1.bf16.msra.mxu0 0
        %2559 = vmatprep.subr.bf16.mxu0 0
        %2560 = vmatpush1.bf16.msra.mxu0 0
        %2561 = vmatprep.subr.bf16.mxu0 0
        %2562 = vmatpush1.bf16.msra.mxu0 0
        %2563 = vmatprep.subr.bf16.mxu0 0
        %2564 = vmatpush1.bf16.msra.mxu0 0
        %2565 = vmatprep.subr.bf16.mxu0 0
        %2566 = vmatpush1.bf16.msra.mxu0 0
        %2567 = vmatprep.subr.bf16.mxu0 0
        %2568 = vmatpush1.bf16.msra.mxu0 0
        %2569 = vmatprep.mubr.bf16.mxu0 0
        %2570 = vmatmul.mubr.bf16.gmra.mrb[0].mxu0 %v2457
        %v2571 = vpop.f32.mrb[0].mxu0
        %v2572 = vadd.f32 0.0, %v2571
        %v2573 = vpop.f32.mrb[0].mxu0
        %v2574 = vpop.f32.mrb[0].mxu0
        %v2575 = vadd.f32 0.0, %v2574
        %v2576 = vpop.f32.mrb[0].mxu0
        %2577 = vmatprep.mubr.bf16.mxu0 0
        %2578 = vmatmul.mubr.bf16.gmra.mrb[0].mxu0 %v2458
        %v2579 = vpop.f32.mrb[0].mxu0
        %v2580 = vadd.f32 0.0, %v2579
        %v2581 = vpop.f32.mrb[0].mxu0
        %v2582 = vpop.f32.mrb[0].mxu0
        %v2583 = vadd.f32 0.0, %v2582
        %v2584 = vpop.f32.mrb[0].mxu0
        %2585 = vmatprep.mubr.bf16.mxu0 0
        %2586 = vmatmul.mubr.bf16.gmra.mrb[0].mxu0 %v2459
        %v2587 = vpop.f32.mrb[0].mxu0
        %v2588 = vadd.f32 0.0, %v2587
        %v2589 = vpop.f32.mrb[0].mxu0
        %v2590 = vpop.f32.mrb[0].mxu0
        %v2591 = vadd.f32 0.0, %v2590
        %v2592 = vpop.f32.mrb[0].mxu0
        %2593 = vmatprep.mubr.bf16.mxu0 0
        %2594 = vmatmul.mubr.bf16.gmra.mrb[0].mxu0 %v2460
        %v2595 = vpop.f32.mrb[0].mxu0
        %v2596 = vadd.f32 0.0, %v2595
        %v2597 = vpop.f32.mrb[0].mxu0
        %v2598 = vpop.f32.mrb[0].mxu0
        %v2599 = vadd.f32 0.0, %v2598
        %v2600 = vpop.f32.mrb[0].mxu0
        %2601 = vmatprep.mubr.bf16.mxu0 0
        %2602 = vmatmul.mubr.bf16.gmra.mrb[0].mxu0 %v2461
        %v2603 = vpop.f32.mrb[0].mxu0
        %v2604 = vadd.f32 0.0, %v2603
        %v2605 = vpop.f32.mrb[0].mxu0
        %v2606 = vpop.f32.mrb[0].mxu0
        %v2607 = vadd.f32 0.0, %v2606
        %v2608 = vpop.f32.mrb[0].mxu0
        %2609 = vmatprep.mubr.bf16.mxu0 0
        %2610 = vmatmul.mubr.bf16.gmra.mrb[0].mxu0 %v2462
        %v2611 = vpop.f32.mrb[0].mxu0
        %v2612 = vadd.f32 0.0, %v2611
        %v2613 = vpop.f32.mrb[0].mxu0
        %v2614 = vpop.f32.mrb[0].mxu0
        %v2615 = vadd.f32 0.0, %v2614
        %v2616 = vpop.f32.mrb[0].mxu0
        %2617 = vmatprep.mubr.bf16.mxu0 0
        %2618 = vmatmul.mubr.bf16.gmra.mrb[0].mxu0 %v2463
        %v2619 = vpop.f32.mrb[0].mxu0
        %v2620 = vadd.f32 0.0, %v2619
        %v2621 = vpop.f32.mrb[0].mxu0
        %v2622 = vpop.f32.mrb[0].mxu0
        %v2623 = vadd.f32 0.0, %v2622
        %v2624 = vpop.f32.mrb[0].mxu0
        %2625 = vmatprep.mubr.bf16.mxu0 0
        %2626 = vmatmul.mubr.bf16.gmra.mrb[0].mxu0 %v2464
        %v2627 = vpop.f32.mrb[0].mxu0
        %v2628 = vadd.f32 0.0, %v2627
        %v2629 = vpop.f32.mrb[0].mxu0
        %v2630 = vpop.f32.mrb[0].mxu0
        %v2631 = vadd.f32 0.0, %v2630
        %v2632 = vpop.f32.mrb[0].mxu0
        %2633 = vmatprep.mubr.bf16.mxu0 0
        %2634 = vmatmul.mubr.bf16.gmra.mrb[0].mxu0 %v2465
        %v2635 = vpop.f32.mrb[0].mxu0
        %v2636 = vadd.f32 0.0, %v2635
        %v2637 = vpop.f32.mrb[0].mxu0
        %v2638 = vpop.f32.mrb[0].mxu0
        %v2639 = vadd.f32 0.0, %v2638
        %v2640 = vpop.f32.mrb[0].mxu0
        %2641 = vmatprep.mubr.bf16.mxu0 0
        %2642 = vmatmul.mubr.bf16.gmra.mrb[0].mxu0 %v2466
        %v2643 = vpop.f32.mrb[0].mxu0
        %v2644 = vadd.f32 0.0, %v2643
        %v2645 = vpop.f32.mrb[0].mxu0
        %v2646 = vpop.f32.mrb[0].mxu0
        %v2647 = vadd.f32 0.0, %v2646
        %v2648 = vpop.f32.mrb[0].mxu0
        %2649 = vmatprep.mubr.bf16.mxu0 0
        %2650 = vmatmul.mubr.bf16.gmra.mrb[0].mxu0 %v2467
        %v2651 = vpop.f32.mrb[0].mxu0
        %v2652 = vadd.f32 0.0, %v2651
        %v2653 = vpop.f32.mrb[0].mxu0
        %v2654 = vpop.f32.mrb[0].mxu0
        %v2655 = vadd.f32 0.0, %v2654
        %v2656 = vpop.f32.mrb[0].mxu0
        %2657 = vmatprep.mubr.bf16.mxu0 0
        %2658 = vmatmul.mubr.bf16.gmra.mrb[0].mxu0 %v2468
        %v2659 = vpop.f32.mrb[0].mxu0
        %v2660 = vadd.f32 0.0, %v2659
        %v2661 = vpop.f32.mrb[0].mxu0
        %v2662 = vpop.f32.mrb[0].mxu0
        %v2663 = vadd.f32 0.0, %v2662
        %v2664 = vpop.f32.mrb[0].mxu0
        %2665 = vmatprep.mubr.bf16.mxu0 0
        %2666 = vmatmul.mubr.bf16.gmra.mrb[0].mxu0 %v2469
        %v2667 = vpop.f32.mrb[0].mxu0
        %v2668 = vadd.f32 0.0, %v2667
        %v2669 = vpop.f32.mrb[0].mxu0
        %v2670 = vpop.f32.mrb[0].mxu0
        %v2671 = vadd.f32 0.0, %v2670
        %v2672 = vpop.f32.mrb[0].mxu0
        %2673 = vmatprep.mubr.bf16.mxu0 0
        %2674 = vmatmul.mubr.bf16.gmra.mrb[0].mxu0 %v2470
        %v2675 = vpop.f32.mrb[0].mxu0
        %v2676 = vadd.f32 0.0, %v2675
        %v2677 = vpop.f32.mrb[0].mxu0
        %v2678 = vpop.f32.mrb[0].mxu0
        %v2679 = vadd.f32 0.0, %v2678
        %v2680 = vpop.f32.mrb[0].mxu0
        %2681 = vmatprep.mubr.bf16.mxu0 0
        %2682 = vmatmul.mubr.bf16.gmra.mrb[0].mxu0 %v2471
        %v2683 = vpop.f32.mrb[0].mxu0
        %v2684 = vadd.f32 0.0, %v2683
        %v2685 = vpop.f32.mrb[0].mxu0
        %v2686 = vpop.f32.mrb[0].mxu0
        %v2687 = vadd.f32 0.0, %v2686
        %v2688 = vpop.f32.mrb[0].mxu0
        %2689 = vmatprep.mubr.bf16.mxu0 0
        %2690 = vmatmul.mubr.bf16.gmra.mrb[0].mxu0 %v2472
        %v2691 = vpop.f32.mrb[0].mxu0
        %v2692 = vadd.f32 0.0, %v2691
        %v2693 = vpop.f32.mrb[0].mxu0
        %v2694 = vpop.f32.mrb[0].mxu0
        %v2695 = vadd.f32 0.0, %v2694
        %v2696 = vpop.f32.mrb[0].mxu0
        %2697 = vdwg.mxu0
        %v2698 = vpack.c.bf16 %v2575, %v2572
        %v2699 = vpack.c.bf16 %v2583, %v2580
        %v2700 = vpack.c.bf16 %v2591, %v2588
        %v2701 = vpack.c.bf16 %v2599, %v2596
        %v2702 = vpack.c.bf16 %v2607, %v2604
        %v2703 = vpack.c.bf16 %v2615, %v2612
        %v2704 = vpack.c.bf16 %v2623, %v2620
        %v2705 = vpack.c.bf16 %v2631, %v2628
        %v2706 = vpack.c.bf16 %v2639, %v2636
        %v2707 = vpack.c.bf16 %v2647, %v2644
        %v2708 = vpack.c.bf16 %v2655, %v2652
        %v2709 = vpack.c.bf16 %v2663, %v2660
        %v2710 = vpack.c.bf16 %v2671, %v2668
        %v2711 = vpack.c.bf16 %v2679, %v2676
        %v2712 = vpack.c.bf16 %v2687, %v2684
        %v2713 = vpack.c.bf16 %v2695, %v2692
        %v2714 = vlaneseq
        %v2715 = vshrl.u32 %v2714, 7
        %v2716 = vsub.s32 3, %v2715
        %v2717 = vrot.slane %v1088, %v2716
        %2718 = vmatprep.subr.bf16.mxu0 0
        %2719 = vmatpush1.bf16.msra.mxu0 %v2698
        %2720 = vmatprep.subr.bf16.mxu0 0
        %2721 = vmatpush1.bf16.msra.mxu0 %v2699
        %2722 = vmatprep.subr.bf16.mxu0 0
        %2723 = vmatpush1.bf16.msra.mxu0 %v2700
        %2724 = vmatprep.subr.bf16.mxu0 0
        %2725 = vmatpush1.bf16.msra.mxu0 %v2701
        %2726 = vmatprep.subr.bf16.mxu0 0
        %2727 = vmatpush1.bf16.msra.mxu0 %v2702
        %2728 = vmatprep.subr.bf16.mxu0 0
        %2729 = vmatpush1.bf16.msra.mxu0 %v2703
        %2730 = vmatprep.subr.bf16.mxu0 0
        %2731 = vmatpush1.bf16.msra.mxu0 %v2704
        %2732 = vmatprep.subr.bf16.mxu0 0
        %2733 = vmatpush1.bf16.msra.mxu0 %v2705
        %2734 = vmatprep.subr.bf16.mxu0 0
        %2735 = vmatpush1.bf16.msra.mxu0 %v2706
        %2736 = vmatprep.subr.bf16.mxu0 0
        %2737 = vmatpush1.bf16.msra.mxu0 %v2707
        %2738 = vmatprep.subr.bf16.mxu0 0
        %2739 = vmatpush1.bf16.msra.mxu0 %v2708
        %2740 = vmatprep.subr.bf16.mxu0 0
        %2741 = vmatpush1.bf16.msra.mxu0 %v2709
        %2742 = vmatprep.subr.bf16.mxu0 0
        %2743 = vmatpush1.bf16.msra.mxu0 %v2710
        %2744 = vmatprep.subr.bf16.mxu0 0
        %2745 = vmatpush1.bf16.msra.mxu0 %v2711
        %2746 = vmatprep.subr.bf16.mxu0 0
        %2747 = vmatpush1.bf16.msra.mxu0 %v2712
        %2748 = vmatprep.subr.bf16.mxu0 0
        %2749 = vmatpush1.bf16.msra.mxu0 %v2713
        %2750 = vmatprep.mubr.bf16.mxu0 %v1023
        %2751 = vmatmul.mubr.bf16.gmra.mrb[0].mxu0 %v1022
        %v2752 = vpop.f32.mrb[0].mxu0
        %v2753 = vadd.f32 %v2717, %v2752
        %v2754 = vpop.f32.mrb[0].mxu0
        %v2755 = vpop.f32.mrb[0].mxu0
        %v2756 = vadd.f32 %v2717, %v2755
        %v2757 = vpop.f32.mrb[0].mxu0
        %2758 = vmatprep.mubr.bf16.mxu0 %v1025
        %2759 = vmatmul.mubr.bf16.gmra.mrb[0].mxu0 %v1024
        %v2760 = vpop.f32.mrb[0].mxu0
        %v2761 = vadd.f32 %v2717, %v2760
        %v2762 = vpop.f32.mrb[0].mxu0
        %v2763 = vpop.f32.mrb[0].mxu0
        %v2764 = vadd.f32 %v2717, %v2763
        %v2765 = vpop.f32.mrb[0].mxu0
        %2766 = vmatprep.mubr.bf16.mxu0 %v1027
        %2767 = vmatmul.mubr.bf16.gmra.mrb[0].mxu0 %v1026
        %v2768 = vpop.f32.mrb[0].mxu0
        %v2769 = vadd.f32 %v2717, %v2768
        %v2770 = vpop.f32.mrb[0].mxu0
        %v2771 = vpop.f32.mrb[0].mxu0
        %v2772 = vadd.f32 %v2717, %v2771
        %v2773 = vpop.f32.mrb[0].mxu0
        %2774 = vmatprep.mubr.bf16.mxu0 %v1029
        %2775 = vmatmul.mubr.bf16.gmra.mrb[0].mxu0 %v1028
        %v2776 = vpop.f32.mrb[0].mxu0
        %v2777 = vadd.f32 %v2717, %v2776
        %v2778 = vpop.f32.mrb[0].mxu0
        %v2779 = vpop.f32.mrb[0].mxu0
        %v2780 = vadd.f32 %v2717, %v2779
        %v2781 = vpop.f32.mrb[0].mxu0
        %2782 = vmatprep.mubr.bf16.mxu0 %v1031
        %2783 = vmatmul.mubr.bf16.gmra.mrb[0].mxu0 %v1030
        %v2784 = vpop.f32.mrb[0].mxu0
        %v2785 = vadd.f32 %v2717, %v2784
        %v2786 = vpop.f32.mrb[0].mxu0
        %v2787 = vpop.f32.mrb[0].mxu0
        %v2788 = vadd.f32 %v2717, %v2787
        %v2789 = vpop.f32.mrb[0].mxu0
        %2790 = vmatprep.mubr.bf16.mxu0 %v1033
        %2791 = vmatmul.mubr.bf16.gmra.mrb[0].mxu0 %v1032
        %v2792 = vpop.f32.mrb[0].mxu0
        %v2793 = vadd.f32 %v2717, %v2792
        %v2794 = vpop.f32.mrb[0].mxu0
        %v2795 = vpop.f32.mrb[0].mxu0
        %v2796 = vadd.f32 %v2717, %v2795
        %v2797 = vpop.f32.mrb[0].mxu0
        %2798 = vmatprep.mubr.bf16.mxu0 %v1035
        %2799 = vmatmul.mubr.bf16.gmra.mrb[0].mxu0 %v1034
        %v2800 = vpop.f32.mrb[0].mxu0
        %v2801 = vadd.f32 %v2717, %v2800
        %v2802 = vpop.f32.mrb[0].mxu0
        %v2803 = vpop.f32.mrb[0].mxu0
        %v2804 = vadd.f32 %v2717, %v2803
        %v2805 = vpop.f32.mrb[0].mxu0
        %2806 = vmatprep.mubr.bf16.mxu0 %v1037
        %2807 = vmatmul.mubr.bf16.gmra.mrb[0].mxu0 %v1036
        %v2808 = vpop.f32.mrb[0].mxu0
        %v2809 = vadd.f32 %v2717, %v2808
        %v2810 = vpop.f32.mrb[0].mxu0
        %v2811 = vpop.f32.mrb[0].mxu0
        %v2812 = vadd.f32 %v2717, %v2811
        %v2813 = vpop.f32.mrb[0].mxu0
        %2814 = vmatprep.mubr.bf16.mxu0 %v1039
        %2815 = vmatmul.mubr.bf16.gmra.mrb[0].mxu0 %v1038
        %v2816 = vpop.f32.mrb[0].mxu0
        %v2817 = vadd.f32 %v2717, %v2816
        %v2818 = vpop.f32.mrb[0].mxu0
        %v2819 = vpop.f32.mrb[0].mxu0
        %v2820 = vadd.f32 %v2717, %v2819
        %v2821 = vpop.f32.mrb[0].mxu0
        %2822 = vmatprep.mubr.bf16.mxu0 %v1041
        %2823 = vmatmul.mubr.bf16.gmra.mrb[0].mxu0 %v1040
        %v2824 = vpop.f32.mrb[0].mxu0
        %v2825 = vadd.f32 %v2717, %v2824
        %v2826 = vpop.f32.mrb[0].mxu0
        %v2827 = vpop.f32.mrb[0].mxu0
        %v2828 = vadd.f32 %v2717, %v2827
        %v2829 = vpop.f32.mrb[0].mxu0
        %2830 = vmatprep.mubr.bf16.mxu0 %v1043
        %2831 = vmatmul.mubr.bf16.gmra.mrb[0].mxu0 %v1042
        %v2832 = vpop.f32.mrb[0].mxu0
        %v2833 = vadd.f32 %v2717, %v2832
        %v2834 = vpop.f32.mrb[0].mxu0
        %v2835 = vpop.f32.mrb[0].mxu0
        %v2836 = vadd.f32 %v2717, %v2835
        %v2837 = vpop.f32.mrb[0].mxu0
        %2838 = vmatprep.mubr.bf16.mxu0 %v1045
        %2839 = vmatmul.mubr.bf16.gmra.mrb[0].mxu0 %v1044
        %v2840 = vpop.f32.mrb[0].mxu0
        %v2841 = vadd.f32 %v2717, %v2840
        %v2842 = vpop.f32.mrb[0].mxu0
        %v2843 = vpop.f32.mrb[0].mxu0
        %v2844 = vadd.f32 %v2717, %v2843
        %v2845 = vpop.f32.mrb[0].mxu0
        %2846 = vmatprep.mubr.bf16.mxu0 %v1047
        %2847 = vmatmul.mubr.bf16.gmra.mrb[0].mxu0 %v1046
        %v2848 = vpop.f32.mrb[0].mxu0
        %v2849 = vadd.f32 %v2717, %v2848
        %v2850 = vpop.f32.mrb[0].mxu0
        %v2851 = vpop.f32.mrb[0].mxu0
        %v2852 = vadd.f32 %v2717, %v2851
        %v2853 = vpop.f32.mrb[0].mxu0
        %2854 = vmatprep.mubr.bf16.mxu0 %v1049
        %2855 = vmatmul.mubr.bf16.gmra.mrb[0].mxu0 %v1048
        %v2856 = vpop.f32.mrb[0].mxu0
        %v2857 = vadd.f32 %v2717, %v2856
        %v2858 = vpop.f32.mrb[0].mxu0
        %v2859 = vpop.f32.mrb[0].mxu0
        %v2860 = vadd.f32 %v2717, %v2859
        %v2861 = vpop.f32.mrb[0].mxu0
        %2862 = vmatprep.mubr.bf16.mxu0 %v1051
        %2863 = vmatmul.mubr.bf16.gmra.mrb[0].mxu0 %v1050
        %v2864 = vpop.f32.mrb[0].mxu0
        %v2865 = vadd.f32 %v2717, %v2864
        %v2866 = vpop.f32.mrb[0].mxu0
        %v2867 = vpop.f32.mrb[0].mxu0
        %v2868 = vadd.f32 %v2717, %v2867
        %v2869 = vpop.f32.mrb[0].mxu0
        %2870 = vmatprep.mubr.bf16.mxu0 %v1053
        %2871 = vmatmul.mubr.bf16.gmra.mrb[0].mxu0 %v1052
        %v2872 = vpop.f32.mrb[0].mxu0
        %v2873 = vadd.f32 %v2717, %v2872
        %v2874 = vpop.f32.mrb[0].mxu0
        %v2875 = vpop.f32.mrb[0].mxu0
        %v2876 = vadd.f32 %v2717, %v2875
        %v2877 = vpop.f32.mrb[0].mxu0
        %2878 = vdwg.mxu0
        %v2879 = vmax.f32 %v2753, 0.0
        %v2880 = vmax.f32 %v2756, 0.0
        %v2881 = vmax.f32 %v2761, 0.0
        %v2882 = vmax.f32 %v2764, 0.0
        %v2883 = vmax.f32 %v2769, 0.0
        %v2884 = vmax.f32 %v2772, 0.0
        %v2885 = vmax.f32 %v2777, 0.0
        %v2886 = vmax.f32 %v2780, 0.0
        %v2887 = vmax.f32 %v2785, 0.0
        %v2888 = vmax.f32 %v2788, 0.0
        %v2889 = vmax.f32 %v2793, 0.0
        %v2890 = vmax.f32 %v2796, 0.0
        %v2891 = vmax.f32 %v2801, 0.0
        %v2892 = vmax.f32 %v2804, 0.0
        %v2893 = vmax.f32 %v2809, 0.0
        %v2894 = vmax.f32 %v2812, 0.0
        %v2895 = vmax.f32 %v2817, 0.0
        %v2896 = vmax.f32 %v2820, 0.0
        %v2897 = vmax.f32 %v2825, 0.0
        %v2898 = vmax.f32 %v2828, 0.0
        %v2899 = vmax.f32 %v2833, 0.0
        %v2900 = vmax.f32 %v2836, 0.0
        %v2901 = vmax.f32 %v2841, 0.0
        %v2902 = vmax.f32 %v2844, 0.0
        %v2903 = vmax.f32 %v2849, 0.0
        %v2904 = vmax.f32 %v2852, 0.0
        %v2905 = vmax.f32 %v2857, 0.0
        %v2906 = vmax.f32 %v2860, 0.0
        %v2907 = vmax.f32 %v2865, 0.0
        %v2908 = vmax.f32 %v2868, 0.0
        %v2909 = vmax.f32 %v2873, 0.0
        %v2910 = vmax.f32 %v2876, 0.0
        %2911 = vmatprep.subr.mxu0 0.0
        %2912 = vmatpush1.msra.mxu0 %v2879
        %2913 = vmatprep.subr.mxu0 0.0
        %2914 = vmatpush1.msra.mxu0 %v2880
        %2915 = vmatprep.subr.mxu0 0.0
        %2916 = vmatpush1.msra.mxu0 %v2881
        %2917 = vmatprep.subr.mxu0 0.0
        %2918 = vmatpush1.msra.mxu0 %v2882
        %2919 = vmatprep.subr.mxu0 0.0
        %2920 = vmatpush1.msra.mxu0 %v2883
        %2921 = vmatprep.subr.mxu0 0.0
        %2922 = vmatpush1.msra.mxu0 %v2884
        %2923 = vmatprep.subr.mxu0 0.0
        %2924 = vmatpush1.msra.mxu0 %v2885
        %2925 = vmatprep.subr.mxu0 0.0
        %2926 = vmatpush1.msra.mxu0 %v2886
        %2927 = vmatprep.subr.mxu0 0.0
        %2928 = vmatpush1.msra.mxu0 %v2887
        %2929 = vmatprep.subr.mxu0 0.0
        %2930 = vmatpush1.msra.mxu0 %v2888
        %2931 = vmatprep.subr.mxu0 0.0
        %2932 = vmatpush1.msra.mxu0 %v2889
        %2933 = vmatprep.subr.mxu0 0.0
        %2934 = vmatpush1.msra.mxu0 %v2890
        %2935 = vmatprep.subr.mxu0 0.0
        %2936 = vmatpush1.msra.mxu0 %v2891
        %2937 = vmatprep.subr.mxu0 0.0
        %2938 = vmatpush1.msra.mxu0 %v2892
        %2939 = vmatprep.subr.mxu0 0.0
        %2940 = vmatpush1.msra.mxu0 %v2893
        %2941 = vmatprep.subr.mxu0 0.0
        %2942 = vmatpush1.msra.mxu0 %v2894
        %2943 = vmatprep.subr.mxu0 0.0
        %2944 = vmatpush1.msra.mxu0 %v2895
        %2945 = vmatprep.subr.mxu0 0.0
        %2946 = vmatpush1.msra.mxu0 %v2896
        %2947 = vmatprep.subr.mxu0 0.0
        %2948 = vmatpush1.msra.mxu0 %v2897
        %2949 = vmatprep.subr.mxu0 0.0
        %2950 = vmatpush1.msra.mxu0 %v2898
        %2951 = vmatprep.subr.mxu0 0.0
        %2952 = vmatpush1.msra.mxu0 %v2899
        %2953 = vmatprep.subr.mxu0 0.0
        %2954 = vmatpush1.msra.mxu0 %v2900
        %2955 = vmatprep.subr.mxu0 0.0
        %2956 = vmatpush1.msra.mxu0 %v2901
        %2957 = vmatprep.subr.mxu0 0.0
        %2958 = vmatpush1.msra.mxu0 %v2902
        %2959 = vmatprep.subr.mxu0 0.0
        %2960 = vmatpush1.msra.mxu0 %v2903
        %2961 = vmatprep.subr.mxu0 0.0
        %2962 = vmatpush1.msra.mxu0 %v2904
        %2963 = vmatprep.subr.mxu0 0.0
        %2964 = vmatpush1.msra.mxu0 %v2905
        %2965 = vmatprep.subr.mxu0 0.0
        %2966 = vmatpush1.msra.mxu0 %v2906
        %2967 = vmatprep.subr.mxu0 0.0
        %2968 = vmatpush1.msra.mxu0 %v2907
        %2969 = vmatprep.subr.mxu0 0.0
        %2970 = vmatpush1.msra.mxu0 %v2908
        %2971 = vmatprep.subr.mxu0 0.0
        %2972 = vmatpush1.msra.mxu0 %v2909
        %2973 = vmatprep.subr.mxu0 0.0
        %2974 = vmatpush1.msra.mxu0 %v2910
        %2975 = vmatprep.mubr.f32.mxu0 %v1055
        %2976 = vmatmul.mubr.f32.gmra.mrb[0].mxu0 %v1054
        %v2977 = vpop.f32.mrb[0].mxu0
        %v2978 = vadd.f32 0.0, %v2977
        %v2979 = vpop.f32.mrb[0].mxu0
        %2980 = vdwg.mxu0
        %v2981 = vmul.f32 %v2978, 0.03125
        %v2982 = vmul.f32 %v2879, %v2879
        %v2983 = vmul.f32 %v2880, %v2880
        %v2984 = vmul.f32 %v2881, %v2881
        %v2985 = vmul.f32 %v2882, %v2882
        %v2986 = vmul.f32 %v2883, %v2883
        %v2987 = vmul.f32 %v2884, %v2884
        %v2988 = vmul.f32 %v2885, %v2885
        %v2989 = vmul.f32 %v2886, %v2886
        %v2990 = vmul.f32 %v2887, %v2887
        %v2991 = vmul.f32 %v2888, %v2888
        %v2992 = vmul.f32 %v2889, %v2889
        %v2993 = vmul.f32 %v2890, %v2890
        %v2994 = vmul.f32 %v2891, %v2891
        %v2995 = vmul.f32 %v2892, %v2892
        %v2996 = vmul.f32 %v2893, %v2893
        %v2997 = vmul.f32 %v2894, %v2894
        %v2998 = vmul.f32 %v2895, %v2895
        %v2999 = vmul.f32 %v2896, %v2896
        %v3000 = vmul.f32 %v2897, %v2897
        %v3001 = vmul.f32 %v2898, %v2898
        %v3002 = vmul.f32 %v2899, %v2899
        %v3003 = vmul.f32 %v2900, %v2900
        %v3004 = vmul.f32 %v2901, %v2901
        %v3005 = vmul.f32 %v2902, %v2902
        %v3006 = vmul.f32 %v2903, %v2903
        %v3007 = vmul.f32 %v2904, %v2904
        %v3008 = vmul.f32 %v2905, %v2905
        %v3009 = vmul.f32 %v2906, %v2906
        %v3010 = vmul.f32 %v2907, %v2907
        %v3011 = vmul.f32 %v2908, %v2908
        %v3012 = vmul.f32 %v2909, %v2909
        %v3013 = vmul.f32 %v2910, %v2910
        %3014 = vmatprep.subr.mxu0 0.0
        %3015 = vmatpush1.msra.mxu0 %v2982
        %3016 = vmatprep.subr.mxu0 0.0
        %3017 = vmatpush1.msra.mxu0 %v2983
        %3018 = vmatprep.subr.mxu0 0.0
        %3019 = vmatpush1.msra.mxu0 %v2984
        %3020 = vmatprep.subr.mxu0 0.0
        %3021 = vmatpush1.msra.mxu0 %v2985
        %3022 = vmatprep.subr.mxu0 0.0
        %3023 = vmatpush1.msra.mxu0 %v2986
        %3024 = vmatprep.subr.mxu0 0.0
        %3025 = vmatpush1.msra.mxu0 %v2987
        %3026 = vmatprep.subr.mxu0 0.0
        %3027 = vmatpush1.msra.mxu0 %v2988
        %3028 = vmatprep.subr.mxu0 0.0
        %3029 = vmatpush1.msra.mxu0 %v2989
        %3030 = vmatprep.subr.mxu0 0.0
        %3031 = vmatpush1.msra.mxu0 %v2990
        %3032 = vmatprep.subr.mxu0 0.0
        %3033 = vmatpush1.msra.mxu0 %v2991
        %3034 = vmatprep.subr.mxu0 0.0
        %3035 = vmatpush1.msra.mxu0 %v2992
        %3036 = vmatprep.subr.mxu0 0.0
        %3037 = vmatpush1.msra.mxu0 %v2993
        %3038 = vmatprep.subr.mxu0 0.0
        %3039 = vmatpush1.msra.mxu0 %v2994
        %3040 = vmatprep.subr.mxu0 0.0
        %3041 = vmatpush1.msra.mxu0 %v2995
        %3042 = vmatprep.subr.mxu0 0.0
        %3043 = vmatpush1.msra.mxu0 %v2996
        %3044 = vmatprep.subr.mxu0 0.0
        %3045 = vmatpush1.msra.mxu0 %v2997
        %3046 = vmatprep.subr.mxu0 0.0
        %3047 = vmatpush1.msra.mxu0 %v2998
        %3048 = vmatprep.subr.mxu0 0.0
        %3049 = vmatpush1.msra.mxu0 %v2999
        %3050 = vmatprep.subr.mxu0 0.0
        %3051 = vmatpush1.msra.mxu0 %v3000
        %3052 = vmatprep.subr.mxu0 0.0
        %3053 = vmatpush1.msra.mxu0 %v3001
        %3054 = vmatprep.subr.mxu0 0.0
        %3055 = vmatpush1.msra.mxu0 %v3002
        %3056 = vmatprep.subr.mxu0 0.0
        %3057 = vmatpush1.msra.mxu0 %v3003
        %3058 = vmatprep.subr.mxu0 0.0
        %3059 = vmatpush1.msra.mxu0 %v3004
        %3060 = vmatprep.subr.mxu0 0.0
        %3061 = vmatpush1.msra.mxu0 %v3005
        %3062 = vmatprep.subr.mxu0 0.0
        %3063 = vmatpush1.msra.mxu0 %v3006
        %3064 = vmatprep.subr.mxu0 0.0
        %3065 = vmatpush1.msra.mxu0 %v3007
        %3066 = vmatprep.subr.mxu0 0.0
        %3067 = vmatpush1.msra.mxu0 %v3008
        %3068 = vmatprep.subr.mxu0 0.0
        %3069 = vmatpush1.msra.mxu0 %v3009
        %3070 = vmatprep.subr.mxu0 0.0
        %3071 = vmatpush1.msra.mxu0 %v3010
        %3072 = vmatprep.subr.mxu0 0.0
        %3073 = vmatpush1.msra.mxu0 %v3011
        %3074 = vmatprep.subr.mxu0 0.0
        %3075 = vmatpush1.msra.mxu0 %v3012
        %3076 = vmatprep.subr.mxu0 0.0
        %3077 = vmatpush1.msra.mxu0 %v3013
        %3078 = vmatprep.mubr.f32.mxu0 %v1055
        %3079 = vmatmul.mubr.f32.gmra.mrb[0].mxu0 %v1054
        %v3080 = vpop.f32.mrb[0].mxu0
        %v3081 = vadd.f32 0.0, %v3080
        %v3082 = vpop.f32.mrb[0].mxu0
        %3083 = vdwg.mxu0
        %v3084 = vmul.f32 %v3081, 0.03125
        %v3085 = vmul.f32 %v2981, %v2981
        %v3086 = vsub.f32 %v3084, %v3085
        %v3087 = vmax.f32 %v3086, 0.0
        %v3088 = vadd.f32 %v3087, 1e-05
        %v3089 = vrsqrt.pop %v3088
        %v3090 = vlaneseq
        %v3091 = vshrl.u32 %v3090, 7
        %v3092 = vsub.s32 4, %v3091
        %v3093 = vrot.slane %v1088, %v3092
        %v3094 = vmul.f32 %v3093, %v3089
        %v3095 = vmul.f32 %v2981, %v3094
        %v3096 = vlaneseq
        %v3097 = vshrl.u32 %v3096, 7
        %v3098 = vsub.s32 5, %v3097
        %v3099 = vrot.slane %v1088, %v3098
        %v3100 = vsub.f32 %v3099, %v3095
        %3101 = vmatprep.subr.mxu0 0.0
        %3102 = vmatpush1.msra.mxu0 %v3094
        %3103 = vmatprep.subr.mxu0 0.0
        %3104 = vmatpush1.msra.mxu0 0.0
        %3105 = vmatprep.subr.mxu0 0.0
        %3106 = vmatpush1.msra.mxu0 0.0
        %3107 = vmatprep.subr.mxu0 0.0
        %3108 = vmatpush1.msra.mxu0 0.0
        %3109 = vmatprep.subr.mxu0 0.0
        %3110 = vmatpush1.msra.mxu0 0.0
        %3111 = vmatprep.subr.mxu0 0.0
        %3112 = vmatpush1.msra.mxu0 0.0
        %3113 = vmatprep.subr.mxu0 0.0
        %3114 = vmatpush1.msra.mxu0 0.0
        %3115 = vmatprep.subr.mxu0 0.0
        %3116 = vmatpush1.msra.mxu0 0.0
        %3117 = vmatprep.subr.mxu0 0.0
        %3118 = vmatpush1.msra.mxu0 0.0
        %3119 = vmatprep.subr.mxu0 0.0
        %3120 = vmatpush1.msra.mxu0 0.0
        %3121 = vmatprep.subr.mxu0 0.0
        %3122 = vmatpush1.msra.mxu0 0.0
        %3123 = vmatprep.subr.mxu0 0.0
        %3124 = vmatpush1.msra.mxu0 0.0
        %3125 = vmatprep.subr.mxu0 0.0
        %3126 = vmatpush1.msra.mxu0 0.0
        %3127 = vmatprep.subr.mxu0 0.0
        %3128 = vmatpush1.msra.mxu0 0.0
        %3129 = vmatprep.subr.mxu0 0.0
        %3130 = vmatpush1.msra.mxu0 0.0
        %3131 = vmatprep.subr.mxu0 0.0
        %3132 = vmatpush1.msra.mxu0 0.0
        %3133 = vmatprep.subr.mxu0 0.0
        %3134 = vmatpush1.msra.mxu0 0.0
        %3135 = vmatprep.subr.mxu0 0.0
        %3136 = vmatpush1.msra.mxu0 0.0
        %3137 = vmatprep.subr.mxu0 0.0
        %3138 = vmatpush1.msra.mxu0 0.0
        %3139 = vmatprep.subr.mxu0 0.0
        %3140 = vmatpush1.msra.mxu0 0.0
        %3141 = vmatprep.subr.mxu0 0.0
        %3142 = vmatpush1.msra.mxu0 0.0
        %3143 = vmatprep.subr.mxu0 0.0
        %3144 = vmatpush1.msra.mxu0 0.0
        %3145 = vmatprep.subr.mxu0 0.0
        %3146 = vmatpush1.msra.mxu0 0.0
        %3147 = vmatprep.subr.mxu0 0.0
        %3148 = vmatpush1.msra.mxu0 0.0
        %3149 = vmatprep.subr.mxu0 0.0
        %3150 = vmatpush1.msra.mxu0 0.0
        %3151 = vmatprep.subr.mxu0 0.0
        %3152 = vmatpush1.msra.mxu0 0.0
        %3153 = vmatprep.subr.mxu0 0.0
        %3154 = vmatpush1.msra.mxu0 0.0
        %3155 = vmatprep.subr.mxu0 0.0
        %3156 = vmatpush1.msra.mxu0 0.0
        %3157 = vmatprep.subr.mxu0 0.0
        %3158 = vmatpush1.msra.mxu0 0.0
        %3159 = vmatprep.subr.mxu0 0.0
        %3160 = vmatpush1.msra.mxu0 0.0
        %3161 = vmatprep.subr.mxu0 0.0
        %3162 = vmatpush1.msra.mxu0 0.0
        %3163 = vmatprep.subr.mxu0 0.0
        %3164 = vmatpush1.msra.mxu0 0.0
        %3165 = vmatprep.mubr.f32.mxu0 0.0
        %3166 = vmatmul.mubr.f32.gmra.mrb[0].mxu0 %v1848
        %v3167 = vpop.f32.mrb[0].mxu0
        %v3168 = vadd.f32 0.0, %v3167
        %v3169 = vpop.f32.mrb[0].mxu0
        %3170 = vmatprep.mubr.f32.mxu0 0.0
        %3171 = vmatmul.mubr.f32.gmra.mrb[0].mxu0 %v1851
        %v3172 = vpop.f32.mrb[0].mxu0
        %v3173 = vadd.f32 0.0, %v3172
        %v3174 = vpop.f32.mrb[0].mxu0
        %3175 = vmatprep.mubr.f32.mxu0 0.0
        %3176 = vmatmul.mubr.f32.gmra.mrb[0].mxu0 %v1854
        %v3177 = vpop.f32.mrb[0].mxu0
        %v3178 = vadd.f32 0.0, %v3177
        %v3179 = vpop.f32.mrb[0].mxu0
        %3180 = vmatprep.mubr.f32.mxu0 0.0
        %3181 = vmatmul.mubr.f32.gmra.mrb[0].mxu0 %v1857
        %v3182 = vpop.f32.mrb[0].mxu0
        %v3183 = vadd.f32 0.0, %v3182
        %v3184 = vpop.f32.mrb[0].mxu0
        %3185 = vmatprep.mubr.f32.mxu0 0.0
        %3186 = vmatmul.mubr.f32.gmra.mrb[0].mxu0 %v1860
        %v3187 = vpop.f32.mrb[0].mxu0
        %v3188 = vadd.f32 0.0, %v3187
        %v3189 = vpop.f32.mrb[0].mxu0
        %3190 = vmatprep.mubr.f32.mxu0 0.0
        %3191 = vmatmul.mubr.f32.gmra.mrb[0].mxu0 %v1863
        %v3192 = vpop.f32.mrb[0].mxu0
        %v3193 = vadd.f32 0.0, %v3192
        %v3194 = vpop.f32.mrb[0].mxu0
        %3195 = vmatprep.mubr.f32.mxu0 0.0
        %3196 = vmatmul.mubr.f32.gmra.mrb[0].mxu0 %v1866
        %v3197 = vpop.f32.mrb[0].mxu0
        %v3198 = vadd.f32 0.0, %v3197
        %v3199 = vpop.f32.mrb[0].mxu0
        %3200 = vmatprep.mubr.f32.mxu0 0.0
        %3201 = vmatmul.mubr.f32.gmra.mrb[0].mxu0 %v1869
        %v3202 = vpop.f32.mrb[0].mxu0
        %v3203 = vadd.f32 0.0, %v3202
        %v3204 = vpop.f32.mrb[0].mxu0
        %3205 = vmatprep.mubr.f32.mxu0 0.0
        %3206 = vmatmul.mubr.f32.gmra.mrb[0].mxu0 %v1872
        %v3207 = vpop.f32.mrb[0].mxu0
        %v3208 = vadd.f32 0.0, %v3207
        %v3209 = vpop.f32.mrb[0].mxu0
        %3210 = vmatprep.mubr.f32.mxu0 0.0
        %3211 = vmatmul.mubr.f32.gmra.mrb[0].mxu0 %v1875
        %v3212 = vpop.f32.mrb[0].mxu0
        %v3213 = vadd.f32 0.0, %v3212
        %v3214 = vpop.f32.mrb[0].mxu0
        %3215 = vmatprep.mubr.f32.mxu0 0.0
        %3216 = vmatmul.mubr.f32.gmra.mrb[0].mxu0 %v1878
        %v3217 = vpop.f32.mrb[0].mxu0
        %v3218 = vadd.f32 0.0, %v3217
        %v3219 = vpop.f32.mrb[0].mxu0
        %3220 = vmatprep.mubr.f32.mxu0 0.0
        %3221 = vmatmul.mubr.f32.gmra.mrb[0].mxu0 %v1881
        %v3222 = vpop.f32.mrb[0].mxu0
        %v3223 = vadd.f32 0.0, %v3222
        %v3224 = vpop.f32.mrb[0].mxu0
        %3225 = vmatprep.mubr.f32.mxu0 0.0
        %3226 = vmatmul.mubr.f32.gmra.mrb[0].mxu0 %v1884
        %v3227 = vpop.f32.mrb[0].mxu0
        %v3228 = vadd.f32 0.0, %v3227
        %v3229 = vpop.f32.mrb[0].mxu0
        %3230 = vmatprep.mubr.f32.mxu0 0.0
        %3231 = vmatmul.mubr.f32.gmra.mrb[0].mxu0 %v1887
        %v3232 = vpop.f32.mrb[0].mxu0
        %v3233 = vadd.f32 0.0, %v3232
        %v3234 = vpop.f32.mrb[0].mxu0
        %3235 = vmatprep.mubr.f32.mxu0 0.0
        %3236 = vmatmul.mubr.f32.gmra.mrb[0].mxu0 %v1890
        %v3237 = vpop.f32.mrb[0].mxu0
        %v3238 = vadd.f32 0.0, %v3237
        %v3239 = vpop.f32.mrb[0].mxu0
        %3240 = vmatprep.mubr.f32.mxu0 0.0
        %3241 = vmatmul.mubr.f32.gmra.mrb[0].mxu0 %v1893
        %v3242 = vpop.f32.mrb[0].mxu0
        %v3243 = vadd.f32 0.0, %v3242
        %v3244 = vpop.f32.mrb[0].mxu0
        %3245 = vmatprep.mubr.f32.mxu0 0.0
        %3246 = vmatmul.mubr.f32.gmra.mrb[0].mxu0 %v1896
        %v3247 = vpop.f32.mrb[0].mxu0
        %v3248 = vadd.f32 0.0, %v3247
        %v3249 = vpop.f32.mrb[0].mxu0
        %3250 = vmatprep.mubr.f32.mxu0 0.0
        %3251 = vmatmul.mubr.f32.gmra.mrb[0].mxu0 %v1899
        %v3252 = vpop.f32.mrb[0].mxu0
        %v3253 = vadd.f32 0.0, %v3252
        %v3254 = vpop.f32.mrb[0].mxu0
        %3255 = vmatprep.mubr.f32.mxu0 0.0
        %3256 = vmatmul.mubr.f32.gmra.mrb[0].mxu0 %v1902
        %v3257 = vpop.f32.mrb[0].mxu0
        %v3258 = vadd.f32 0.0, %v3257
        %v3259 = vpop.f32.mrb[0].mxu0
        %3260 = vmatprep.mubr.f32.mxu0 0.0
        %3261 = vmatmul.mubr.f32.gmra.mrb[0].mxu0 %v1905
        %v3262 = vpop.f32.mrb[0].mxu0
        %v3263 = vadd.f32 0.0, %v3262
        %v3264 = vpop.f32.mrb[0].mxu0
        %3265 = vmatprep.mubr.f32.mxu0 0.0
        %3266 = vmatmul.mubr.f32.gmra.mrb[0].mxu0 %v1908
        %v3267 = vpop.f32.mrb[0].mxu0
        %v3268 = vadd.f32 0.0, %v3267
        %v3269 = vpop.f32.mrb[0].mxu0
        %3270 = vmatprep.mubr.f32.mxu0 0.0
        %3271 = vmatmul.mubr.f32.gmra.mrb[0].mxu0 %v1911
        %v3272 = vpop.f32.mrb[0].mxu0
        %v3273 = vadd.f32 0.0, %v3272
        %v3274 = vpop.f32.mrb[0].mxu0
        %3275 = vmatprep.mubr.f32.mxu0 0.0
        %3276 = vmatmul.mubr.f32.gmra.mrb[0].mxu0 %v1914
        %v3277 = vpop.f32.mrb[0].mxu0
        %v3278 = vadd.f32 0.0, %v3277
        %v3279 = vpop.f32.mrb[0].mxu0
        %3280 = vmatprep.mubr.f32.mxu0 0.0
        %3281 = vmatmul.mubr.f32.gmra.mrb[0].mxu0 %v1917
        %v3282 = vpop.f32.mrb[0].mxu0
        %v3283 = vadd.f32 0.0, %v3282
        %v3284 = vpop.f32.mrb[0].mxu0
        %3285 = vmatprep.mubr.f32.mxu0 0.0
        %3286 = vmatmul.mubr.f32.gmra.mrb[0].mxu0 %v1920
        %v3287 = vpop.f32.mrb[0].mxu0
        %v3288 = vadd.f32 0.0, %v3287
        %v3289 = vpop.f32.mrb[0].mxu0
        %3290 = vmatprep.mubr.f32.mxu0 0.0
        %3291 = vmatmul.mubr.f32.gmra.mrb[0].mxu0 %v1923
        %v3292 = vpop.f32.mrb[0].mxu0
        %v3293 = vadd.f32 0.0, %v3292
        %v3294 = vpop.f32.mrb[0].mxu0
        %3295 = vmatprep.mubr.f32.mxu0 0.0
        %3296 = vmatmul.mubr.f32.gmra.mrb[0].mxu0 %v1926
        %v3297 = vpop.f32.mrb[0].mxu0
        %v3298 = vadd.f32 0.0, %v3297
        %v3299 = vpop.f32.mrb[0].mxu0
        %3300 = vmatprep.mubr.f32.mxu0 0.0
        %3301 = vmatmul.mubr.f32.gmra.mrb[0].mxu0 %v1929
        %v3302 = vpop.f32.mrb[0].mxu0
        %v3303 = vadd.f32 0.0, %v3302
        %v3304 = vpop.f32.mrb[0].mxu0
        %3305 = vmatprep.mubr.f32.mxu0 0.0
        %3306 = vmatmul.mubr.f32.gmra.mrb[0].mxu0 %v1932
        %v3307 = vpop.f32.mrb[0].mxu0
        %v3308 = vadd.f32 0.0, %v3307
        %v3309 = vpop.f32.mrb[0].mxu0
        %3310 = vmatprep.mubr.f32.mxu0 0.0
        %3311 = vmatmul.mubr.f32.gmra.mrb[0].mxu0 %v1935
        %v3312 = vpop.f32.mrb[0].mxu0
        %v3313 = vadd.f32 0.0, %v3312
        %v3314 = vpop.f32.mrb[0].mxu0
        %3315 = vmatprep.mubr.f32.mxu0 0.0
        %3316 = vmatmul.mubr.f32.gmra.mrb[0].mxu0 %v1938
        %v3317 = vpop.f32.mrb[0].mxu0
        %v3318 = vadd.f32 0.0, %v3317
        %v3319 = vpop.f32.mrb[0].mxu0
        %3320 = vmatprep.mubr.f32.mxu0 0.0
        %3321 = vmatmul.mubr.f32.gmra.mrb[0].mxu0 %v1941
        %v3322 = vpop.f32.mrb[0].mxu0
        %v3323 = vadd.f32 0.0, %v3322
        %v3324 = vpop.f32.mrb[0].mxu0
        %3325 = vdwg.mxu0
        %3326 = vmatprep.subr.mxu0 0.0
        %3327 = vmatpush1.msra.mxu0 %v3100
        %3328 = vmatprep.subr.mxu0 0.0
        %3329 = vmatpush1.msra.mxu0 0.0
        %3330 = vmatprep.subr.mxu0 0.0
        %3331 = vmatpush1.msra.mxu0 0.0
        %3332 = vmatprep.subr.mxu0 0.0
        %3333 = vmatpush1.msra.mxu0 0.0
        %3334 = vmatprep.subr.mxu0 0.0
        %3335 = vmatpush1.msra.mxu0 0.0
        %3336 = vmatprep.subr.mxu0 0.0
        %3337 = vmatpush1.msra.mxu0 0.0
        %3338 = vmatprep.subr.mxu0 0.0
        %3339 = vmatpush1.msra.mxu0 0.0
        %3340 = vmatprep.subr.mxu0 0.0
        %3341 = vmatpush1.msra.mxu0 0.0
        %3342 = vmatprep.subr.mxu0 0.0
        %3343 = vmatpush1.msra.mxu0 0.0
        %3344 = vmatprep.subr.mxu0 0.0
        %3345 = vmatpush1.msra.mxu0 0.0
        %3346 = vmatprep.subr.mxu0 0.0
        %3347 = vmatpush1.msra.mxu0 0.0
        %3348 = vmatprep.subr.mxu0 0.0
        %3349 = vmatpush1.msra.mxu0 0.0
        %3350 = vmatprep.subr.mxu0 0.0
        %3351 = vmatpush1.msra.mxu0 0.0
        %3352 = vmatprep.subr.mxu0 0.0
        %3353 = vmatpush1.msra.mxu0 0.0
        %3354 = vmatprep.subr.mxu0 0.0
        %3355 = vmatpush1.msra.mxu0 0.0
        %3356 = vmatprep.subr.mxu0 0.0
        %3357 = vmatpush1.msra.mxu0 0.0
        %3358 = vmatprep.subr.mxu0 0.0
        %3359 = vmatpush1.msra.mxu0 0.0
        %3360 = vmatprep.subr.mxu0 0.0
        %3361 = vmatpush1.msra.mxu0 0.0
        %3362 = vmatprep.subr.mxu0 0.0
        %3363 = vmatpush1.msra.mxu0 0.0
        %3364 = vmatprep.subr.mxu0 0.0
        %3365 = vmatpush1.msra.mxu0 0.0
        %3366 = vmatprep.subr.mxu0 0.0
        %3367 = vmatpush1.msra.mxu0 0.0
        %3368 = vmatprep.subr.mxu0 0.0
        %3369 = vmatpush1.msra.mxu0 0.0
        %3370 = vmatprep.subr.mxu0 0.0
        %3371 = vmatpush1.msra.mxu0 0.0
        %3372 = vmatprep.subr.mxu0 0.0
        %3373 = vmatpush1.msra.mxu0 0.0
        %3374 = vmatprep.subr.mxu0 0.0
        %3375 = vmatpush1.msra.mxu0 0.0
        %3376 = vmatprep.subr.mxu0 0.0
        %3377 = vmatpush1.msra.mxu0 0.0
        %3378 = vmatprep.subr.mxu0 0.0
        %3379 = vmatpush1.msra.mxu0 0.0
        %3380 = vmatprep.subr.mxu0 0.0
        %3381 = vmatpush1.msra.mxu0 0.0
        %3382 = vmatprep.subr.mxu0 0.0
        %3383 = vmatpush1.msra.mxu0 0.0
        %3384 = vmatprep.subr.mxu0 0.0
        %3385 = vmatpush1.msra.mxu0 0.0
        %3386 = vmatprep.subr.mxu0 0.0
        %3387 = vmatpush1.msra.mxu0 0.0
        %3388 = vmatprep.subr.mxu0 0.0
        %3389 = vmatpush1.msra.mxu0 0.0
        %3390 = vmatprep.mubr.f32.mxu0 0.0
        %3391 = vmatmul.mubr.f32.gmra.mrb[0].mxu0 %v1848
        %v3392 = vpop.f32.mrb[0].mxu0
        %v3393 = vadd.f32 0.0, %v3392
        %v3394 = vpop.f32.mrb[0].mxu0
        %3395 = vmatprep.mubr.f32.mxu0 0.0
        %3396 = vmatmul.mubr.f32.gmra.mrb[0].mxu0 %v1851
        %v3397 = vpop.f32.mrb[0].mxu0
        %v3398 = vadd.f32 0.0, %v3397
        %v3399 = vpop.f32.mrb[0].mxu0
        %3400 = vmatprep.mubr.f32.mxu0 0.0
        %3401 = vmatmul.mubr.f32.gmra.mrb[0].mxu0 %v1854
        %v3402 = vpop.f32.mrb[0].mxu0
        %v3403 = vadd.f32 0.0, %v3402
        %v3404 = vpop.f32.mrb[0].mxu0
        %3405 = vmatprep.mubr.f32.mxu0 0.0
        %3406 = vmatmul.mubr.f32.gmra.mrb[0].mxu0 %v1857
        %v3407 = vpop.f32.mrb[0].mxu0
        %v3408 = vadd.f32 0.0, %v3407
        %v3409 = vpop.f32.mrb[0].mxu0
        %3410 = vmatprep.mubr.f32.mxu0 0.0
        %3411 = vmatmul.mubr.f32.gmra.mrb[0].mxu0 %v1860
        %v3412 = vpop.f32.mrb[0].mxu0
        %v3413 = vadd.f32 0.0, %v3412
        %v3414 = vpop.f32.mrb[0].mxu0
        %3415 = vmatprep.mubr.f32.mxu0 0.0
        %3416 = vmatmul.mubr.f32.gmra.mrb[0].mxu0 %v1863
        %v3417 = vpop.f32.mrb[0].mxu0
        %v3418 = vadd.f32 0.0, %v3417
        %v3419 = vpop.f32.mrb[0].mxu0
        %3420 = vmatprep.mubr.f32.mxu0 0.0
        %3421 = vmatmul.mubr.f32.gmra.mrb[0].mxu0 %v1866
        %v3422 = vpop.f32.mrb[0].mxu0
        %v3423 = vadd.f32 0.0, %v3422
        %v3424 = vpop.f32.mrb[0].mxu0
        %3425 = vmatprep.mubr.f32.mxu0 0.0
        %3426 = vmatmul.mubr.f32.gmra.mrb[0].mxu0 %v1869
        %v3427 = vpop.f32.mrb[0].mxu0
        %v3428 = vadd.f32 0.0, %v3427
        %v3429 = vpop.f32.mrb[0].mxu0
        %3430 = vmatprep.mubr.f32.mxu0 0.0
        %3431 = vmatmul.mubr.f32.gmra.mrb[0].mxu0 %v1872
        %v3432 = vpop.f32.mrb[0].mxu0
        %v3433 = vadd.f32 0.0, %v3432
        %v3434 = vpop.f32.mrb[0].mxu0
        %3435 = vmatprep.mubr.f32.mxu0 0.0
        %3436 = vmatmul.mubr.f32.gmra.mrb[0].mxu0 %v1875
        %v3437 = vpop.f32.mrb[0].mxu0
        %v3438 = vadd.f32 0.0, %v3437
        %v3439 = vpop.f32.mrb[0].mxu0
        %3440 = vmatprep.mubr.f32.mxu0 0.0
        %3441 = vmatmul.mubr.f32.gmra.mrb[0].mxu0 %v1878
        %v3442 = vpop.f32.mrb[0].mxu0
        %v3443 = vadd.f32 0.0, %v3442
        %v3444 = vpop.f32.mrb[0].mxu0
        %3445 = vmatprep.mubr.f32.mxu0 0.0
        %3446 = vmatmul.mubr.f32.gmra.mrb[0].mxu0 %v1881
        %v3447 = vpop.f32.mrb[0].mxu0
        %v3448 = vadd.f32 0.0, %v3447
        %v3449 = vpop.f32.mrb[0].mxu0
        %3450 = vmatprep.mubr.f32.mxu0 0.0
        %3451 = vmatmul.mubr.f32.gmra.mrb[0].mxu0 %v1884
        %v3452 = vpop.f32.mrb[0].mxu0
        %v3453 = vadd.f32 0.0, %v3452
        %v3454 = vpop.f32.mrb[0].mxu0
        %3455 = vmatprep.mubr.f32.mxu0 0.0
        %3456 = vmatmul.mubr.f32.gmra.mrb[0].mxu0 %v1887
        %v3457 = vpop.f32.mrb[0].mxu0
        %v3458 = vadd.f32 0.0, %v3457
        %v3459 = vpop.f32.mrb[0].mxu0
        %3460 = vmatprep.mubr.f32.mxu0 0.0
        %3461 = vmatmul.mubr.f32.gmra.mrb[0].mxu0 %v1890
        %v3462 = vpop.f32.mrb[0].mxu0
        %v3463 = vadd.f32 0.0, %v3462
        %v3464 = vpop.f32.mrb[0].mxu0
        %3465 = vmatprep.mubr.f32.mxu0 0.0
        %3466 = vmatmul.mubr.f32.gmra.mrb[0].mxu0 %v1893
        %v3467 = vpop.f32.mrb[0].mxu0
        %v3468 = vadd.f32 0.0, %v3467
        %v3469 = vpop.f32.mrb[0].mxu0
        %3470 = vmatprep.mubr.f32.mxu0 0.0
        %3471 = vmatmul.mubr.f32.gmra.mrb[0].mxu0 %v1896
        %v3472 = vpop.f32.mrb[0].mxu0
        %v3473 = vadd.f32 0.0, %v3472
        %v3474 = vpop.f32.mrb[0].mxu0
        %3475 = vmatprep.mubr.f32.mxu0 0.0
        %3476 = vmatmul.mubr.f32.gmra.mrb[0].mxu0 %v1899
        %v3477 = vpop.f32.mrb[0].mxu0
        %v3478 = vadd.f32 0.0, %v3477
        %v3479 = vpop.f32.mrb[0].mxu0
        %3480 = vmatprep.mubr.f32.mxu0 0.0
        %3481 = vmatmul.mubr.f32.gmra.mrb[0].mxu0 %v1902
        %v3482 = vpop.f32.mrb[0].mxu0
        %v3483 = vadd.f32 0.0, %v3482
        %v3484 = vpop.f32.mrb[0].mxu0
        %3485 = vmatprep.mubr.f32.mxu0 0.0
        %3486 = vmatmul.mubr.f32.gmra.mrb[0].mxu0 %v1905
        %v3487 = vpop.f32.mrb[0].mxu0
        %v3488 = vadd.f32 0.0, %v3487
        %v3489 = vpop.f32.mrb[0].mxu0
        %3490 = vmatprep.mubr.f32.mxu0 0.0
        %3491 = vmatmul.mubr.f32.gmra.mrb[0].mxu0 %v1908
        %v3492 = vpop.f32.mrb[0].mxu0
        %v3493 = vadd.f32 0.0, %v3492
        %v3494 = vpop.f32.mrb[0].mxu0
        %3495 = vmatprep.mubr.f32.mxu0 0.0
        %3496 = vmatmul.mubr.f32.gmra.mrb[0].mxu0 %v1911
        %v3497 = vpop.f32.mrb[0].mxu0
        %v3498 = vadd.f32 0.0, %v3497
        %v3499 = vpop.f32.mrb[0].mxu0
        %3500 = vmatprep.mubr.f32.mxu0 0.0
        %3501 = vmatmul.mubr.f32.gmra.mrb[0].mxu0 %v1914
        %v3502 = vpop.f32.mrb[0].mxu0
        %v3503 = vadd.f32 0.0, %v3502
        %v3504 = vpop.f32.mrb[0].mxu0
        %3505 = vmatprep.mubr.f32.mxu0 0.0
        %3506 = vmatmul.mubr.f32.gmra.mrb[0].mxu0 %v1917
        %v3507 = vpop.f32.mrb[0].mxu0
        %v3508 = vadd.f32 0.0, %v3507
        %v3509 = vpop.f32.mrb[0].mxu0
        %3510 = vmatprep.mubr.f32.mxu0 0.0
        %3511 = vmatmul.mubr.f32.gmra.mrb[0].mxu0 %v1920
        %v3512 = vpop.f32.mrb[0].mxu0
        %v3513 = vadd.f32 0.0, %v3512
        %v3514 = vpop.f32.mrb[0].mxu0
        %3515 = vmatprep.mubr.f32.mxu0 0.0
        %3516 = vmatmul.mubr.f32.gmra.mrb[0].mxu0 %v1923
        %v3517 = vpop.f32.mrb[0].mxu0
        %v3518 = vadd.f32 0.0, %v3517
        %v3519 = vpop.f32.mrb[0].mxu0
        %3520 = vmatprep.mubr.f32.mxu0 0.0
        %3521 = vmatmul.mubr.f32.gmra.mrb[0].mxu0 %v1926
        %v3522 = vpop.f32.mrb[0].mxu0
        %v3523 = vadd.f32 0.0, %v3522
        %v3524 = vpop.f32.mrb[0].mxu0
        %3525 = vmatprep.mubr.f32.mxu0 0.0
        %3526 = vmatmul.mubr.f32.gmra.mrb[0].mxu0 %v1929
        %v3527 = vpop.f32.mrb[0].mxu0
        %v3528 = vadd.f32 0.0, %v3527
        %v3529 = vpop.f32.mrb[0].mxu0
        %3530 = vmatprep.mubr.f32.mxu0 0.0
        %3531 = vmatmul.mubr.f32.gmra.mrb[0].mxu0 %v1932
        %v3532 = vpop.f32.mrb[0].mxu0
        %v3533 = vadd.f32 0.0, %v3532
        %v3534 = vpop.f32.mrb[0].mxu0
        %3535 = vmatprep.mubr.f32.mxu0 0.0
        %3536 = vmatmul.mubr.f32.gmra.mrb[0].mxu0 %v1935
        %v3537 = vpop.f32.mrb[0].mxu0
        %v3538 = vadd.f32 0.0, %v3537
        %v3539 = vpop.f32.mrb[0].mxu0
        %3540 = vmatprep.mubr.f32.mxu0 0.0
        %3541 = vmatmul.mubr.f32.gmra.mrb[0].mxu0 %v1938
        %v3542 = vpop.f32.mrb[0].mxu0
        %v3543 = vadd.f32 0.0, %v3542
        %v3544 = vpop.f32.mrb[0].mxu0
        %3545 = vmatprep.mubr.f32.mxu0 0.0
        %3546 = vmatmul.mubr.f32.gmra.mrb[0].mxu0 %v1941
        %v3547 = vpop.f32.mrb[0].mxu0
        %v3548 = vadd.f32 0.0, %v3547
        %v3549 = vpop.f32.mrb[0].mxu0
        %3550 = vdwg.mxu0
        %v3551 = vmul.f32 %v2879, %v3168
        %v3552 = vmul.f32 %v2880, %v3173
        %v3553 = vmul.f32 %v2881, %v3178
        %v3554 = vmul.f32 %v2882, %v3183
        %v3555 = vmul.f32 %v2883, %v3188
        %v3556 = vmul.f32 %v2884, %v3193
        %v3557 = vmul.f32 %v2885, %v3198
        %v3558 = vmul.f32 %v2886, %v3203
        %v3559 = vmul.f32 %v2887, %v3208
        %v3560 = vmul.f32 %v2888, %v3213
        %v3561 = vmul.f32 %v2889, %v3218
        %v3562 = vmul.f32 %v2890, %v3223
        %v3563 = vmul.f32 %v2891, %v3228
        %v3564 = vmul.f32 %v2892, %v3233
        %v3565 = vmul.f32 %v2893, %v3238
        %v3566 = vmul.f32 %v2894, %v3243
        %v3567 = vmul.f32 %v2895, %v3248
        %v3568 = vmul.f32 %v2896, %v3253
        %v3569 = vmul.f32 %v2897, %v3258
        %v3570 = vmul.f32 %v2898, %v3263
        %v3571 = vmul.f32 %v2899, %v3268
        %v3572 = vmul.f32 %v2900, %v3273
        %v3573 = vmul.f32 %v2901, %v3278
        %v3574 = vmul.f32 %v2902, %v3283
        %v3575 = vmul.f32 %v2903, %v3288
        %v3576 = vmul.f32 %v2904, %v3293
        %v3577 = vmul.f32 %v2905, %v3298
        %v3578 = vmul.f32 %v2906, %v3303
        %v3579 = vmul.f32 %v2907, %v3308
        %v3580 = vmul.f32 %v2908, %v3313
        %v3581 = vmul.f32 %v2909, %v3318
        %v3582 = vmul.f32 %v2910, %v3323
        %v3583 = vadd.f32 %v3551, %v3393
        %v3584 = vadd.f32 %v3552, %v3398
        %v3585 = vadd.f32 %v3553, %v3403
        %v3586 = vadd.f32 %v3554, %v3408
        %v3587 = vadd.f32 %v3555, %v3413
        %v3588 = vadd.f32 %v3556, %v3418
        %v3589 = vadd.f32 %v3557, %v3423
        %v3590 = vadd.f32 %v3558, %v3428
        %v3591 = vadd.f32 %v3559, %v3433
        %v3592 = vadd.f32 %v3560, %v3438
        %v3593 = vadd.f32 %v3561, %v3443
        %v3594 = vadd.f32 %v3562, %v3448
        %v3595 = vadd.f32 %v3563, %v3453
        %v3596 = vadd.f32 %v3564, %v3458
        %v3597 = vadd.f32 %v3565, %v3463
        %v3598 = vadd.f32 %v3566, %v3468
        %v3599 = vadd.f32 %v3567, %v3473
        %v3600 = vadd.f32 %v3568, %v3478
        %v3601 = vadd.f32 %v3569, %v3483
        %v3602 = vadd.f32 %v3570, %v3488
        %v3603 = vadd.f32 %v3571, %v3493
        %v3604 = vadd.f32 %v3572, %v3498
        %v3605 = vadd.f32 %v3573, %v3503
        %v3606 = vadd.f32 %v3574, %v3508
        %v3607 = vadd.f32 %v3575, %v3513
        %v3608 = vadd.f32 %v3576, %v3518
        %v3609 = vadd.f32 %v3577, %v3523
        %v3610 = vadd.f32 %v3578, %v3528
        %v3611 = vadd.f32 %v3579, %v3533
        %v3612 = vadd.f32 %v3580, %v3538
        %v3613 = vadd.f32 %v3581, %v3543
        %v3614 = vadd.f32 %v3582, %v3548
        %v3615 = vpack.c.bf16 %v3584, %v3583
        %v3616 = vpack.c.bf16 %v3586, %v3585
        %v3617 = vpack.c.bf16 %v3588, %v3587
        %v3618 = vpack.c.bf16 %v3590, %v3589
        %v3619 = vpack.c.bf16 %v3592, %v3591
        %v3620 = vpack.c.bf16 %v3594, %v3593
        %v3621 = vpack.c.bf16 %v3596, %v3595
        %v3622 = vpack.c.bf16 %v3598, %v3597
        %v3623 = vpack.c.bf16 %v3600, %v3599
        %v3624 = vpack.c.bf16 %v3602, %v3601
        %v3625 = vpack.c.bf16 %v3604, %v3603
        %v3626 = vpack.c.bf16 %v3606, %v3605
        %v3627 = vpack.c.bf16 %v3608, %v3607
        %v3628 = vpack.c.bf16 %v3610, %v3609
        %v3629 = vpack.c.bf16 %v3612, %v3611
        %v3630 = vpack.c.bf16 %v3614, %v3613
        %v3631 = vld [vmem:[#allocation8] sm:$0xf]
        %v3632 = vld [vmem:[#allocation8 + $0x4] sm:$0xf]
        %v3633 = vld [vmem:[#allocation8 + $0x8] sm:$0xf]
        %v3634 = vld [vmem:[#allocation8 + $0xc] sm:$0xf]
        %v3635 = vld [vmem:[#allocation8 + $0x10] sm:$0xf]
        %v3636 = vld [vmem:[#allocation8 + $0x14] sm:$0xf]
        %v3637 = vld [vmem:[#allocation8 + $0x18] sm:$0xf]
        %v3638 = vld [vmem:[#allocation8 + $0x1c] sm:$0xf]
        %v3639 = vld [vmem:[#allocation8 + $0x20] sm:$0xf]
        %v3640 = vld [vmem:[#allocation8 + $0x24] sm:$0xf]
        %v3641 = vld [vmem:[#allocation8 + $0x28] sm:$0xf]
        %v3642 = vld [vmem:[#allocation8 + $0x2c] sm:$0xf]
        %v3643 = vld [vmem:[#allocation8 + $0x30] sm:$0xf]
        %v3644 = vld [vmem:[#allocation8 + $0x34] sm:$0xf]
        %v3645 = vld [vmem:[#allocation8 + $0x38] sm:$0xf]
        %v3646 = vld [vmem:[#allocation8 + $0x3c] sm:$0xf]
        %v3663 = vunpack.c.l.b16 %v3631
        %v3664 = vunpack.c.l.b16 %v3632
        %v3665 = vunpack.c.l.b16 %v3633
        %v3666 = vunpack.c.l.b16 %v3634
        %v3667 = vunpack.c.l.b16 %v3635
        %v3668 = vunpack.c.l.b16 %v3636
        %v3669 = vunpack.c.l.b16 %v3637
        %v3670 = vunpack.c.l.b16 %v3638
        %v3671 = vunpack.c.l.b16 %v3639
        %v3672 = vunpack.c.l.b16 %v3640
        %v3673 = vunpack.c.l.b16 %v3641
        %v3674 = vunpack.c.l.b16 %v3642
        %v3675 = vunpack.c.l.b16 %v3643
        %v3676 = vunpack.c.l.b16 %v3644
        %v3677 = vunpack.c.l.b16 %v3645
        %v3678 = vunpack.c.l.b16 %v3646
        %v3679 = vpack.c.b16 %v3664, %v3663
        %v3680 = vpack.c.b16 %v3666, %v3665
        %v3681 = vpack.c.b16 %v3668, %v3667
        %v3682 = vpack.c.b16 %v3670, %v3669
        %v3683 = vpack.c.b16 %v3672, %v3671
        %v3684 = vpack.c.b16 %v3674, %v3673
        %v3685 = vpack.c.b16 %v3676, %v3675
        %v3686 = vpack.c.b16 %v3678, %v3677
        %3695 = vmatprep.subr.bf16.mxu0 0
        %3696 = vmatpush1.bf16.msra.mxu0 %v3679
        %3697 = vmatprep.subr.bf16.mxu0 0
        %3698 = vmatpush1.bf16.msra.mxu0 %v3680
        %3699 = vmatprep.subr.bf16.mxu0 0
        %3700 = vmatpush1.bf16.msra.mxu0 %v3681
        %3701 = vmatprep.subr.bf16.mxu0 0
        %3702 = vmatpush1.bf16.msra.mxu0 %v3682
        %3703 = vmatprep.subr.bf16.mxu0 0
        %3704 = vmatpush1.bf16.msra.mxu0 %v3683
        %3705 = vmatprep.subr.bf16.mxu0 0
        %3706 = vmatpush1.bf16.msra.mxu0 %v3684
        %3707 = vmatprep.subr.bf16.mxu0 0
        %3708 = vmatpush1.bf16.msra.mxu0 %v3685
        %3709 = vmatprep.subr.bf16.mxu0 0
        %3710 = vmatpush1.bf16.msra.mxu0 %v3686
        %3711 = vmatprep.subr.bf16.mxu0 0
        %3712 = vmatpush1.bf16.msra.mxu0 0
        %3713 = vmatprep.subr.bf16.mxu0 0
        %3714 = vmatpush1.bf16.msra.mxu0 0
        %3715 = vmatprep.subr.bf16.mxu0 0
        %3716 = vmatpush1.bf16.msra.mxu0 0
        %3717 = vmatprep.subr.bf16.mxu0 0
        %3718 = vmatpush1.bf16.msra.mxu0 0
        %3719 = vmatprep.subr.bf16.mxu0 0
        %3720 = vmatpush1.bf16.msra.mxu0 0
        %3721 = vmatprep.subr.bf16.mxu0 0
        %3722 = vmatpush1.bf16.msra.mxu0 0
        %3723 = vmatprep.subr.bf16.mxu0 0
        %3724 = vmatpush1.bf16.msra.mxu0 0
        %3725 = vmatprep.subr.bf16.mxu0 0
        %3726 = vmatpush1.bf16.msra.mxu0 0
        %3727 = vmatprep.mubr.bf16.mxu0 0
        %3728 = vmatmul.mubr.bf16.gmra.mrb[0].mxu0 %v3615
        %v3729 = vpop.f32.mrb[0].mxu0
        %v3730 = vadd.f32 0.0, %v3729
        %v3731 = vpop.f32.mrb[0].mxu0
        %v3732 = vpop.f32.mrb[0].mxu0
        %v3733 = vadd.f32 0.0, %v3732
        %v3734 = vpop.f32.mrb[0].mxu0
        %3735 = vmatprep.mubr.bf16.mxu0 0
        %3736 = vmatmul.mubr.bf16.gmra.mrb[0].mxu0 %v3616
        %v3737 = vpop.f32.mrb[0].mxu0
        %v3738 = vadd.f32 0.0, %v3737
        %v3739 = vpop.f32.mrb[0].mxu0
        %v3740 = vpop.f32.mrb[0].mxu0
        %v3741 = vadd.f32 0.0, %v3740
        %v3742 = vpop.f32.mrb[0].mxu0
        %3743 = vmatprep.mubr.bf16.mxu0 0
        %3744 = vmatmul.mubr.bf16.gmra.mrb[0].mxu0 %v3617
        %v3745 = vpop.f32.mrb[0].mxu0
        %v3746 = vadd.f32 0.0, %v3745
        %v3747 = vpop.f32.mrb[0].mxu0
        %v3748 = vpop.f32.mrb[0].mxu0
        %v3749 = vadd.f32 0.0, %v3748
        %v3750 = vpop.f32.mrb[0].mxu0
        %3751 = vmatprep.mubr.bf16.mxu0 0
        %3752 = vmatmul.mubr.bf16.gmra.mrb[0].mxu0 %v3618
        %v3753 = vpop.f32.mrb[0].mxu0
        %v3754 = vadd.f32 0.0, %v3753
        %v3755 = vpop.f32.mrb[0].mxu0
        %v3756 = vpop.f32.mrb[0].mxu0
        %v3757 = vadd.f32 0.0, %v3756
        %v3758 = vpop.f32.mrb[0].mxu0
        %3759 = vmatprep.mubr.bf16.mxu0 0
        %3760 = vmatmul.mubr.bf16.gmra.mrb[0].mxu0 %v3619
        %v3761 = vpop.f32.mrb[0].mxu0
        %v3762 = vadd.f32 0.0, %v3761
        %v3763 = vpop.f32.mrb[0].mxu0
        %v3764 = vpop.f32.mrb[0].mxu0
        %v3765 = vadd.f32 0.0, %v3764
        %v3766 = vpop.f32.mrb[0].mxu0
        %3767 = vmatprep.mubr.bf16.mxu0 0
        %3768 = vmatmul.mubr.bf16.gmra.mrb[0].mxu0 %v3620
        %v3769 = vpop.f32.mrb[0].mxu0
        %v3770 = vadd.f32 0.0, %v3769
        %v3771 = vpop.f32.mrb[0].mxu0
        %v3772 = vpop.f32.mrb[0].mxu0
        %v3773 = vadd.f32 0.0, %v3772
        %v3774 = vpop.f32.mrb[0].mxu0
        %3775 = vmatprep.mubr.bf16.mxu0 0
        %3776 = vmatmul.mubr.bf16.gmra.mrb[0].mxu0 %v3621
        %v3777 = vpop.f32.mrb[0].mxu0
        %v3778 = vadd.f32 0.0, %v3777
        %v3779 = vpop.f32.mrb[0].mxu0
        %v3780 = vpop.f32.mrb[0].mxu0
        %v3781 = vadd.f32 0.0, %v3780
        %v3782 = vpop.f32.mrb[0].mxu0
        %3783 = vmatprep.mubr.bf16.mxu0 0
        %3784 = vmatmul.mubr.bf16.gmra.mrb[0].mxu0 %v3622
        %v3785 = vpop.f32.mrb[0].mxu0
        %v3786 = vadd.f32 0.0, %v3785
        %v3787 = vpop.f32.mrb[0].mxu0
        %v3788 = vpop.f32.mrb[0].mxu0
        %v3789 = vadd.f32 0.0, %v3788
        %v3790 = vpop.f32.mrb[0].mxu0
        %3791 = vmatprep.mubr.bf16.mxu0 0
        %3792 = vmatmul.mubr.bf16.gmra.mrb[0].mxu0 %v3623
        %v3793 = vpop.f32.mrb[0].mxu0
        %v3794 = vadd.f32 0.0, %v3793
        %v3795 = vpop.f32.mrb[0].mxu0
        %v3796 = vpop.f32.mrb[0].mxu0
        %v3797 = vadd.f32 0.0, %v3796
        %v3798 = vpop.f32.mrb[0].mxu0
        %3799 = vmatprep.mubr.bf16.mxu0 0
        %3800 = vmatmul.mubr.bf16.gmra.mrb[0].mxu0 %v3624
        %v3801 = vpop.f32.mrb[0].mxu0
        %v3802 = vadd.f32 0.0, %v3801
        %v3803 = vpop.f32.mrb[0].mxu0
        %v3804 = vpop.f32.mrb[0].mxu0
        %v3805 = vadd.f32 0.0, %v3804
        %v3806 = vpop.f32.mrb[0].mxu0
        %3807 = vmatprep.mubr.bf16.mxu0 0
        %3808 = vmatmul.mubr.bf16.gmra.mrb[0].mxu0 %v3625
        %v3809 = vpop.f32.mrb[0].mxu0
        %v3810 = vadd.f32 0.0, %v3809
        %v3811 = vpop.f32.mrb[0].mxu0
        %v3812 = vpop.f32.mrb[0].mxu0
        %v3813 = vadd.f32 0.0, %v3812
        %v3814 = vpop.f32.mrb[0].mxu0
        %3815 = vmatprep.mubr.bf16.mxu0 0
        %3816 = vmatmul.mubr.bf16.gmra.mrb[0].mxu0 %v3626
        %v3817 = vpop.f32.mrb[0].mxu0
        %v3818 = vadd.f32 0.0, %v3817
        %v3819 = vpop.f32.mrb[0].mxu0
        %v3820 = vpop.f32.mrb[0].mxu0
        %v3821 = vadd.f32 0.0, %v3820
        %v3822 = vpop.f32.mrb[0].mxu0
        %3823 = vmatprep.mubr.bf16.mxu0 0
        %3824 = vmatmul.mubr.bf16.gmra.mrb[0].mxu0 %v3627
        %v3825 = vpop.f32.mrb[0].mxu0
        %v3826 = vadd.f32 0.0, %v3825
        %v3827 = vpop.f32.mrb[0].mxu0
        %v3828 = vpop.f32.mrb[0].mxu0
        %v3829 = vadd.f32 0.0, %v3828
        %v3830 = vpop.f32.mrb[0].mxu0
        %3831 = vmatprep.mubr.bf16.mxu0 0
        %3832 = vmatmul.mubr.bf16.gmra.mrb[0].mxu0 %v3628
        %v3833 = vpop.f32.mrb[0].mxu0
        %v3834 = vadd.f32 0.0, %v3833
        %v3835 = vpop.f32.mrb[0].mxu0
        %v3836 = vpop.f32.mrb[0].mxu0
        %v3837 = vadd.f32 0.0, %v3836
        %v3838 = vpop.f32.mrb[0].mxu0
        %3839 = vmatprep.mubr.bf16.mxu0 0
        %3840 = vmatmul.mubr.bf16.gmra.mrb[0].mxu0 %v3629
        %v3841 = vpop.f32.mrb[0].mxu0
        %v3842 = vadd.f32 0.0, %v3841
        %v3843 = vpop.f32.mrb[0].mxu0
        %v3844 = vpop.f32.mrb[0].mxu0
        %v3845 = vadd.f32 0.0, %v3844
        %v3846 = vpop.f32.mrb[0].mxu0
        %3847 = vmatprep.mubr.bf16.mxu0 0
        %3848 = vmatmul.mubr.bf16.gmra.mrb[0].mxu0 %v3630
        %v3849 = vpop.f32.mrb[0].mxu0
        %v3850 = vadd.f32 0.0, %v3849
        %v3851 = vpop.f32.mrb[0].mxu0
        %v3852 = vpop.f32.mrb[0].mxu0
        %v3853 = vadd.f32 0.0, %v3852
        %v3854 = vpop.f32.mrb[0].mxu0
        %3855 = vdwg.mxu0
        %v3856 = vpack.c.bf16 %v3733, %v3730
        %v3857 = vpack.c.bf16 %v3741, %v3738
        %v3858 = vpack.c.bf16 %v3749, %v3746
        %v3859 = vpack.c.bf16 %v3757, %v3754
        %v3860 = vpack.c.bf16 %v3765, %v3762
        %v3861 = vpack.c.bf16 %v3773, %v3770
        %v3862 = vpack.c.bf16 %v3781, %v3778
        %v3863 = vpack.c.bf16 %v3789, %v3786
        %v3864 = vpack.c.bf16 %v3797, %v3794
        %v3865 = vpack.c.bf16 %v3805, %v3802
        %v3866 = vpack.c.bf16 %v3813, %v3810
        %v3867 = vpack.c.bf16 %v3821, %v3818
        %v3868 = vpack.c.bf16 %v3829, %v3826
        %v3869 = vpack.c.bf16 %v3837, %v3834
        %v3870 = vpack.c.bf16 %v3845, %v3842
        %v3871 = vpack.c.bf16 %v3853, %v3850
        %v3872 = vlaneseq
        %v3873 = vshrl.u32 %v3872, 7
        %v3874 = vsub.s32 6, %v3873
        %v3875 = vrot.slane %v1088, %v3874
        %3876 = vmatprep.subr.bf16.mxu0 0
        %3877 = vmatpush1.bf16.msra.mxu0 %v3856
        %3878 = vmatprep.subr.bf16.mxu0 0
        %3879 = vmatpush1.bf16.msra.mxu0 %v3857
        %3880 = vmatprep.subr.bf16.mxu0 0
        %3881 = vmatpush1.bf16.msra.mxu0 %v3858
        %3882 = vmatprep.subr.bf16.mxu0 0
        %3883 = vmatpush1.bf16.msra.mxu0 %v3859
        %3884 = vmatprep.subr.bf16.mxu0 0
        %3885 = vmatpush1.bf16.msra.mxu0 %v3860
        %3886 = vmatprep.subr.bf16.mxu0 0
        %3887 = vmatpush1.bf16.msra.mxu0 %v3861
        %3888 = vmatprep.subr.bf16.mxu0 0
        %3889 = vmatpush1.bf16.msra.mxu0 %v3862
        %3890 = vmatprep.subr.bf16.mxu0 0
        %3891 = vmatpush1.bf16.msra.mxu0 %v3863
        %3892 = vmatprep.subr.bf16.mxu0 0
        %3893 = vmatpush1.bf16.msra.mxu0 %v3864
        %3894 = vmatprep.subr.bf16.mxu0 0
        %3895 = vmatpush1.bf16.msra.mxu0 %v3865
        %3896 = vmatprep.subr.bf16.mxu0 0
        %3897 = vmatpush1.bf16.msra.mxu0 %v3866
        %3898 = vmatprep.subr.bf16.mxu0 0
        %3899 = vmatpush1.bf16.msra.mxu0 %v3867
        %3900 = vmatprep.subr.bf16.mxu0 0
        %3901 = vmatpush1.bf16.msra.mxu0 %v3868
        %3902 = vmatprep.subr.bf16.mxu0 0
        %3903 = vmatpush1.bf16.msra.mxu0 %v3869
        %3904 = vmatprep.subr.bf16.mxu0 0
        %3905 = vmatpush1.bf16.msra.mxu0 %v3870
        %3906 = vmatprep.subr.bf16.mxu0 0
        %3907 = vmatpush1.bf16.msra.mxu0 %v3871
        %3908 = vmatprep.mubr.bf16.mxu0 %v1023
        %3909 = vmatmul.mubr.bf16.gmra.mrb[0].mxu0 %v1022
        %v3910 = vpop.f32.mrb[0].mxu0
        %v3911 = vadd.f32 %v3875, %v3910
        %v3912 = vpop.f32.mrb[0].mxu0
        %v3913 = vpop.f32.mrb[0].mxu0
        %v3914 = vadd.f32 %v3875, %v3913
        %v3915 = vpop.f32.mrb[0].mxu0
        %3916 = vmatprep.mubr.bf16.mxu0 %v1025
        %3917 = vmatmul.mubr.bf16.gmra.mrb[0].mxu0 %v1024
        %v3918 = vpop.f32.mrb[0].mxu0
        %v3919 = vadd.f32 %v3875, %v3918
        %v3920 = vpop.f32.mrb[0].mxu0
        %v3921 = vpop.f32.mrb[0].mxu0
        %v3922 = vadd.f32 %v3875, %v3921
        %v3923 = vpop.f32.mrb[0].mxu0
        %3924 = vmatprep.mubr.bf16.mxu0 %v1027
        %3925 = vmatmul.mubr.bf16.gmra.mrb[0].mxu0 %v1026
        %v3926 = vpop.f32.mrb[0].mxu0
        %v3927 = vadd.f32 %v3875, %v3926
        %v3928 = vpop.f32.mrb[0].mxu0
        %v3929 = vpop.f32.mrb[0].mxu0
        %v3930 = vadd.f32 %v3875, %v3929
        %v3931 = vpop.f32.mrb[0].mxu0
        %3932 = vmatprep.mubr.bf16.mxu0 %v1029
        %3933 = vmatmul.mubr.bf16.gmra.mrb[0].mxu0 %v1028
        %v3934 = vpop.f32.mrb[0].mxu0
        %v3935 = vadd.f32 %v3875, %v3934
        %v3936 = vpop.f32.mrb[0].mxu0
        %v3937 = vpop.f32.mrb[0].mxu0
        %v3938 = vadd.f32 %v3875, %v3937
        %v3939 = vpop.f32.mrb[0].mxu0
        %3940 = vmatprep.mubr.bf16.mxu0 %v1031
        %3941 = vmatmul.mubr.bf16.gmra.mrb[0].mxu0 %v1030
        %v3942 = vpop.f32.mrb[0].mxu0
        %v3943 = vadd.f32 %v3875, %v3942
        %v3944 = vpop.f32.mrb[0].mxu0
        %v3945 = vpop.f32.mrb[0].mxu0
        %v3946 = vadd.f32 %v3875, %v3945
        %v3947 = vpop.f32.mrb[0].mxu0
        %3948 = vmatprep.mubr.bf16.mxu0 %v1033
        %3949 = vmatmul.mubr.bf16.gmra.mrb[0].mxu0 %v1032
        %v3950 = vpop.f32.mrb[0].mxu0
        %v3951 = vadd.f32 %v3875, %v3950
        %v3952 = vpop.f32.mrb[0].mxu0
        %v3953 = vpop.f32.mrb[0].mxu0
        %v3954 = vadd.f32 %v3875, %v3953
        %v3955 = vpop.f32.mrb[0].mxu0
        %3956 = vmatprep.mubr.bf16.mxu0 %v1035
        %3957 = vmatmul.mubr.bf16.gmra.mrb[0].mxu0 %v1034
        %v3958 = vpop.f32.mrb[0].mxu0
        %v3959 = vadd.f32 %v3875, %v3958
        %v3960 = vpop.f32.mrb[0].mxu0
        %v3961 = vpop.f32.mrb[0].mxu0
        %v3962 = vadd.f32 %v3875, %v3961
        %v3963 = vpop.f32.mrb[0].mxu0
        %3964 = vmatprep.mubr.bf16.mxu0 %v1037
        %3965 = vmatmul.mubr.bf16.gmra.mrb[0].mxu0 %v1036
        %v3966 = vpop.f32.mrb[0].mxu0
        %v3967 = vadd.f32 %v3875, %v3966
        %v3968 = vpop.f32.mrb[0].mxu0
        %v3969 = vpop.f32.mrb[0].mxu0
        %v3970 = vadd.f32 %v3875, %v3969
        %v3971 = vpop.f32.mrb[0].mxu0
        %3972 = vmatprep.mubr.bf16.mxu0 %v1039
        %3973 = vmatmul.mubr.bf16.gmra.mrb[0].mxu0 %v1038
        %v3974 = vpop.f32.mrb[0].mxu0
        %v3975 = vadd.f32 %v3875, %v3974
        %v3976 = vpop.f32.mrb[0].mxu0
        %v3977 = vpop.f32.mrb[0].mxu0
        %v3978 = vadd.f32 %v3875, %v3977
        %v3979 = vpop.f32.mrb[0].mxu0
        %3980 = vmatprep.mubr.bf16.mxu0 %v1041
        %3981 = vmatmul.mubr.bf16.gmra.mrb[0].mxu0 %v1040
        %v3982 = vpop.f32.mrb[0].mxu0
        %v3983 = vadd.f32 %v3875, %v3982
        %v3984 = vpop.f32.mrb[0].mxu0
        %v3985 = vpop.f32.mrb[0].mxu0
        %v3986 = vadd.f32 %v3875, %v3985
        %v3987 = vpop.f32.mrb[0].mxu0
        %3988 = vmatprep.mubr.bf16.mxu0 %v1043
        %3989 = vmatmul.mubr.bf16.gmra.mrb[0].mxu0 %v1042
        %v3990 = vpop.f32.mrb[0].mxu0
        %v3991 = vadd.f32 %v3875, %v3990
        %v3992 = vpop.f32.mrb[0].mxu0
        %v3993 = vpop.f32.mrb[0].mxu0
        %v3994 = vadd.f32 %v3875, %v3993
        %v3995 = vpop.f32.mrb[0].mxu0
        %3996 = vmatprep.mubr.bf16.mxu0 %v1045
        %3997 = vmatmul.mubr.bf16.gmra.mrb[0].mxu0 %v1044
        %v3998 = vpop.f32.mrb[0].mxu0
        %v3999 = vadd.f32 %v3875, %v3998
        %v4000 = vpop.f32.mrb[0].mxu0
        %v4001 = vpop.f32.mrb[0].mxu0
        %v4002 = vadd.f32 %v3875, %v4001
        %v4003 = vpop.f32.mrb[0].mxu0
        %4004 = vmatprep.mubr.bf16.mxu0 %v1047
        %4005 = vmatmul.mubr.bf16.gmra.mrb[0].mxu0 %v1046
        %v4006 = vpop.f32.mrb[0].mxu0
        %v4007 = vadd.f32 %v3875, %v4006
        %v4008 = vpop.f32.mrb[0].mxu0
        %v4009 = vpop.f32.mrb[0].mxu0
        %v4010 = vadd.f32 %v3875, %v4009
        %v4011 = vpop.f32.mrb[0].mxu0
        %4012 = vmatprep.mubr.bf16.mxu0 %v1049
        %4013 = vmatmul.mubr.bf16.gmra.mrb[0].mxu0 %v1048
        %v4014 = vpop.f32.mrb[0].mxu0
        %v4015 = vadd.f32 %v3875, %v4014
        %v4016 = vpop.f32.mrb[0].mxu0
        %v4017 = vpop.f32.mrb[0].mxu0
        %v4018 = vadd.f32 %v3875, %v4017
        %v4019 = vpop.f32.mrb[0].mxu0
        %4020 = vmatprep.mubr.bf16.mxu0 %v1051
        %4021 = vmatmul.mubr.bf16.gmra.mrb[0].mxu0 %v1050
        %v4022 = vpop.f32.mrb[0].mxu0
        %v4023 = vadd.f32 %v3875, %v4022
        %v4024 = vpop.f32.mrb[0].mxu0
        %v4025 = vpop.f32.mrb[0].mxu0
        %v4026 = vadd.f32 %v3875, %v4025
        %v4027 = vpop.f32.mrb[0].mxu0
        %4028 = vmatprep.mubr.bf16.mxu0 %v1053
        %4029 = vmatmul.mubr.bf16.gmra.mrb[0].mxu0 %v1052
        %v4030 = vpop.f32.mrb[0].mxu0
        %v4031 = vadd.f32 %v3875, %v4030
        %v4032 = vpop.f32.mrb[0].mxu0
        %v4033 = vpop.f32.mrb[0].mxu0
        %v4034 = vadd.f32 %v3875, %v4033
        %v4035 = vpop.f32.mrb[0].mxu0
        %4036 = vdwg.mxu0
        %v4037 = vmax.f32 %v3911, 0.0
        %v4038 = vmax.f32 %v3914, 0.0
        %v4039 = vmax.f32 %v3919, 0.0
        %v4040 = vmax.f32 %v3922, 0.0
        %v4041 = vmax.f32 %v3927, 0.0
        %v4042 = vmax.f32 %v3930, 0.0
        %v4043 = vmax.f32 %v3935, 0.0
        %v4044 = vmax.f32 %v3938, 0.0
        %v4045 = vmax.f32 %v3943, 0.0
        %v4046 = vmax.f32 %v3946, 0.0
        %v4047 = vmax.f32 %v3951, 0.0
        %v4048 = vmax.f32 %v3954, 0.0
        %v4049 = vmax.f32 %v3959, 0.0
        %v4050 = vmax.f32 %v3962, 0.0
        %v4051 = vmax.f32 %v3967, 0.0
        %v4052 = vmax.f32 %v3970, 0.0
        %v4053 = vmax.f32 %v3975, 0.0
        %v4054 = vmax.f32 %v3978, 0.0
        %v4055 = vmax.f32 %v3983, 0.0
        %v4056 = vmax.f32 %v3986, 0.0
        %v4057 = vmax.f32 %v3991, 0.0
        %v4058 = vmax.f32 %v3994, 0.0
        %v4059 = vmax.f32 %v3999, 0.0
        %v4060 = vmax.f32 %v4002, 0.0
        %v4061 = vmax.f32 %v4007, 0.0
        %v4062 = vmax.f32 %v4010, 0.0
        %v4063 = vmax.f32 %v4015, 0.0
        %v4064 = vmax.f32 %v4018, 0.0
        %v4065 = vmax.f32 %v4023, 0.0
        %v4066 = vmax.f32 %v4026, 0.0
        %v4067 = vmax.f32 %v4031, 0.0
        %v4068 = vmax.f32 %v4034, 0.0
        %4069 = vmatprep.subr.mxu0 0.0
        %4070 = vmatpush1.msra.mxu0 %v4037
        %4071 = vmatprep.subr.mxu0 0.0
        %4072 = vmatpush1.msra.mxu0 %v4038
        %4073 = vmatprep.subr.mxu0 0.0
        %4074 = vmatpush1.msra.mxu0 %v4039
        %4075 = vmatprep.subr.mxu0 0.0
        %4076 = vmatpush1.msra.mxu0 %v4040
        %4077 = vmatprep.subr.mxu0 0.0
        %4078 = vmatpush1.msra.mxu0 %v4041
        %4079 = vmatprep.subr.mxu0 0.0
        %4080 = vmatpush1.msra.mxu0 %v4042
        %4081 = vmatprep.subr.mxu0 0.0
        %4082 = vmatpush1.msra.mxu0 %v4043
        %4083 = vmatprep.subr.mxu0 0.0
        %4084 = vmatpush1.msra.mxu0 %v4044
        %4085 = vmatprep.subr.mxu0 0.0
        %4086 = vmatpush1.msra.mxu0 %v4045
        %4087 = vmatprep.subr.mxu0 0.0
        %4088 = vmatpush1.msra.mxu0 %v4046
        %4089 = vmatprep.subr.mxu0 0.0
        %4090 = vmatpush1.msra.mxu0 %v4047
        %4091 = vmatprep.subr.mxu0 0.0
        %4092 = vmatpush1.msra.mxu0 %v4048
        %4093 = vmatprep.subr.mxu0 0.0
        %4094 = vmatpush1.msra.mxu0 %v4049
        %4095 = vmatprep.subr.mxu0 0.0
        %4096 = vmatpush1.msra.mxu0 %v4050
        %4097 = vmatprep.subr.mxu0 0.0
        %4098 = vmatpush1.msra.mxu0 %v4051
        %4099 = vmatprep.subr.mxu0 0.0
        %4100 = vmatpush1.msra.mxu0 %v4052
        %4101 = vmatprep.subr.mxu0 0.0
        %4102 = vmatpush1.msra.mxu0 %v4053
        %4103 = vmatprep.subr.mxu0 0.0
        %4104 = vmatpush1.msra.mxu0 %v4054
        %4105 = vmatprep.subr.mxu0 0.0
        %4106 = vmatpush1.msra.mxu0 %v4055
        %4107 = vmatprep.subr.mxu0 0.0
        %4108 = vmatpush1.msra.mxu0 %v4056
        %4109 = vmatprep.subr.mxu0 0.0
        %4110 = vmatpush1.msra.mxu0 %v4057
        %4111 = vmatprep.subr.mxu0 0.0
        %4112 = vmatpush1.msra.mxu0 %v4058
        %4113 = vmatprep.subr.mxu0 0.0
        %4114 = vmatpush1.msra.mxu0 %v4059
        %4115 = vmatprep.subr.mxu0 0.0
        %4116 = vmatpush1.msra.mxu0 %v4060
        %4117 = vmatprep.subr.mxu0 0.0
        %4118 = vmatpush1.msra.mxu0 %v4061
        %4119 = vmatprep.subr.mxu0 0.0
        %4120 = vmatpush1.msra.mxu0 %v4062
        %4121 = vmatprep.subr.mxu0 0.0
        %4122 = vmatpush1.msra.mxu0 %v4063
        %4123 = vmatprep.subr.mxu0 0.0
        %4124 = vmatpush1.msra.mxu0 %v4064
        %4125 = vmatprep.subr.mxu0 0.0
        %4126 = vmatpush1.msra.mxu0 %v4065
        %4127 = vmatprep.subr.mxu0 0.0
        %4128 = vmatpush1.msra.mxu0 %v4066
        %4129 = vmatprep.subr.mxu0 0.0
        %4130 = vmatpush1.msra.mxu0 %v4067
        %4131 = vmatprep.subr.mxu0 0.0
        %4132 = vmatpush1.msra.mxu0 %v4068
        %4133 = vmatprep.mubr.f32.mxu0 %v1055
        %4134 = vmatmul.mubr.f32.gmra.mrb[0].mxu0 %v1054
        %v4135 = vpop.f32.mrb[0].mxu0
        %v4136 = vadd.f32 0.0, %v4135
        %v4137 = vpop.f32.mrb[0].mxu0
        %4138 = vdwg.mxu0
        %v4139 = vmul.f32 %v4136, 0.03125
        %v4140 = vmul.f32 %v4037, %v4037
        %v4141 = vmul.f32 %v4038, %v4038
        %v4142 = vmul.f32 %v4039, %v4039
        %v4143 = vmul.f32 %v4040, %v4040
        %v4144 = vmul.f32 %v4041, %v4041
        %v4145 = vmul.f32 %v4042, %v4042
        %v4146 = vmul.f32 %v4043, %v4043
        %v4147 = vmul.f32 %v4044, %v4044
        %v4148 = vmul.f32 %v4045, %v4045
        %v4149 = vmul.f32 %v4046, %v4046
        %v4150 = vmul.f32 %v4047, %v4047
        %v4151 = vmul.f32 %v4048, %v4048
        %v4152 = vmul.f32 %v4049, %v4049
        %v4153 = vmul.f32 %v4050, %v4050
        %v4154 = vmul.f32 %v4051, %v4051
        %v4155 = vmul.f32 %v4052, %v4052
        %v4156 = vmul.f32 %v4053, %v4053
        %v4157 = vmul.f32 %v4054, %v4054
        %v4158 = vmul.f32 %v4055, %v4055
        %v4159 = vmul.f32 %v4056, %v4056
        %v4160 = vmul.f32 %v4057, %v4057
        %v4161 = vmul.f32 %v4058, %v4058
        %v4162 = vmul.f32 %v4059, %v4059
        %v4163 = vmul.f32 %v4060, %v4060
        %v4164 = vmul.f32 %v4061, %v4061
        %v4165 = vmul.f32 %v4062, %v4062
        %v4166 = vmul.f32 %v4063, %v4063
        %v4167 = vmul.f32 %v4064, %v4064
        %v4168 = vmul.f32 %v4065, %v4065
        %v4169 = vmul.f32 %v4066, %v4066
        %v4170 = vmul.f32 %v4067, %v4067
        %v4171 = vmul.f32 %v4068, %v4068
        %4172 = vmatprep.subr.mxu0 0.0
        %4173 = vmatpush1.msra.mxu0 %v4140
        %4174 = vmatprep.subr.mxu0 0.0
        %4175 = vmatpush1.msra.mxu0 %v4141
        %4176 = vmatprep.subr.mxu0 0.0
        %4177 = vmatpush1.msra.mxu0 %v4142
        %4178 = vmatprep.subr.mxu0 0.0
        %4179 = vmatpush1.msra.mxu0 %v4143
        %4180 = vmatprep.subr.mxu0 0.0
        %4181 = vmatpush1.msra.mxu0 %v4144
        %4182 = vmatprep.subr.mxu0 0.0
        %4183 = vmatpush1.msra.mxu0 %v4145
        %4184 = vmatprep.subr.mxu0 0.0
        %4185 = vmatpush1.msra.mxu0 %v4146
        %4186 = vmatprep.subr.mxu0 0.0
        %4187 = vmatpush1.msra.mxu0 %v4147
        %4188 = vmatprep.subr.mxu0 0.0
        %4189 = vmatpush1.msra.mxu0 %v4148
        %4190 = vmatprep.subr.mxu0 0.0
        %4191 = vmatpush1.msra.mxu0 %v4149
        %4192 = vmatprep.subr.mxu0 0.0
        %4193 = vmatpush1.msra.mxu0 %v4150
        %4194 = vmatprep.subr.mxu0 0.0
        %4195 = vmatpush1.msra.mxu0 %v4151
        %4196 = vmatprep.subr.mxu0 0.0
        %4197 = vmatpush1.msra.mxu0 %v4152
        %4198 = vmatprep.subr.mxu0 0.0
        %4199 = vmatpush1.msra.mxu0 %v4153
        %4200 = vmatprep.subr.mxu0 0.0
        %4201 = vmatpush1.msra.mxu0 %v4154
        %4202 = vmatprep.subr.mxu0 0.0
        %4203 = vmatpush1.msra.mxu0 %v4155
        %4204 = vmatprep.subr.mxu0 0.0
        %4205 = vmatpush1.msra.mxu0 %v4156
        %4206 = vmatprep.subr.mxu0 0.0
        %4207 = vmatpush1.msra.mxu0 %v4157
        %4208 = vmatprep.subr.mxu0 0.0
        %4209 = vmatpush1.msra.mxu0 %v4158
        %4210 = vmatprep.subr.mxu0 0.0
        %4211 = vmatpush1.msra.mxu0 %v4159
        %4212 = vmatprep.subr.mxu0 0.0
        %4213 = vmatpush1.msra.mxu0 %v4160
        %4214 = vmatprep.subr.mxu0 0.0
        %4215 = vmatpush1.msra.mxu0 %v4161
        %4216 = vmatprep.subr.mxu0 0.0
        %4217 = vmatpush1.msra.mxu0 %v4162
        %4218 = vmatprep.subr.mxu0 0.0
        %4219 = vmatpush1.msra.mxu0 %v4163
        %4220 = vmatprep.subr.mxu0 0.0
        %4221 = vmatpush1.msra.mxu0 %v4164
        %4222 = vmatprep.subr.mxu0 0.0
        %4223 = vmatpush1.msra.mxu0 %v4165
        %4224 = vmatprep.subr.mxu0 0.0
        %4225 = vmatpush1.msra.mxu0 %v4166
        %4226 = vmatprep.subr.mxu0 0.0
        %4227 = vmatpush1.msra.mxu0 %v4167
        %4228 = vmatprep.subr.mxu0 0.0
        %4229 = vmatpush1.msra.mxu0 %v4168
        %4230 = vmatprep.subr.mxu0 0.0
        %4231 = vmatpush1.msra.mxu0 %v4169
        %4232 = vmatprep.subr.mxu0 0.0
        %4233 = vmatpush1.msra.mxu0 %v4170
        %4234 = vmatprep.subr.mxu0 0.0
        %4235 = vmatpush1.msra.mxu0 %v4171
        %4236 = vmatprep.mubr.f32.mxu0 %v1055
        %4237 = vmatmul.mubr.f32.gmra.mrb[0].mxu0 %v1054
        %v4238 = vpop.f32.mrb[0].mxu0
        %v4239 = vadd.f32 0.0, %v4238
        %v4240 = vpop.f32.mrb[0].mxu0
        %4241 = vdwg.mxu0
        %v4242 = vmul.f32 %v4239, 0.03125
        %v4243 = vmul.f32 %v4139, %v4139
        %v4244 = vsub.f32 %v4242, %v4243
        %v4245 = vmax.f32 %v4244, 0.0
        %v4246 = vadd.f32 %v4245, 1e-05
        %v4247 = vrsqrt.pop %v4246
        %v4248 = vlaneseq
        %v4249 = vshrl.u32 %v4248, 7
        %v4250 = vsub.s32 7, %v4249
        %v4251 = vrot.slane %v1088, %v4250
        %v4252 = vmul.f32 %v4251, %v4247
        %v4253 = vmul.f32 %v4139, %v4252
        %v4254 = vlaneseq
        %v4255 = vshrl.u32 %v4254, 7
        %v4256 = vsub.s32 0, %v4255
        %v4257 = vrot.slane %v1089, %v4256
        %v4258 = vsub.f32 %v4257, %v4253
        %4259 = vmatprep.subr.mxu0 0.0
        %4260 = vmatpush1.msra.mxu0 %v4252
        %4261 = vmatprep.subr.mxu0 0.0
        %4262 = vmatpush1.msra.mxu0 0.0
        %4263 = vmatprep.subr.mxu0 0.0
        %4264 = vmatpush1.msra.mxu0 0.0
        %4265 = vmatprep.subr.mxu0 0.0
        %4266 = vmatpush1.msra.mxu0 0.0
        %4267 = vmatprep.subr.mxu0 0.0
        %4268 = vmatpush1.msra.mxu0 0.0
        %4269 = vmatprep.subr.mxu0 0.0
        %4270 = vmatpush1.msra.mxu0 0.0
        %4271 = vmatprep.subr.mxu0 0.0
        %4272 = vmatpush1.msra.mxu0 0.0
        %4273 = vmatprep.subr.mxu0 0.0
        %4274 = vmatpush1.msra.mxu0 0.0
        %4275 = vmatprep.subr.mxu0 0.0
        %4276 = vmatpush1.msra.mxu0 0.0
        %4277 = vmatprep.subr.mxu0 0.0
        %4278 = vmatpush1.msra.mxu0 0.0
        %4279 = vmatprep.subr.mxu0 0.0
        %4280 = vmatpush1.msra.mxu0 0.0
        %4281 = vmatprep.subr.mxu0 0.0
        %4282 = vmatpush1.msra.mxu0 0.0
        %4283 = vmatprep.subr.mxu0 0.0
        %4284 = vmatpush1.msra.mxu0 0.0
        %4285 = vmatprep.subr.mxu0 0.0
        %4286 = vmatpush1.msra.mxu0 0.0
        %4287 = vmatprep.subr.mxu0 0.0
        %4288 = vmatpush1.msra.mxu0 0.0
        %4289 = vmatprep.subr.mxu0 0.0
        %4290 = vmatpush1.msra.mxu0 0.0
        %4291 = vmatprep.subr.mxu0 0.0
        %4292 = vmatpush1.msra.mxu0 0.0
        %4293 = vmatprep.subr.mxu0 0.0
        %4294 = vmatpush1.msra.mxu0 0.0
        %4295 = vmatprep.subr.mxu0 0.0
        %4296 = vmatpush1.msra.mxu0 0.0
        %4297 = vmatprep.subr.mxu0 0.0
        %4298 = vmatpush1.msra.mxu0 0.0
        %4299 = vmatprep.subr.mxu0 0.0
        %4300 = vmatpush1.msra.mxu0 0.0
        %4301 = vmatprep.subr.mxu0 0.0
        %4302 = vmatpush1.msra.mxu0 0.0
        %4303 = vmatprep.subr.mxu0 0.0
        %4304 = vmatpush1.msra.mxu0 0.0
        %4305 = vmatprep.subr.mxu0 0.0
        %4306 = vmatpush1.msra.mxu0 0.0
        %4307 = vmatprep.subr.mxu0 0.0
        %4308 = vmatpush1.msra.mxu0 0.0
        %4309 = vmatprep.subr.mxu0 0.0
        %4310 = vmatpush1.msra.mxu0 0.0
        %4311 = vmatprep.subr.mxu0 0.0
        %4312 = vmatpush1.msra.mxu0 0.0
        %4313 = vmatprep.subr.mxu0 0.0
        %4314 = vmatpush1.msra.mxu0 0.0
        %4315 = vmatprep.subr.mxu0 0.0
        %4316 = vmatpush1.msra.mxu0 0.0
        %4317 = vmatprep.subr.mxu0 0.0
        %4318 = vmatpush1.msra.mxu0 0.0
        %4319 = vmatprep.subr.mxu0 0.0
        %4320 = vmatpush1.msra.mxu0 0.0
        %4321 = vmatprep.subr.mxu0 0.0
        %4322 = vmatpush1.msra.mxu0 0.0
        %4323 = vmatprep.mubr.f32.mxu0 0.0
        %4324 = vmatmul.mubr.f32.gmra.mrb[0].mxu0 %v1848
        %v4325 = vpop.f32.mrb[0].mxu0
        %v4326 = vadd.f32 0.0, %v4325
        %v4327 = vpop.f32.mrb[0].mxu0
        %4328 = vmatprep.mubr.f32.mxu0 0.0
        %4329 = vmatmul.mubr.f32.gmra.mrb[0].mxu0 %v1851
        %v4330 = vpop.f32.mrb[0].mxu0
        %v4331 = vadd.f32 0.0, %v4330
        %v4332 = vpop.f32.mrb[0].mxu0
        %4333 = vmatprep.mubr.f32.mxu0 0.0
        %4334 = vmatmul.mubr.f32.gmra.mrb[0].mxu0 %v1854
        %v4335 = vpop.f32.mrb[0].mxu0
        %v4336 = vadd.f32 0.0, %v4335
        %v4337 = vpop.f32.mrb[0].mxu0
        %4338 = vmatprep.mubr.f32.mxu0 0.0
        %4339 = vmatmul.mubr.f32.gmra.mrb[0].mxu0 %v1857
        %v4340 = vpop.f32.mrb[0].mxu0
        %v4341 = vadd.f32 0.0, %v4340
        %v4342 = vpop.f32.mrb[0].mxu0
        %4343 = vmatprep.mubr.f32.mxu0 0.0
        %4344 = vmatmul.mubr.f32.gmra.mrb[0].mxu0 %v1860
        %v4345 = vpop.f32.mrb[0].mxu0
        %v4346 = vadd.f32 0.0, %v4345
        %v4347 = vpop.f32.mrb[0].mxu0
        %4348 = vmatprep.mubr.f32.mxu0 0.0
        %4349 = vmatmul.mubr.f32.gmra.mrb[0].mxu0 %v1863
        %v4350 = vpop.f32.mrb[0].mxu0
        %v4351 = vadd.f32 0.0, %v4350
        %v4352 = vpop.f32.mrb[0].mxu0
        %4353 = vmatprep.mubr.f32.mxu0 0.0
        %4354 = vmatmul.mubr.f32.gmra.mrb[0].mxu0 %v1866
        %v4355 = vpop.f32.mrb[0].mxu0
        %v4356 = vadd.f32 0.0, %v4355
        %v4357 = vpop.f32.mrb[0].mxu0
        %4358 = vmatprep.mubr.f32.mxu0 0.0
        %4359 = vmatmul.mubr.f32.gmra.mrb[0].mxu0 %v1869
        %v4360 = vpop.f32.mrb[0].mxu0
        %v4361 = vadd.f32 0.0, %v4360
        %v4362 = vpop.f32.mrb[0].mxu0
        %4363 = vmatprep.mubr.f32.mxu0 0.0
        %4364 = vmatmul.mubr.f32.gmra.mrb[0].mxu0 %v1872
        %v4365 = vpop.f32.mrb[0].mxu0
        %v4366 = vadd.f32 0.0, %v4365
        %v4367 = vpop.f32.mrb[0].mxu0
        %4368 = vmatprep.mubr.f32.mxu0 0.0
        %4369 = vmatmul.mubr.f32.gmra.mrb[0].mxu0 %v1875
        %v4370 = vpop.f32.mrb[0].mxu0
        %v4371 = vadd.f32 0.0, %v4370
        %v4372 = vpop.f32.mrb[0].mxu0
        %4373 = vmatprep.mubr.f32.mxu0 0.0
        %4374 = vmatmul.mubr.f32.gmra.mrb[0].mxu0 %v1878
        %v4375 = vpop.f32.mrb[0].mxu0
        %v4376 = vadd.f32 0.0, %v4375
        %v4377 = vpop.f32.mrb[0].mxu0
        %4378 = vmatprep.mubr.f32.mxu0 0.0
        %4379 = vmatmul.mubr.f32.gmra.mrb[0].mxu0 %v1881
        %v4380 = vpop.f32.mrb[0].mxu0
        %v4381 = vadd.f32 0.0, %v4380
        %v4382 = vpop.f32.mrb[0].mxu0
        %4383 = vmatprep.mubr.f32.mxu0 0.0
        %4384 = vmatmul.mubr.f32.gmra.mrb[0].mxu0 %v1884
        %v4385 = vpop.f32.mrb[0].mxu0
        %v4386 = vadd.f32 0.0, %v4385
        %v4387 = vpop.f32.mrb[0].mxu0
        %4388 = vmatprep.mubr.f32.mxu0 0.0
        %4389 = vmatmul.mubr.f32.gmra.mrb[0].mxu0 %v1887
        %v4390 = vpop.f32.mrb[0].mxu0
        %v4391 = vadd.f32 0.0, %v4390
        %v4392 = vpop.f32.mrb[0].mxu0
        %4393 = vmatprep.mubr.f32.mxu0 0.0
        %4394 = vmatmul.mubr.f32.gmra.mrb[0].mxu0 %v1890
        %v4395 = vpop.f32.mrb[0].mxu0
        %v4396 = vadd.f32 0.0, %v4395
        %v4397 = vpop.f32.mrb[0].mxu0
        %4398 = vmatprep.mubr.f32.mxu0 0.0
        %4399 = vmatmul.mubr.f32.gmra.mrb[0].mxu0 %v1893
        %v4400 = vpop.f32.mrb[0].mxu0
        %v4401 = vadd.f32 0.0, %v4400
        %v4402 = vpop.f32.mrb[0].mxu0
        %4403 = vmatprep.mubr.f32.mxu0 0.0
        %4404 = vmatmul.mubr.f32.gmra.mrb[0].mxu0 %v1896
        %v4405 = vpop.f32.mrb[0].mxu0
        %v4406 = vadd.f32 0.0, %v4405
        %v4407 = vpop.f32.mrb[0].mxu0
        %4408 = vmatprep.mubr.f32.mxu0 0.0
        %4409 = vmatmul.mubr.f32.gmra.mrb[0].mxu0 %v1899
        %v4410 = vpop.f32.mrb[0].mxu0
        %v4411 = vadd.f32 0.0, %v4410
        %v4412 = vpop.f32.mrb[0].mxu0
        %4413 = vmatprep.mubr.f32.mxu0 0.0
        %4414 = vmatmul.mubr.f32.gmra.mrb[0].mxu0 %v1902
        %v4415 = vpop.f32.mrb[0].mxu0
        %v4416 = vadd.f32 0.0, %v4415
        %v4417 = vpop.f32.mrb[0].mxu0
        %4418 = vmatprep.mubr.f32.mxu0 0.0
        %4419 = vmatmul.mubr.f32.gmra.mrb[0].mxu0 %v1905
        %v4420 = vpop.f32.mrb[0].mxu0
        %v4421 = vadd.f32 0.0, %v4420
        %v4422 = vpop.f32.mrb[0].mxu0
        %4423 = vmatprep.mubr.f32.mxu0 0.0
        %4424 = vmatmul.mubr.f32.gmra.mrb[0].mxu0 %v1908
        %v4425 = vpop.f32.mrb[0].mxu0
        %v4426 = vadd.f32 0.0, %v4425
        %v4427 = vpop.f32.mrb[0].mxu0
        %4428 = vmatprep.mubr.f32.mxu0 0.0
        %4429 = vmatmul.mubr.f32.gmra.mrb[0].mxu0 %v1911
        %v4430 = vpop.f32.mrb[0].mxu0
        %v4431 = vadd.f32 0.0, %v4430
        %v4432 = vpop.f32.mrb[0].mxu0
        %4433 = vmatprep.mubr.f32.mxu0 0.0
        %4434 = vmatmul.mubr.f32.gmra.mrb[0].mxu0 %v1914
        %v4435 = vpop.f32.mrb[0].mxu0
        %v4436 = vadd.f32 0.0, %v4435
        %v4437 = vpop.f32.mrb[0].mxu0
        %4438 = vmatprep.mubr.f32.mxu0 0.0
        %4439 = vmatmul.mubr.f32.gmra.mrb[0].mxu0 %v1917
        %v4440 = vpop.f32.mrb[0].mxu0
        %v4441 = vadd.f32 0.0, %v4440
        %v4442 = vpop.f32.mrb[0].mxu0
        %4443 = vmatprep.mubr.f32.mxu0 0.0
        %4444 = vmatmul.mubr.f32.gmra.mrb[0].mxu0 %v1920
        %v4445 = vpop.f32.mrb[0].mxu0
        %v4446 = vadd.f32 0.0, %v4445
        %v4447 = vpop.f32.mrb[0].mxu0
        %4448 = vmatprep.mubr.f32.mxu0 0.0
        %4449 = vmatmul.mubr.f32.gmra.mrb[0].mxu0 %v1923
        %v4450 = vpop.f32.mrb[0].mxu0
        %v4451 = vadd.f32 0.0, %v4450
        %v4452 = vpop.f32.mrb[0].mxu0
        %4453 = vmatprep.mubr.f32.mxu0 0.0
        %4454 = vmatmul.mubr.f32.gmra.mrb[0].mxu0 %v1926
        %v4455 = vpop.f32.mrb[0].mxu0
        %v4456 = vadd.f32 0.0, %v4455
        %v4457 = vpop.f32.mrb[0].mxu0
        %4458 = vmatprep.mubr.f32.mxu0 0.0
        %4459 = vmatmul.mubr.f32.gmra.mrb[0].mxu0 %v1929
        %v4460 = vpop.f32.mrb[0].mxu0
        %v4461 = vadd.f32 0.0, %v4460
        %v4462 = vpop.f32.mrb[0].mxu0
        %4463 = vmatprep.mubr.f32.mxu0 0.0
        %4464 = vmatmul.mubr.f32.gmra.mrb[0].mxu0 %v1932
        %v4465 = vpop.f32.mrb[0].mxu0
        %v4466 = vadd.f32 0.0, %v4465
        %v4467 = vpop.f32.mrb[0].mxu0
        %4468 = vmatprep.mubr.f32.mxu0 0.0
        %4469 = vmatmul.mubr.f32.gmra.mrb[0].mxu0 %v1935
        %v4470 = vpop.f32.mrb[0].mxu0
        %v4471 = vadd.f32 0.0, %v4470
        %v4472 = vpop.f32.mrb[0].mxu0
        %4473 = vmatprep.mubr.f32.mxu0 0.0
        %4474 = vmatmul.mubr.f32.gmra.mrb[0].mxu0 %v1938
        %v4475 = vpop.f32.mrb[0].mxu0
        %v4476 = vadd.f32 0.0, %v4475
        %v4477 = vpop.f32.mrb[0].mxu0
        %4478 = vmatprep.mubr.f32.mxu0 0.0
        %4479 = vmatmul.mubr.f32.gmra.mrb[0].mxu0 %v1941
        %v4480 = vpop.f32.mrb[0].mxu0
        %v4481 = vadd.f32 0.0, %v4480
        %v4482 = vpop.f32.mrb[0].mxu0
        %4483 = vdwg.mxu0
        %4484 = vmatprep.subr.mxu0 0.0
        %4485 = vmatpush1.msra.mxu0 %v4258
        %4486 = vmatprep.subr.mxu0 0.0
        %4487 = vmatpush1.msra.mxu0 0.0
        %4488 = vmatprep.subr.mxu0 0.0
        %4489 = vmatpush1.msra.mxu0 0.0
        %4490 = vmatprep.subr.mxu0 0.0
        %4491 = vmatpush1.msra.mxu0 0.0
        %4492 = vmatprep.subr.mxu0 0.0
        %4493 = vmatpush1.msra.mxu0 0.0
        %4494 = vmatprep.subr.mxu0 0.0
        %4495 = vmatpush1.msra.mxu0 0.0
        %4496 = vmatprep.subr.mxu0 0.0
        %4497 = vmatpush1.msra.mxu0 0.0
        %4498 = vmatprep.subr.mxu0 0.0
        %4499 = vmatpush1.msra.mxu0 0.0
        %4500 = vmatprep.subr.mxu0 0.0
        %4501 = vmatpush1.msra.mxu0 0.0
        %4502 = vmatprep.subr.mxu0 0.0
        %4503 = vmatpush1.msra.mxu0 0.0
        %4504 = vmatprep.subr.mxu0 0.0
        %4505 = vmatpush1.msra.mxu0 0.0
        %4506 = vmatprep.subr.mxu0 0.0
        %4507 = vmatpush1.msra.mxu0 0.0
        %4508 = vmatprep.subr.mxu0 0.0
        %4509 = vmatpush1.msra.mxu0 0.0
        %4510 = vmatprep.subr.mxu0 0.0
        %4511 = vmatpush1.msra.mxu0 0.0
        %4512 = vmatprep.subr.mxu0 0.0
        %4513 = vmatpush1.msra.mxu0 0.0
        %4514 = vmatprep.subr.mxu0 0.0
        %4515 = vmatpush1.msra.mxu0 0.0
        %4516 = vmatprep.subr.mxu0 0.0
        %4517 = vmatpush1.msra.mxu0 0.0
        %4518 = vmatprep.subr.mxu0 0.0
        %4519 = vmatpush1.msra.mxu0 0.0
        %4520 = vmatprep.subr.mxu0 0.0
        %4521 = vmatpush1.msra.mxu0 0.0
        %4522 = vmatprep.subr.mxu0 0.0
        %4523 = vmatpush1.msra.mxu0 0.0
        %4524 = vmatprep.subr.mxu0 0.0
        %4525 = vmatpush1.msra.mxu0 0.0
        %4526 = vmatprep.subr.mxu0 0.0
        %4527 = vmatpush1.msra.mxu0 0.0
        %4528 = vmatprep.subr.mxu0 0.0
        %4529 = vmatpush1.msra.mxu0 0.0
        %4530 = vmatprep.subr.mxu0 0.0
        %4531 = vmatpush1.msra.mxu0 0.0
        %4532 = vmatprep.subr.mxu0 0.0
        %4533 = vmatpush1.msra.mxu0 0.0
        %4534 = vmatprep.subr.mxu0 0.0
        %4535 = vmatpush1.msra.mxu0 0.0
        %4536 = vmatprep.subr.mxu0 0.0
        %4537 = vmatpush1.msra.mxu0 0.0
        %4538 = vmatprep.subr.mxu0 0.0
        %4539 = vmatpush1.msra.mxu0 0.0
        %4540 = vmatprep.subr.mxu0 0.0
        %4541 = vmatpush1.msra.mxu0 0.0
        %4542 = vmatprep.subr.mxu0 0.0
        %4543 = vmatpush1.msra.mxu0 0.0
        %4544 = vmatprep.subr.mxu0 0.0
        %4545 = vmatpush1.msra.mxu0 0.0
        %4546 = vmatprep.subr.mxu0 0.0
        %4547 = vmatpush1.msra.mxu0 0.0
        %4548 = vmatprep.mubr.f32.mxu0 0.0
        %4549 = vmatmul.mubr.f32.gmra.mrb[0].mxu0 %v1848
        %v4550 = vpop.f32.mrb[0].mxu0
        %v4551 = vadd.f32 0.0, %v4550
        %v4552 = vpop.f32.mrb[0].mxu0
        %4553 = vmatprep.mubr.f32.mxu0 0.0
        %4554 = vmatmul.mubr.f32.gmra.mrb[0].mxu0 %v1851
        %v4555 = vpop.f32.mrb[0].mxu0
        %v4556 = vadd.f32 0.0, %v4555
        %v4557 = vpop.f32.mrb[0].mxu0
        %4558 = vmatprep.mubr.f32.mxu0 0.0
        %4559 = vmatmul.mubr.f32.gmra.mrb[0].mxu0 %v1854
        %v4560 = vpop.f32.mrb[0].mxu0
        %v4561 = vadd.f32 0.0, %v4560
        %v4562 = vpop.f32.mrb[0].mxu0
        %4563 = vmatprep.mubr.f32.mxu0 0.0
        %4564 = vmatmul.mubr.f32.gmra.mrb[0].mxu0 %v1857
        %v4565 = vpop.f32.mrb[0].mxu0
        %v4566 = vadd.f32 0.0, %v4565
        %v4567 = vpop.f32.mrb[0].mxu0
        %4568 = vmatprep.mubr.f32.mxu0 0.0
        %4569 = vmatmul.mubr.f32.gmra.mrb[0].mxu0 %v1860
        %v4570 = vpop.f32.mrb[0].mxu0
        %v4571 = vadd.f32 0.0, %v4570
        %v4572 = vpop.f32.mrb[0].mxu0
        %4573 = vmatprep.mubr.f32.mxu0 0.0
        %4574 = vmatmul.mubr.f32.gmra.mrb[0].mxu0 %v1863
        %v4575 = vpop.f32.mrb[0].mxu0
        %v4576 = vadd.f32 0.0, %v4575
        %v4577 = vpop.f32.mrb[0].mxu0
        %4578 = vmatprep.mubr.f32.mxu0 0.0
        %4579 = vmatmul.mubr.f32.gmra.mrb[0].mxu0 %v1866
        %v4580 = vpop.f32.mrb[0].mxu0
        %v4581 = vadd.f32 0.0, %v4580
        %v4582 = vpop.f32.mrb[0].mxu0
        %4583 = vmatprep.mubr.f32.mxu0 0.0
        %4584 = vmatmul.mubr.f32.gmra.mrb[0].mxu0 %v1869
        %v4585 = vpop.f32.mrb[0].mxu0
        %v4586 = vadd.f32 0.0, %v4585
        %v4587 = vpop.f32.mrb[0].mxu0
        %4588 = vmatprep.mubr.f32.mxu0 0.0
        %4589 = vmatmul.mubr.f32.gmra.mrb[0].mxu0 %v1872
        %v4590 = vpop.f32.mrb[0].mxu0
        %v4591 = vadd.f32 0.0, %v4590
        %v4592 = vpop.f32.mrb[0].mxu0
        %4593 = vmatprep.mubr.f32.mxu0 0.0
        %4594 = vmatmul.mubr.f32.gmra.mrb[0].mxu0 %v1875
        %v4595 = vpop.f32.mrb[0].mxu0
        %v4596 = vadd.f32 0.0, %v4595
        %v4597 = vpop.f32.mrb[0].mxu0
        %4598 = vmatprep.mubr.f32.mxu0 0.0
        %4599 = vmatmul.mubr.f32.gmra.mrb[0].mxu0 %v1878
        %v4600 = vpop.f32.mrb[0].mxu0
        %v4601 = vadd.f32 0.0, %v4600
        %v4602 = vpop.f32.mrb[0].mxu0
        %4603 = vmatprep.mubr.f32.mxu0 0.0
        %4604 = vmatmul.mubr.f32.gmra.mrb[0].mxu0 %v1881
        %v4605 = vpop.f32.mrb[0].mxu0
        %v4606 = vadd.f32 0.0, %v4605
        %v4607 = vpop.f32.mrb[0].mxu0
        %4608 = vmatprep.mubr.f32.mxu0 0.0
        %4609 = vmatmul.mubr.f32.gmra.mrb[0].mxu0 %v1884
        %v4610 = vpop.f32.mrb[0].mxu0
        %v4611 = vadd.f32 0.0, %v4610
        %v4612 = vpop.f32.mrb[0].mxu0
        %4613 = vmatprep.mubr.f32.mxu0 0.0
        %4614 = vmatmul.mubr.f32.gmra.mrb[0].mxu0 %v1887
        %v4615 = vpop.f32.mrb[0].mxu0
        %v4616 = vadd.f32 0.0, %v4615
        %v4617 = vpop.f32.mrb[0].mxu0
        %4618 = vmatprep.mubr.f32.mxu0 0.0
        %4619 = vmatmul.mubr.f32.gmra.mrb[0].mxu0 %v1890
        %v4620 = vpop.f32.mrb[0].mxu0
        %v4621 = vadd.f32 0.0, %v4620
        %v4622 = vpop.f32.mrb[0].mxu0
        %4623 = vmatprep.mubr.f32.mxu0 0.0
        %4624 = vmatmul.mubr.f32.gmra.mrb[0].mxu0 %v1893
        %v4625 = vpop.f32.mrb[0].mxu0
        %v4626 = vadd.f32 0.0, %v4625
        %v4627 = vpop.f32.mrb[0].mxu0
        %4628 = vmatprep.mubr.f32.mxu0 0.0
        %4629 = vmatmul.mubr.f32.gmra.mrb[0].mxu0 %v1896
        %v4630 = vpop.f32.mrb[0].mxu0
        %v4631 = vadd.f32 0.0, %v4630
        %v4632 = vpop.f32.mrb[0].mxu0
        %4633 = vmatprep.mubr.f32.mxu0 0.0
        %4634 = vmatmul.mubr.f32.gmra.mrb[0].mxu0 %v1899
        %v4635 = vpop.f32.mrb[0].mxu0
        %v4636 = vadd.f32 0.0, %v4635
        %v4637 = vpop.f32.mrb[0].mxu0
        %4638 = vmatprep.mubr.f32.mxu0 0.0
        %4639 = vmatmul.mubr.f32.gmra.mrb[0].mxu0 %v1902
        %v4640 = vpop.f32.mrb[0].mxu0
        %v4641 = vadd.f32 0.0, %v4640
        %v4642 = vpop.f32.mrb[0].mxu0
        %4643 = vmatprep.mubr.f32.mxu0 0.0
        %4644 = vmatmul.mubr.f32.gmra.mrb[0].mxu0 %v1905
        %v4645 = vpop.f32.mrb[0].mxu0
        %v4646 = vadd.f32 0.0, %v4645
        %v4647 = vpop.f32.mrb[0].mxu0
        %4648 = vmatprep.mubr.f32.mxu0 0.0
        %4649 = vmatmul.mubr.f32.gmra.mrb[0].mxu0 %v1908
        %v4650 = vpop.f32.mrb[0].mxu0
        %v4651 = vadd.f32 0.0, %v4650
        %v4652 = vpop.f32.mrb[0].mxu0
        %4653 = vmatprep.mubr.f32.mxu0 0.0
        %4654 = vmatmul.mubr.f32.gmra.mrb[0].mxu0 %v1911
        %v4655 = vpop.f32.mrb[0].mxu0
        %v4656 = vadd.f32 0.0, %v4655
        %v4657 = vpop.f32.mrb[0].mxu0
        %4658 = vmatprep.mubr.f32.mxu0 0.0
        %4659 = vmatmul.mubr.f32.gmra.mrb[0].mxu0 %v1914
        %v4660 = vpop.f32.mrb[0].mxu0
        %v4661 = vadd.f32 0.0, %v4660
        %v4662 = vpop.f32.mrb[0].mxu0
        %4663 = vmatprep.mubr.f32.mxu0 0.0
        %4664 = vmatmul.mubr.f32.gmra.mrb[0].mxu0 %v1917
        %v4665 = vpop.f32.mrb[0].mxu0
        %v4666 = vadd.f32 0.0, %v4665
        %v4667 = vpop.f32.mrb[0].mxu0
        %4668 = vmatprep.mubr.f32.mxu0 0.0
        %4669 = vmatmul.mubr.f32.gmra.mrb[0].mxu0 %v1920
        %v4670 = vpop.f32.mrb[0].mxu0
        %v4671 = vadd.f32 0.0, %v4670
        %v4672 = vpop.f32.mrb[0].mxu0
        %4673 = vmatprep.mubr.f32.mxu0 0.0
        %4674 = vmatmul.mubr.f32.gmra.mrb[0].mxu0 %v1923
        %v4675 = vpop.f32.mrb[0].mxu0
        %v4676 = vadd.f32 0.0, %v4675
        %v4677 = vpop.f32.mrb[0].mxu0
        %4678 = vmatprep.mubr.f32.mxu0 0.0
        %4679 = vmatmul.mubr.f32.gmra.mrb[0].mxu0 %v1926
        %v4680 = vpop.f32.mrb[0].mxu0
        %v4681 = vadd.f32 0.0, %v4680
        %v4682 = vpop.f32.mrb[0].mxu0
        %4683 = vmatprep.mubr.f32.mxu0 0.0
        %4684 = vmatmul.mubr.f32.gmra.mrb[0].mxu0 %v1929
        %v4685 = vpop.f32.mrb[0].mxu0
        %v4686 = vadd.f32 0.0, %v4685
        %v4687 = vpop.f32.mrb[0].mxu0
        %4688 = vmatprep.mubr.f32.mxu0 0.0
        %4689 = vmatmul.mubr.f32.gmra.mrb[0].mxu0 %v1932
        %v4690 = vpop.f32.mrb[0].mxu0
        %v4691 = vadd.f32 0.0, %v4690
        %v4692 = vpop.f32.mrb[0].mxu0
        %4693 = vmatprep.mubr.f32.mxu0 0.0
        %4694 = vmatmul.mubr.f32.gmra.mrb[0].mxu0 %v1935
        %v4695 = vpop.f32.mrb[0].mxu0
        %v4696 = vadd.f32 0.0, %v4695
        %v4697 = vpop.f32.mrb[0].mxu0
        %4698 = vmatprep.mubr.f32.mxu0 0.0
        %4699 = vmatmul.mubr.f32.gmra.mrb[0].mxu0 %v1938
        %v4700 = vpop.f32.mrb[0].mxu0
        %v4701 = vadd.f32 0.0, %v4700
        %v4702 = vpop.f32.mrb[0].mxu0
        %4703 = vmatprep.mubr.f32.mxu0 0.0
        %4704 = vmatmul.mubr.f32.gmra.mrb[0].mxu0 %v1941
        %v4705 = vpop.f32.mrb[0].mxu0
        %v4706 = vadd.f32 0.0, %v4705
        %v4707 = vpop.f32.mrb[0].mxu0
        %4708 = vdwg.mxu0
        %v4709 = vmul.f32 %v4037, %v4326
        %v4710 = vmul.f32 %v4038, %v4331
        %v4711 = vmul.f32 %v4039, %v4336
        %v4712 = vmul.f32 %v4040, %v4341
        %v4713 = vmul.f32 %v4041, %v4346
        %v4714 = vmul.f32 %v4042, %v4351
        %v4715 = vmul.f32 %v4043, %v4356
        %v4716 = vmul.f32 %v4044, %v4361
        %v4717 = vmul.f32 %v4045, %v4366
        %v4718 = vmul.f32 %v4046, %v4371
        %v4719 = vmul.f32 %v4047, %v4376
        %v4720 = vmul.f32 %v4048, %v4381
        %v4721 = vmul.f32 %v4049, %v4386
        %v4722 = vmul.f32 %v4050, %v4391
        %v4723 = vmul.f32 %v4051, %v4396
        %v4724 = vmul.f32 %v4052, %v4401
        %v4725 = vmul.f32 %v4053, %v4406
        %v4726 = vmul.f32 %v4054, %v4411
        %v4727 = vmul.f32 %v4055, %v4416
        %v4728 = vmul.f32 %v4056, %v4421
        %v4729 = vmul.f32 %v4057, %v4426
        %v4730 = vmul.f32 %v4058, %v4431
        %v4731 = vmul.f32 %v4059, %v4436
        %v4732 = vmul.f32 %v4060, %v4441
        %v4733 = vmul.f32 %v4061, %v4446
        %v4734 = vmul.f32 %v4062, %v4451
        %v4735 = vmul.f32 %v4063, %v4456
        %v4736 = vmul.f32 %v4064, %v4461
        %v4737 = vmul.f32 %v4065, %v4466
        %v4738 = vmul.f32 %v4066, %v4471
        %v4739 = vmul.f32 %v4067, %v4476
        %v4740 = vmul.f32 %v4068, %v4481
        %v4741 = vadd.f32 %v4709, %v4551
        %v4742 = vadd.f32 %v4710, %v4556
        %v4743 = vadd.f32 %v4711, %v4561
        %v4744 = vadd.f32 %v4712, %v4566
        %v4745 = vadd.f32 %v4713, %v4571
        %v4746 = vadd.f32 %v4714, %v4576
        %v4747 = vadd.f32 %v4715, %v4581
        %v4748 = vadd.f32 %v4716, %v4586
        %v4749 = vadd.f32 %v4717, %v4591
        %v4750 = vadd.f32 %v4718, %v4596
        %v4751 = vadd.f32 %v4719, %v4601
        %v4752 = vadd.f32 %v4720, %v4606
        %v4753 = vadd.f32 %v4721, %v4611
        %v4754 = vadd.f32 %v4722, %v4616
        %v4755 = vadd.f32 %v4723, %v4621
        %v4756 = vadd.f32 %v4724, %v4626
        %v4757 = vadd.f32 %v4725, %v4631
        %v4758 = vadd.f32 %v4726, %v4636
        %v4759 = vadd.f32 %v4727, %v4641
        %v4760 = vadd.f32 %v4728, %v4646
        %v4761 = vadd.f32 %v4729, %v4651
        %v4762 = vadd.f32 %v4730, %v4656
        %v4763 = vadd.f32 %v4731, %v4661
        %v4764 = vadd.f32 %v4732, %v4666
        %v4765 = vadd.f32 %v4733, %v4671
        %v4766 = vadd.f32 %v4734, %v4676
        %v4767 = vadd.f32 %v4735, %v4681
        %v4768 = vadd.f32 %v4736, %v4686
        %v4769 = vadd.f32 %v4737, %v4691
        %v4770 = vadd.f32 %v4738, %v4696
        %v4771 = vadd.f32 %v4739, %v4701
        %v4772 = vadd.f32 %v4740, %v4706
        %v4773 = vpack.c.bf16 %v4742, %v4741
        %v4774 = vpack.c.bf16 %v4744, %v4743
        %v4775 = vpack.c.bf16 %v4746, %v4745
        %v4776 = vpack.c.bf16 %v4748, %v4747
        %v4777 = vpack.c.bf16 %v4750, %v4749
        %v4778 = vpack.c.bf16 %v4752, %v4751
        %v4779 = vpack.c.bf16 %v4754, %v4753
        %v4780 = vpack.c.bf16 %v4756, %v4755
        %v4781 = vpack.c.bf16 %v4758, %v4757
        %v4782 = vpack.c.bf16 %v4760, %v4759
        %v4783 = vpack.c.bf16 %v4762, %v4761
        %v4784 = vpack.c.bf16 %v4764, %v4763
        %v4785 = vpack.c.bf16 %v4766, %v4765
        %v4786 = vpack.c.bf16 %v4768, %v4767
        %v4787 = vpack.c.bf16 %v4770, %v4769
        %v4788 = vpack.c.bf16 %v4772, %v4771
        %v4789 = vld [vmem:[#allocation10] sm:$0xf]
        %v4790 = vld [vmem:[#allocation10 + $0x4] sm:$0xf]
        %v4791 = vld [vmem:[#allocation10 + $0x8] sm:$0xf]
        %v4792 = vld [vmem:[#allocation10 + $0xc] sm:$0xf]
        %v4793 = vld [vmem:[#allocation10 + $0x10] sm:$0xf]
        %v4794 = vld [vmem:[#allocation10 + $0x14] sm:$0xf]
        %v4795 = vld [vmem:[#allocation10 + $0x18] sm:$0xf]
        %v4796 = vld [vmem:[#allocation10 + $0x1c] sm:$0xf]
        %v4797 = vld [vmem:[#allocation10 + $0x20] sm:$0xf]
        %v4798 = vld [vmem:[#allocation10 + $0x24] sm:$0xf]
        %v4799 = vld [vmem:[#allocation10 + $0x28] sm:$0xf]
        %v4800 = vld [vmem:[#allocation10 + $0x2c] sm:$0xf]
        %v4801 = vld [vmem:[#allocation10 + $0x30] sm:$0xf]
        %v4802 = vld [vmem:[#allocation10 + $0x34] sm:$0xf]
        %v4803 = vld [vmem:[#allocation10 + $0x38] sm:$0xf]
        %v4804 = vld [vmem:[#allocation10 + $0x3c] sm:$0xf]
        %v4805 = vld [vmem:[#allocation10 + $0x40] sm:$0xf]
        %v4806 = vld [vmem:[#allocation10 + $0x44] sm:$0xf]
        %v4807 = vld [vmem:[#allocation10 + $0x48] sm:$0xf]
        %v4808 = vld [vmem:[#allocation10 + $0x4c] sm:$0xf]
        %v4809 = vld [vmem:[#allocation10 + $0x50] sm:$0xf]
        %v4810 = vld [vmem:[#allocation10 + $0x54] sm:$0xf]
        %v4811 = vld [vmem:[#allocation10 + $0x58] sm:$0xf]
        %v4812 = vld [vmem:[#allocation10 + $0x5c] sm:$0xf]
        %v4813 = vld [vmem:[#allocation10 + $0x60] sm:$0xf]
        %v4814 = vld [vmem:[#allocation10 + $0x64] sm:$0xf]
        %v4815 = vld [vmem:[#allocation10 + $0x68] sm:$0xf]
        %v4816 = vld [vmem:[#allocation10 + $0x6c] sm:$0xf]
        %v4817 = vld [vmem:[#allocation10 + $0x70] sm:$0xf]
        %v4818 = vld [vmem:[#allocation10 + $0x74] sm:$0xf]
        %v4819 = vld [vmem:[#allocation10 + $0x78] sm:$0xf]
        %v4820 = vld [vmem:[#allocation10 + $0x7c] sm:$0xf]
        %v4821 = vld [vmem:[#allocation10 + $0x80] sm:$0xf]
        %v4822 = vld [vmem:[#allocation10 + $0x84] sm:$0xf]
        %v4823 = vld [vmem:[#allocation10 + $0x88] sm:$0xf]
        %v4824 = vld [vmem:[#allocation10 + $0x8c] sm:$0xf]
        %v4825 = vld [vmem:[#allocation10 + $0x90] sm:$0xf]
        %v4826 = vld [vmem:[#allocation10 + $0x94] sm:$0xf]
        %v4827 = vld [vmem:[#allocation10 + $0x98] sm:$0xf]
        %v4828 = vld [vmem:[#allocation10 + $0x9c] sm:$0xf]
        %v4829 = vld [vmem:[#allocation10 + $0xa0] sm:$0xf]
        %v4830 = vld [vmem:[#allocation10 + $0xa4] sm:$0xf]
        %v4831 = vld [vmem:[#allocation10 + $0xa8] sm:$0xf]
        %v4832 = vld [vmem:[#allocation10 + $0xac] sm:$0xf]
        %v4833 = vld [vmem:[#allocation10 + $0xb0] sm:$0xf]
        %v4834 = vld [vmem:[#allocation10 + $0xb4] sm:$0xf]
        %v4835 = vld [vmem:[#allocation10 + $0xb8] sm:$0xf]
        %v4836 = vld [vmem:[#allocation10 + $0xbc] sm:$0xf]
        %v4837 = vlaneseq
        %v4838 = vshrl.u32 %v4837, 7
        %v4839 = vsub.s32 1, %v4838
        %v4840 = vrot.slane %v1089, %v4839
        %v4889 = vunpack.c.l.b16 %v4789
        %v4890 = vunpack.c.l.b16 %v4790
        %v4891 = vunpack.c.l.b16 %v4791
        %v4892 = vunpack.c.l.b16 %v4792
        %v4893 = vunpack.c.l.b16 %v4793
        %v4894 = vunpack.c.l.b16 %v4794
        %v4895 = vunpack.c.l.b16 %v4795
        %v4896 = vunpack.c.l.b16 %v4796
        %v4897 = vunpack.c.l.b16 %v4797
        %v4898 = vunpack.c.l.b16 %v4798
        %v4899 = vunpack.c.l.b16 %v4799
        %v4900 = vunpack.c.l.b16 %v4800
        %v4901 = vunpack.c.l.b16 %v4801
        %v4902 = vunpack.c.l.b16 %v4802
        %v4903 = vunpack.c.l.b16 %v4803
        %v4904 = vunpack.c.l.b16 %v4804
        %v4905 = vunpack.c.l.b16 %v4805
        %v4906 = vunpack.c.l.b16 %v4806
        %v4907 = vunpack.c.l.b16 %v4807
        %v4908 = vunpack.c.l.b16 %v4808
        %v4909 = vunpack.c.l.b16 %v4809
        %v4910 = vunpack.c.l.b16 %v4810
        %v4911 = vunpack.c.l.b16 %v4811
        %v4912 = vunpack.c.l.b16 %v4812
        %v4913 = vunpack.c.l.b16 %v4813
        %v4914 = vunpack.c.l.b16 %v4814
        %v4915 = vunpack.c.l.b16 %v4815
        %v4916 = vunpack.c.l.b16 %v4816
        %v4917 = vunpack.c.l.b16 %v4817
        %v4918 = vunpack.c.l.b16 %v4818
        %v4919 = vunpack.c.l.b16 %v4819
        %v4920 = vunpack.c.l.b16 %v4820
        %v4921 = vunpack.c.l.b16 %v4821
        %v4922 = vunpack.c.l.b16 %v4822
        %v4923 = vunpack.c.l.b16 %v4823
        %v4924 = vunpack.c.l.b16 %v4824
        %v4925 = vunpack.c.l.b16 %v4825
        %v4926 = vunpack.c.l.b16 %v4826
        %v4927 = vunpack.c.l.b16 %v4827
        %v4928 = vunpack.c.l.b16 %v4828
        %v4929 = vunpack.c.l.b16 %v4829
        %v4930 = vunpack.c.l.b16 %v4830
        %v4931 = vunpack.c.l.b16 %v4831
        %v4932 = vunpack.c.l.b16 %v4832
        %v4933 = vunpack.c.l.b16 %v4833
        %v4934 = vunpack.c.l.b16 %v4834
        %v4935 = vunpack.c.l.b16 %v4835
        %v4936 = vunpack.c.l.b16 %v4836
        %v4937 = vpack.c.b16 %v4890, %v4889
        %v4938 = vpack.c.b16 %v4892, %v4891
        %v4939 = vpack.c.b16 %v4894, %v4893
        %v4940 = vpack.c.b16 %v4896, %v4895
        %v4941 = vpack.c.b16 %v4898, %v4897
        %v4942 = vpack.c.b16 %v4900, %v4899
        %v4943 = vpack.c.b16 %v4902, %v4901
        %v4944 = vpack.c.b16 %v4904, %v4903
        %v4945 = vpack.c.b16 %v4906, %v4905
        %v4946 = vpack.c.b16 %v4908, %v4907
        %v4947 = vpack.c.b16 %v4910, %v4909
        %v4948 = vpack.c.b16 %v4912, %v4911
        %v4949 = vpack.c.b16 %v4914, %v4913
        %v4950 = vpack.c.b16 %v4916, %v4915
        %v4951 = vpack.c.b16 %v4918, %v4917
        %v4952 = vpack.c.b16 %v4920, %v4919
        %v4953 = vpack.c.b16 %v4922, %v4921
        %v4954 = vpack.c.b16 %v4924, %v4923
        %v4955 = vpack.c.b16 %v4926, %v4925
        %v4956 = vpack.c.b16 %v4928, %v4927
        %v4957 = vpack.c.b16 %v4930, %v4929
        %v4958 = vpack.c.b16 %v4932, %v4931
        %v4959 = vpack.c.b16 %v4934, %v4933
        %v4960 = vpack.c.b16 %v4936, %v4935
        %4985 = vmatprep.subr.bf16.mxu0 0
        %4986 = vmatpush1.bf16.msra.mxu0 %v4937
        %4987 = vmatprep.subr.bf16.mxu0 0
        %4988 = vmatpush1.bf16.msra.mxu0 %v4938
        %4989 = vmatprep.subr.bf16.mxu0 0
        %4990 = vmatpush1.bf16.msra.mxu0 %v4939
        %4991 = vmatprep.subr.bf16.mxu0 0
        %4992 = vmatpush1.bf16.msra.mxu0 %v4940
        %4993 = vmatprep.subr.bf16.mxu0 0
        %4994 = vmatpush1.bf16.msra.mxu0 %v4941
        %4995 = vmatprep.subr.bf16.mxu0 0
        %4996 = vmatpush1.bf16.msra.mxu0 %v4942
        %4997 = vmatprep.subr.bf16.mxu0 0
        %4998 = vmatpush1.bf16.msra.mxu0 %v4943
        %4999 = vmatprep.subr.bf16.mxu0 0
        %5000 = vmatpush1.bf16.msra.mxu0 %v4944
        %5001 = vmatprep.subr.bf16.mxu0 0
        %5002 = vmatpush1.bf16.msra.mxu0 %v4945
        %5003 = vmatprep.subr.bf16.mxu0 0
        %5004 = vmatpush1.bf16.msra.mxu0 %v4946
        %5005 = vmatprep.subr.bf16.mxu0 0
        %5006 = vmatpush1.bf16.msra.mxu0 %v4947
        %5007 = vmatprep.subr.bf16.mxu0 0
        %5008 = vmatpush1.bf16.msra.mxu0 %v4948
        %5009 = vmatprep.subr.bf16.mxu0 0
        %5010 = vmatpush1.bf16.msra.mxu0 %v4949
        %5011 = vmatprep.subr.bf16.mxu0 0
        %5012 = vmatpush1.bf16.msra.mxu0 %v4950
        %5013 = vmatprep.subr.bf16.mxu0 0
        %5014 = vmatpush1.bf16.msra.mxu0 %v4951
        %5015 = vmatprep.subr.bf16.mxu0 0
        %5016 = vmatpush1.bf16.msra.mxu0 %v4952
        %5017 = vmatprep.mubr.bf16.mxu0 %v3615
        %5018 = vmatmul.mubr.bf16.gmra.mrb[0].mxu0 %v2457
        %v5019 = vpop.f32.mrb[0].mxu0
        %v5020 = vadd.f32 %v4840, %v5019
        %v5021 = vpop.f32.mrb[0].mxu0
        %v5022 = vpop.f32.mrb[0].mxu0
        %v5023 = vadd.f32 %v4840, %v5022
        %v5024 = vpop.f32.mrb[0].mxu0
        %5025 = vmatprep.mubr.bf16.mxu0 %v3616
        %5026 = vmatmul.mubr.bf16.gmra.mrb[0].mxu0 %v2458
        %v5027 = vpop.f32.mrb[0].mxu0
        %v5028 = vadd.f32 %v4840, %v5027
        %v5029 = vpop.f32.mrb[0].mxu0
        %v5030 = vpop.f32.mrb[0].mxu0
        %v5031 = vadd.f32 %v4840, %v5030
        %v5032 = vpop.f32.mrb[0].mxu0
        %5033 = vmatprep.mubr.bf16.mxu0 %v3617
        %5034 = vmatmul.mubr.bf16.gmra.mrb[0].mxu0 %v2459
        %v5035 = vpop.f32.mrb[0].mxu0
        %v5036 = vadd.f32 %v4840, %v5035
        %v5037 = vpop.f32.mrb[0].mxu0
        %v5038 = vpop.f32.mrb[0].mxu0
        %v5039 = vadd.f32 %v4840, %v5038
        %v5040 = vpop.f32.mrb[0].mxu0
        %5041 = vmatprep.mubr.bf16.mxu0 %v3618
        %5042 = vmatmul.mubr.bf16.gmra.mrb[0].mxu0 %v2460
        %v5043 = vpop.f32.mrb[0].mxu0
        %v5044 = vadd.f32 %v4840, %v5043
        %v5045 = vpop.f32.mrb[0].mxu0
        %v5046 = vpop.f32.mrb[0].mxu0
        %v5047 = vadd.f32 %v4840, %v5046
        %v5048 = vpop.f32.mrb[0].mxu0
        %5049 = vmatprep.mubr.bf16.mxu0 %v3619
        %5050 = vmatmul.mubr.bf16.gmra.mrb[0].mxu0 %v2461
        %v5051 = vpop.f32.mrb[0].mxu0
        %v5052 = vadd.f32 %v4840, %v5051
        %v5053 = vpop.f32.mrb[0].mxu0
        %v5054 = vpop.f32.mrb[0].mxu0
        %v5055 = vadd.f32 %v4840, %v5054
        %v5056 = vpop.f32.mrb[0].mxu0
        %5057 = vmatprep.mubr.bf16.mxu0 %v3620
        %5058 = vmatmul.mubr.bf16.gmra.mrb[0].mxu0 %v2462
        %v5059 = vpop.f32.mrb[0].mxu0
        %v5060 = vadd.f32 %v4840, %v5059
        %v5061 = vpop.f32.mrb[0].mxu0
        %v5062 = vpop.f32.mrb[0].mxu0
        %v5063 = vadd.f32 %v4840, %v5062
        %v5064 = vpop.f32.mrb[0].mxu0
        %5065 = vmatprep.mubr.bf16.mxu0 %v3621
        %5066 = vmatmul.mubr.bf16.gmra.mrb[0].mxu0 %v2463
        %v5067 = vpop.f32.mrb[0].mxu0
        %v5068 = vadd.f32 %v4840, %v5067
        %v5069 = vpop.f32.mrb[0].mxu0
        %v5070 = vpop.f32.mrb[0].mxu0
        %v5071 = vadd.f32 %v4840, %v5070
        %v5072 = vpop.f32.mrb[0].mxu0
        %5073 = vmatprep.mubr.bf16.mxu0 %v3622
        %5074 = vmatmul.mubr.bf16.gmra.mrb[0].mxu0 %v2464
        %v5075 = vpop.f32.mrb[0].mxu0
        %v5076 = vadd.f32 %v4840, %v5075
        %v5077 = vpop.f32.mrb[0].mxu0
        %v5078 = vpop.f32.mrb[0].mxu0
        %v5079 = vadd.f32 %v4840, %v5078
        %v5080 = vpop.f32.mrb[0].mxu0
        %5081 = vmatprep.mubr.bf16.mxu0 %v3623
        %5082 = vmatmul.mubr.bf16.gmra.mrb[0].mxu0 %v2465
        %v5083 = vpop.f32.mrb[0].mxu0
        %v5084 = vadd.f32 %v4840, %v5083
        %v5085 = vpop.f32.mrb[0].mxu0
        %v5086 = vpop.f32.mrb[0].mxu0
        %v5087 = vadd.f32 %v4840, %v5086
        %v5088 = vpop.f32.mrb[0].mxu0
        %5089 = vmatprep.mubr.bf16.mxu0 %v3624
        %5090 = vmatmul.mubr.bf16.gmra.mrb[0].mxu0 %v2466
        %v5091 = vpop.f32.mrb[0].mxu0
        %v5092 = vadd.f32 %v4840, %v5091
        %v5093 = vpop.f32.mrb[0].mxu0
        %v5094 = vpop.f32.mrb[0].mxu0
        %v5095 = vadd.f32 %v4840, %v5094
        %v5096 = vpop.f32.mrb[0].mxu0
        %5097 = vmatprep.mubr.bf16.mxu0 %v3625
        %5098 = vmatmul.mubr.bf16.gmra.mrb[0].mxu0 %v2467
        %v5099 = vpop.f32.mrb[0].mxu0
        %v5100 = vadd.f32 %v4840, %v5099
        %v5101 = vpop.f32.mrb[0].mxu0
        %v5102 = vpop.f32.mrb[0].mxu0
        %v5103 = vadd.f32 %v4840, %v5102
        %v5104 = vpop.f32.mrb[0].mxu0
        %5105 = vmatprep.mubr.bf16.mxu0 %v3626
        %5106 = vmatmul.mubr.bf16.gmra.mrb[0].mxu0 %v2468
        %v5107 = vpop.f32.mrb[0].mxu0
        %v5108 = vadd.f32 %v4840, %v5107
        %v5109 = vpop.f32.mrb[0].mxu0
        %v5110 = vpop.f32.mrb[0].mxu0
        %v5111 = vadd.f32 %v4840, %v5110
        %v5112 = vpop.f32.mrb[0].mxu0
        %5113 = vmatprep.mubr.bf16.mxu0 %v3627
        %5114 = vmatmul.mubr.bf16.gmra.mrb[0].mxu0 %v2469
        %v5115 = vpop.f32.mrb[0].mxu0
        %v5116 = vadd.f32 %v4840, %v5115
        %v5117 = vpop.f32.mrb[0].mxu0
        %v5118 = vpop.f32.mrb[0].mxu0
        %v5119 = vadd.f32 %v4840, %v5118
        %v5120 = vpop.f32.mrb[0].mxu0
        %5121 = vmatprep.mubr.bf16.mxu0 %v3628
        %5122 = vmatmul.mubr.bf16.gmra.mrb[0].mxu0 %v2470
        %v5123 = vpop.f32.mrb[0].mxu0
        %v5124 = vadd.f32 %v4840, %v5123
        %v5125 = vpop.f32.mrb[0].mxu0
        %v5126 = vpop.f32.mrb[0].mxu0
        %v5127 = vadd.f32 %v4840, %v5126
        %v5128 = vpop.f32.mrb[0].mxu0
        %5129 = vmatprep.mubr.bf16.mxu0 %v3629
        %5130 = vmatmul.mubr.bf16.gmra.mrb[0].mxu0 %v2471
        %v5131 = vpop.f32.mrb[0].mxu0
        %v5132 = vadd.f32 %v4840, %v5131
        %v5133 = vpop.f32.mrb[0].mxu0
        %v5134 = vpop.f32.mrb[0].mxu0
        %v5135 = vadd.f32 %v4840, %v5134
        %v5136 = vpop.f32.mrb[0].mxu0
        %5137 = vmatprep.mubr.bf16.mxu0 %v3630
        %5138 = vmatmul.mubr.bf16.gmra.mrb[0].mxu0 %v2472
        %v5139 = vpop.f32.mrb[0].mxu0
        %v5140 = vadd.f32 %v4840, %v5139
        %v5141 = vpop.f32.mrb[0].mxu0
        %v5142 = vpop.f32.mrb[0].mxu0
        %v5143 = vadd.f32 %v4840, %v5142
        %v5144 = vpop.f32.mrb[0].mxu0
        %5145 = vdwg.mxu0
        %5146 = vmatprep.subr.bf16.mxu0 0
        %5147 = vmatpush1.bf16.msra.mxu0 %v4953
        %5148 = vmatprep.subr.bf16.mxu0 0
        %5149 = vmatpush1.bf16.msra.mxu0 %v4954
        %5150 = vmatprep.subr.bf16.mxu0 0
        %5151 = vmatpush1.bf16.msra.mxu0 %v4955
        %5152 = vmatprep.subr.bf16.mxu0 0
        %5153 = vmatpush1.bf16.msra.mxu0 %v4956
        %5154 = vmatprep.subr.bf16.mxu0 0
        %5155 = vmatpush1.bf16.msra.mxu0 %v4957
        %5156 = vmatprep.subr.bf16.mxu0 0
        %5157 = vmatpush1.bf16.msra.mxu0 %v4958
        %5158 = vmatprep.subr.bf16.mxu0 0
        %5159 = vmatpush1.bf16.msra.mxu0 %v4959
        %5160 = vmatprep.subr.bf16.mxu0 0
        %5161 = vmatpush1.bf16.msra.mxu0 %v4960
        %5162 = vmatprep.subr.bf16.mxu0 0
        %5163 = vmatpush1.bf16.msra.mxu0 0
        %5164 = vmatprep.subr.bf16.mxu0 0
        %5165 = vmatpush1.bf16.msra.mxu0 0
        %5166 = vmatprep.subr.bf16.mxu0 0
        %5167 = vmatpush1.bf16.msra.mxu0 0
        %5168 = vmatprep.subr.bf16.mxu0 0
        %5169 = vmatpush1.bf16.msra.mxu0 0
        %5170 = vmatprep.subr.bf16.mxu0 0
        %5171 = vmatpush1.bf16.msra.mxu0 0
        %5172 = vmatprep.subr.bf16.mxu0 0
        %5173 = vmatpush1.bf16.msra.mxu0 0
        %5174 = vmatprep.subr.bf16.mxu0 0
        %5175 = vmatpush1.bf16.msra.mxu0 0
        %5176 = vmatprep.subr.bf16.mxu0 0
        %5177 = vmatpush1.bf16.msra.mxu0 0
        %5178 = vmatprep.mubr.bf16.mxu0 0
        %5179 = vmatmul.mubr.bf16.gmra.mrb[0].mxu0 %v4773
        %v5180 = vpop.f32.mrb[0].mxu0
        %v5181 = vadd.f32 %v5020, %v5180
        %v5182 = vpop.f32.mrb[0].mxu0
        %v5183 = vpop.f32.mrb[0].mxu0
        %v5184 = vadd.f32 %v5023, %v5183
        %v5185 = vpop.f32.mrb[0].mxu0
        %5186 = vmatprep.mubr.bf16.mxu0 0
        %5187 = vmatmul.mubr.bf16.gmra.mrb[0].mxu0 %v4774
        %v5188 = vpop.f32.mrb[0].mxu0
        %v5189 = vadd.f32 %v5028, %v5188
        %v5190 = vpop.f32.mrb[0].mxu0
        %v5191 = vpop.f32.mrb[0].mxu0
        %v5192 = vadd.f32 %v5031, %v5191
        %v5193 = vpop.f32.mrb[0].mxu0
        %5194 = vmatprep.mubr.bf16.mxu0 0
        %5195 = vmatmul.mubr.bf16.gmra.mrb[0].mxu0 %v4775
        %v5196 = vpop.f32.mrb[0].mxu0
        %v5197 = vadd.f32 %v5036, %v5196
        %v5198 = vpop.f32.mrb[0].mxu0
        %v5199 = vpop.f32.mrb[0].mxu0
        %v5200 = vadd.f32 %v5039, %v5199
        %v5201 = vpop.f32.mrb[0].mxu0
        %5202 = vmatprep.mubr.bf16.mxu0 0
        %5203 = vmatmul.mubr.bf16.gmra.mrb[0].mxu0 %v4776
        %v5204 = vpop.f32.mrb[0].mxu0
        %v5205 = vadd.f32 %v5044, %v5204
        %v5206 = vpop.f32.mrb[0].mxu0
        %v5207 = vpop.f32.mrb[0].mxu0
        %v5208 = vadd.f32 %v5047, %v5207
        %v5209 = vpop.f32.mrb[0].mxu0
        %5210 = vmatprep.mubr.bf16.mxu0 0
        %5211 = vmatmul.mubr.bf16.gmra.mrb[0].mxu0 %v4777
        %v5212 = vpop.f32.mrb[0].mxu0
        %v5213 = vadd.f32 %v5052, %v5212
        %v5214 = vpop.f32.mrb[0].mxu0
        %v5215 = vpop.f32.mrb[0].mxu0
        %v5216 = vadd.f32 %v5055, %v5215
        %v5217 = vpop.f32.mrb[0].mxu0
        %5218 = vmatprep.mubr.bf16.mxu0 0
        %5219 = vmatmul.mubr.bf16.gmra.mrb[0].mxu0 %v4778
        %v5220 = vpop.f32.mrb[0].mxu0
        %v5221 = vadd.f32 %v5060, %v5220
        %v5222 = vpop.f32.mrb[0].mxu0
        %v5223 = vpop.f32.mrb[0].mxu0
        %v5224 = vadd.f32 %v5063, %v5223
        %v5225 = vpop.f32.mrb[0].mxu0
        %5226 = vmatprep.mubr.bf16.mxu0 0
        %5227 = vmatmul.mubr.bf16.gmra.mrb[0].mxu0 %v4779
        %v5228 = vpop.f32.mrb[0].mxu0
        %v5229 = vadd.f32 %v5068, %v5228
        %v5230 = vpop.f32.mrb[0].mxu0
        %v5231 = vpop.f32.mrb[0].mxu0
        %v5232 = vadd.f32 %v5071, %v5231
        %v5233 = vpop.f32.mrb[0].mxu0
        %5234 = vmatprep.mubr.bf16.mxu0 0
        %5235 = vmatmul.mubr.bf16.gmra.mrb[0].mxu0 %v4780
        %v5236 = vpop.f32.mrb[0].mxu0
        %v5237 = vadd.f32 %v5076, %v5236
        %v5238 = vpop.f32.mrb[0].mxu0
        %v5239 = vpop.f32.mrb[0].mxu0
        %v5240 = vadd.f32 %v5079, %v5239
        %v5241 = vpop.f32.mrb[0].mxu0
        %5242 = vmatprep.mubr.bf16.mxu0 0
        %5243 = vmatmul.mubr.bf16.gmra.mrb[0].mxu0 %v4781
        %v5244 = vpop.f32.mrb[0].mxu0
        %v5245 = vadd.f32 %v5084, %v5244
        %v5246 = vpop.f32.mrb[0].mxu0
        %v5247 = vpop.f32.mrb[0].mxu0
        %v5248 = vadd.f32 %v5087, %v5247
        %v5249 = vpop.f32.mrb[0].mxu0
        %5250 = vmatprep.mubr.bf16.mxu0 0
        %5251 = vmatmul.mubr.bf16.gmra.mrb[0].mxu0 %v4782
        %v5252 = vpop.f32.mrb[0].mxu0
        %v5253 = vadd.f32 %v5092, %v5252
        %v5254 = vpop.f32.mrb[0].mxu0
        %v5255 = vpop.f32.mrb[0].mxu0
        %v5256 = vadd.f32 %v5095, %v5255
        %v5257 = vpop.f32.mrb[0].mxu0
        %5258 = vmatprep.mubr.bf16.mxu0 0
        %5259 = vmatmul.mubr.bf16.gmra.mrb[0].mxu0 %v4783
        %v5260 = vpop.f32.mrb[0].mxu0
        %v5261 = vadd.f32 %v5100, %v5260
        %v5262 = vpop.f32.mrb[0].mxu0
        %v5263 = vpop.f32.mrb[0].mxu0
        %v5264 = vadd.f32 %v5103, %v5263
        %v5265 = vpop.f32.mrb[0].mxu0
        %5266 = vmatprep.mubr.bf16.mxu0 0
        %5267 = vmatmul.mubr.bf16.gmra.mrb[0].mxu0 %v4784
        %v5268 = vpop.f32.mrb[0].mxu0
        %v5269 = vadd.f32 %v5108, %v5268
        %v5270 = vpop.f32.mrb[0].mxu0
        %v5271 = vpop.f32.mrb[0].mxu0
        %v5272 = vadd.f32 %v5111, %v5271
        %v5273 = vpop.f32.mrb[0].mxu0
        %5274 = vmatprep.mubr.bf16.mxu0 0
        %5275 = vmatmul.mubr.bf16.gmra.mrb[0].mxu0 %v4785
        %v5276 = vpop.f32.mrb[0].mxu0
        %v5277 = vadd.f32 %v5116, %v5276
        %v5278 = vpop.f32.mrb[0].mxu0
        %v5279 = vpop.f32.mrb[0].mxu0
        %v5280 = vadd.f32 %v5119, %v5279
        %v5281 = vpop.f32.mrb[0].mxu0
        %5282 = vmatprep.mubr.bf16.mxu0 0
        %5283 = vmatmul.mubr.bf16.gmra.mrb[0].mxu0 %v4786
        %v5284 = vpop.f32.mrb[0].mxu0
        %v5285 = vadd.f32 %v5124, %v5284
        %v5286 = vpop.f32.mrb[0].mxu0
        %v5287 = vpop.f32.mrb[0].mxu0
        %v5288 = vadd.f32 %v5127, %v5287
        %v5289 = vpop.f32.mrb[0].mxu0
        %5290 = vmatprep.mubr.bf16.mxu0 0
        %5291 = vmatmul.mubr.bf16.gmra.mrb[0].mxu0 %v4787
        %v5292 = vpop.f32.mrb[0].mxu0
        %v5293 = vadd.f32 %v5132, %v5292
        %v5294 = vpop.f32.mrb[0].mxu0
        %v5295 = vpop.f32.mrb[0].mxu0
        %v5296 = vadd.f32 %v5135, %v5295
        %v5297 = vpop.f32.mrb[0].mxu0
        %5298 = vmatprep.mubr.bf16.mxu0 0
        %5299 = vmatmul.mubr.bf16.gmra.mrb[0].mxu0 %v4788
        %v5300 = vpop.f32.mrb[0].mxu0
        %v5301 = vadd.f32 %v5140, %v5300
        %v5302 = vpop.f32.mrb[0].mxu0
        %v5303 = vpop.f32.mrb[0].mxu0
        %v5304 = vadd.f32 %v5143, %v5303
        %v5305 = vpop.f32.mrb[0].mxu0
        %5306 = vdwg.mxu0
        %v5307 = vmax.f32 %v5181, 0.0
        %v5308 = vmax.f32 %v5184, 0.0
        %v5309 = vmax.f32 %v5189, 0.0
        %v5310 = vmax.f32 %v5192, 0.0
        %v5311 = vmax.f32 %v5197, 0.0
        %v5312 = vmax.f32 %v5200, 0.0
        %v5313 = vmax.f32 %v5205, 0.0
        %v5314 = vmax.f32 %v5208, 0.0
        %v5315 = vmax.f32 %v5213, 0.0
        %v5316 = vmax.f32 %v5216, 0.0
        %v5317 = vmax.f32 %v5221, 0.0
        %v5318 = vmax.f32 %v5224, 0.0
        %v5319 = vmax.f32 %v5229, 0.0
        %v5320 = vmax.f32 %v5232, 0.0
        %v5321 = vmax.f32 %v5237, 0.0
        %v5322 = vmax.f32 %v5240, 0.0
        %v5323 = vmax.f32 %v5245, 0.0
        %v5324 = vmax.f32 %v5248, 0.0
        %v5325 = vmax.f32 %v5253, 0.0
        %v5326 = vmax.f32 %v5256, 0.0
        %v5327 = vmax.f32 %v5261, 0.0
        %v5328 = vmax.f32 %v5264, 0.0
        %v5329 = vmax.f32 %v5269, 0.0
        %v5330 = vmax.f32 %v5272, 0.0
        %v5331 = vmax.f32 %v5277, 0.0
        %v5332 = vmax.f32 %v5280, 0.0
        %v5333 = vmax.f32 %v5285, 0.0
        %v5334 = vmax.f32 %v5288, 0.0
        %v5335 = vmax.f32 %v5293, 0.0
        %v5336 = vmax.f32 %v5296, 0.0
        %v5337 = vmax.f32 %v5301, 0.0
        %v5338 = vmax.f32 %v5304, 0.0
        %5339 = vst [vmem:[%s423] sm:$0xff] %v5307
        %5340 = vst [vmem:[%s423 + $0x8] sm:$0xff] %v5308
        %5341 = vst [vmem:[%s423 + $0x10] sm:$0xff] %v5309
        %5342 = vst [vmem:[%s423 + $0x18] sm:$0xff] %v5310
        %5343 = vst [vmem:[%s423 + $0x20] sm:$0xff] %v5311
        %5344 = vst [vmem:[%s423 + $0x28] sm:$0xff] %v5312
        %5345 = vst [vmem:[%s423 + $0x30] sm:$0xff] %v5313
        %5346 = vst [vmem:[%s423 + $0x38] sm:$0xff] %v5314
        %5347 = vst [vmem:[%s423 + $0x40] sm:$0xff] %v5315
        %5348 = vst [vmem:[%s423 + $0x48] sm:$0xff] %v5316
        %5349 = vst [vmem:[%s423 + $0x50] sm:$0xff] %v5317
        %5350 = vst [vmem:[%s423 + $0x58] sm:$0xff] %v5318
        %5351 = vst [vmem:[%s423 + $0x60] sm:$0xff] %v5319
        %5352 = vst [vmem:[%s423 + $0x68] sm:$0xff] %v5320
        %5353 = vst [vmem:[%s423 + $0x70] sm:$0xff] %v5321
        %5354 = vst [vmem:[%s423 + $0x78] sm:$0xff] %v5322
        %5355 = vst [vmem:[%s423 + $0x80] sm:$0xff] %v5323
        %5356 = vst [vmem:[%s423 + $0x88] sm:$0xff] %v5324
        %5357 = vst [vmem:[%s423 + $0x90] sm:$0xff] %v5325
        %5358 = vst [vmem:[%s423 + $0x98] sm:$0xff] %v5326
        %5359 = vst [vmem:[%s423 + $0xa0] sm:$0xff] %v5327
        %5360 = vst [vmem:[%s423 + $0xa8] sm:$0xff] %v5328
        %5361 = vst [vmem:[%s423 + $0xb0] sm:$0xff] %v5329
        %5362 = vst [vmem:[%s423 + $0xb8] sm:$0xff] %v5330
        %5363 = vst [vmem:[%s423 + $0xc0] sm:$0xff] %v5331
        %5364 = vst [vmem:[%s423 + $0xc8] sm:$0xff] %v5332
        %5365 = vst [vmem:[%s423 + $0xd0] sm:$0xff] %v5333
        %5366 = vst [vmem:[%s423 + $0xd8] sm:$0xff] %v5334
        %5367 = vst [vmem:[%s423 + $0xe0] sm:$0xff] %v5335
        %5368 = vst [vmem:[%s423 + $0xe8] sm:$0xff] %v5336
        %5369 = vst [vmem:[%s423 + $0xf0] sm:$0xff] %v5337
        %5370 = vst [vmem:[%s423 + $0xf8] sm:$0xff] %v5338
        %s5371 = sand.u32 %s235, 1
        %s5372 = scalar_lea.sflag [#allocation4], %s5371
        %s5373 = sand.u32 %s235, 1
        %s5374 = smul.addr %s5373, 256
        %s5375 = scalar_lea.vmem [#allocation11], %s5374
        // Predicated region
        $region77: #{tpu_custom_call.1} parent=55 // pred_check
          %p5376 = pneg %p245
        $region78: #{tpu_custom_call.1} parent=55 // pred_check_branch
          %5378 = sbr.rel (%p5376) target = $region80
        $region79: #{tpu_custom_call.1} parent=55 // pred_region
          %s5380 = ssub.s32 4096, 4096
          %5381 = vsyncadd %s5372, %s5380
          %s5382 = smul.addr %s28, 32
          %s5383 = smul.addr %s5382, 128
          %s5384 = scalar_lea.hbm %s9, %s5383
          %s5385 = sshll.u32 %s5375, 4
          %s5386 = int_to_ptr.vmem [resolvable:$true] %s5385
          %5391 = dma.vmem_to_hbm [thread:$0]  %s5386, 4096, %s5384, %s5372, 128, 128, 8
        $region80: #{tpu_custom_call.1} parent=55 // pred_fallthru
          _
      $region56: #{tpu_custom_call.1} parent=5 // pred_fallthru
        _
      %p5392 = scmp.le.s32.totalorder 2, %s23
      // Predicated region
      $region81: #{tpu_custom_call.1} parent=5 // pred_check
        %p5393 = pneg %p5392
      $region82: #{tpu_custom_call.1} parent=5 // pred_check_branch
        %5395 = sbr.rel (%p5393) target = $region84
      $region83: #{tpu_custom_call.1} parent=5 // pred_region
        %s5396 = ssub.s32 %s23, 2
        // Predicated region
        $region85: #{tpu_custom_call.1} parent=83 // pred_check
          %p5397 = pneg %p251
        $region86: #{tpu_custom_call.1} parent=83 // pred_check_branch
          %5399 = sbr.rel (%p5397) target = $region88
        $region87: #{tpu_custom_call.1} parent=83 // pred_region
          %s5400 = sand.u32 %s236, 1
          %s5401 = scalar_lea.sflag [#allocation4], %s5400
          %s5402 = sand.u32 %s236, 1
          %s5403 = smul.addr %s5402, 256
          %s5404 = scalar_lea.vmem [#allocation11], %s5403
          %5405 = dma.done %s5401, 4096
        $region88: #{tpu_custom_call.1} parent=83 // pred_fallthru
          _
      $region84: #{tpu_custom_call.1} parent=5 // pred_fallthru
        _
    $region6: #{tpu_custom_call.1} parent=1 // loop_footer
      %s27 = sadd.s32 1, %s23
    $region7: #{tpu_custom_call.1} parent=1 // loop_footer_branch
      %22 = sbr.rel target = $region3
    $region8: #{tpu_custom_call.1} parent=1 // loop_exit
      _
    %5406 = vsyncpa [#allocation3], 1
    %s5407 = scalar_lea.sflag [#allocation3], 1
    %5408 = vsyncpa %s5407, 1
    %5409 = vsyncpa [#allocation6], 1
    %5410 = vsyncpa [#allocation9], 1
    %5411 = vsyncpa [#allocation4], 1
    %s5412 = scalar_lea.sflag [#allocation4], 1
    %5413 = vsyncpa %s5412, 1

</llo_original>
